<compile_context>
chip_gen: v7x
topology: tpu7x:2x2x1
jax: 0.10.0
libtpu: 0.0.40
codegen_flags: <defaults>
</compile_context>

<pallas_src>
import functools

import jax
import jax.numpy as jnp
from jax.experimental import pallas as pl
from jax.experimental.pallas import tpu as pltpu


HIDDEN = 1024
BN_EPS = 1e-5


# ----------------------------------------------------------------------------
# Fused 5-layer MLP kernel.
# grid = (3,): one step per identical 1024x1024 hidden layer (layers 2..4).
#   step 0 : layer 1 (F -> H)  then layer 2 (H -> H)
#   step 1 : layer 3 (H -> H)
#   step 2 : layer 4 (H -> H)  then layer 5 (H -> n_pad), no BN / ReLU
# The activation h lives in a VMEM scratch across steps; the stacked hidden
# weights stream through the Pallas pipeline (double-buffered).
# ----------------------------------------------------------------------------
def _fused_mlp_kernel(x_ref, w1_ref, s1_ref, t1_ref,
                      wh_ref, sh_ref, th_ref,
                      w5_ref, t5_ref,
                      o_ref, h_ref):
    l = pl.program_id(0)

    @pl.when(l == 0)
    def _():
        # Layer 1: relu((x @ W1) * scale1 + shift1)   (bias folded into shift)
        y = jnp.dot(x_ref[...], w1_ref[...], preferred_element_type=jnp.float32)
        y = jnp.maximum(y * s1_ref[...] + t1_ref[...], 0.0)
        h_ref[...] = y.astype(h_ref.dtype)

    # Hidden layer (2 + l): relu((h @ Wh[l]) * scale[l] + shift[l])
    y = jnp.dot(h_ref[...], wh_ref[...], preferred_element_type=jnp.float32)
    y = jnp.maximum(y * sh_ref[...] + th_ref[...], 0.0)
    h_ref[...] = y.astype(h_ref.dtype)

    @pl.when(l == pl.num_programs(0) - 1)
    def _():
        # Layer 5: h @ W5 + b5  (no BatchNorm / ReLU), lane-padded output.
        out = jnp.dot(h_ref[...], w5_ref[...], preferred_element_type=jnp.float32)
        o_ref[...] = out + t5_ref[...]


def fused_mlp(x_bf16, w1, s1, t1, wh, sh, th, w5, t5):
    B, F = x_bf16.shape
    H = w1.shape[1]
    n_hidden = wh.shape[0]
    n_pad = w5.shape[1]

    return pl.pallas_call(
        _fused_mlp_kernel,
        out_shape=jax.ShapeDtypeStruct((B, n_pad), jnp.float32),
        grid_spec=pltpu.PrefetchScalarGridSpec(
            num_scalar_prefetch=0,
            grid=(n_hidden,),
            in_specs=[
                pl.BlockSpec((B, F), lambda l: (0, 0)),           # x
                pl.BlockSpec((F, H), lambda l: (0, 0)),           # W1
                pl.BlockSpec((1, H), lambda l: (0, 0)),           # scale1
                pl.BlockSpec((1, H), lambda l: (0, 0)),           # shift1
                pl.BlockSpec((None, H, H), lambda l: (l, 0, 0)),  # Wh[l]
                pl.BlockSpec((None, 1, H), lambda l: (l, 0, 0)),  # scale[l]
                pl.BlockSpec((None, 1, H), lambda l: (l, 0, 0)),  # shift[l]
                pl.BlockSpec((H, n_pad), lambda l: (0, 0)),       # W5 (padded)
                pl.BlockSpec((1, n_pad), lambda l: (0, 0)),       # b5 (padded)
            ],
            out_specs=pl.BlockSpec((B, n_pad), lambda l: (0, 0)),
            scratch_shapes=[pltpu.VMEM((B, H), jnp.bfloat16)],
        ),
        compiler_params=pltpu.CompilerParams(
            # The layer axis carries the activation dependency -> sequential.
            # TODO(synk): a second "parallel" N-tiling axis (2 TCs on v7x)
            # would need a cross-core activation exchange every layer; kept
            # single-core since the kernel is weight-DMA bound at batch=8.
            dimension_semantics=("arbitrary",),
        ),
    )(x_bf16, w1, s1, t1, wh, sh, th, w5, t5)


# ----------------------------------------------------------------------------
# Parameter construction (deterministic, in-script) and host-side folding
# ----------------------------------------------------------------------------
def init_params(key, num_features, num_labels):
    dims = [num_features, HIDDEN, HIDDEN, HIDDEN, HIDDEN, num_labels]
    params = []
    for i in range(5):
        fan_in, fan_out = dims[i], dims[i + 1]
        key, kw, kb, kg, kbe, km, kv = jax.random.split(key, 7)
        bound = 1.0 / jnp.sqrt(fan_in)
        w = jax.random.uniform(kw, (fan_in, fan_out), jnp.float32, -bound, bound)
        b = jax.random.uniform(kb, (1, fan_out), jnp.float32, -bound, bound)
        layer = {"w": w, "b": b}
        if i < 4:  # hidden layers have BatchNorm1d
            layer["gamma"] = 1.0 + 0.05 * jax.random.normal(kg, (1, fan_out), jnp.float32)
            layer["beta"] = 0.05 * jax.random.normal(kbe, (1, fan_out), jnp.float32)
            layer["running_mean"] = 0.05 * jax.random.normal(km, (1, fan_out), jnp.float32)
            layer["running_var"] = 1.0 + 0.05 * jax.random.uniform(kv, (1, fan_out), jnp.float32)
        params.append(layer)
    return params


def _bn_affine(layer):
    scale = layer["gamma"] / jnp.sqrt(layer["running_var"] + BN_EPS)
    shift = (layer["b"] - layer["running_mean"]) * scale + layer["beta"]
    return scale.astype(jnp.float32), shift.astype(jnp.float32)


def fold_params(params):
    """Fold BN running stats + Linear bias into affines, cast weights to bf16
    (done once, outside jit), stack the identical hidden layers, and lane-pad
    the final layer to a multiple of 128."""
    s1, t1 = _bn_affine(params[0])
    w1 = params[0]["w"].astype(jnp.bfloat16)

    wh = jnp.stack([p["w"] for p in params[1:4]]).astype(jnp.bfloat16)
    affines = [_bn_affine(p) for p in params[1:4]]
    sh = jnp.stack([s for s, _ in affines])
    th = jnp.stack([t for _, t in affines])

    w5_f32, b5 = params[4]["w"], params[4]["b"]
    h_dim, n = w5_f32.shape
    n_pad = ((n + 127) // 128) * 128
    w5 = jnp.zeros((h_dim, n_pad), jnp.bfloat16).at[:, :n].set(
        w5_f32.astype(jnp.bfloat16))
    t5 = jnp.zeros((1, n_pad), jnp.float32).at[:, :n].set(b5)

    return dict(w1=w1, s1=s1, t1=t1, wh=wh, sh=sh, th=th, w5=w5, t5=t5)


# ----------------------------------------------------------------------------
# Forward pass
# ----------------------------------------------------------------------------
def forward(folded, x, *, num_labels):
    # TODO(synk): Dropout(0.2) is identity in eval mode; train-mode RNG masking
    # and BN batch-statistics updates are not emitted.
    out_pad = fused_mlp(x.astype(jnp.bfloat16), **folded)
    return out_pad[:, :num_labels]


def forward_ref(params, x):
    """Pure-JAX reference with the same bf16-weight / bf16-activation,
    f32-accumulation numerics as the kernel."""
    h = x
    for i, layer in enumerate(params):
        y = jnp.dot(h.astype(jnp.bfloat16), layer["w"].astype(jnp.bfloat16),
                    preferred_element_type=jnp.float32)
        if i < 4:
            scale, shift = _bn_affine(layer)
            h = jnp.maximum(y * scale + shift, 0.0)
        else:
            h = y + layer["b"]
    return h


if __name__ == "__main__":
    NUM_FEATURES = 256
    NUM_LABELS = 16
    BATCH = 8

    key = jax.random.PRNGKey(0)
    kp, kx = jax.random.split(key)
    params = init_params(kp, NUM_FEATURES, NUM_LABELS)
    x = jax.random.normal(kx, (BATCH, NUM_FEATURES), jnp.float32)

    folded = fold_params(params)  # one-time host-side folding / bf16 cast
    fwd = jax.jit(functools.partial(forward, num_labels=NUM_LABELS))

    out = jax.block_until_ready(fwd(folded, x))

    ref = forward_ref(params, x)
    assert out.shape == (BATCH, NUM_LABELS), out.shape
    assert jnp.allclose(out, ref, atol=1e-2, rtol=1e-2), float(
        jnp.max(jnp.abs(out - ref)))

    print("KERNEL_OK")
</pallas_src>

<mosaic_0001>
module attributes {stable_mosaic.version = 11 : i64} {
  func.func @_fused_mlp_kernel(%arg0: i32, %arg1: memref<8x256xbf16, #tpu.memory_space<vmem>>, %arg2: memref<256x1024xbf16, #tpu.memory_space<vmem>>, %arg3: memref<1x1024xf32, #tpu.memory_space<vmem>>, %arg4: memref<1x1024xf32, #tpu.memory_space<vmem>>, %arg5: memref<1x1024x1024xbf16, #tpu.memory_space<vmem>>, %arg6: memref<1x1x1024xf32, #tpu.memory_space<vmem>>, %arg7: memref<1x1x1024xf32, #tpu.memory_space<vmem>>, %arg8: memref<1024x128xbf16, #tpu.memory_space<vmem>>, %arg9: memref<1x128xf32, #tpu.memory_space<vmem>>, %arg10: memref<8x128xf32, #tpu.memory_space<vmem>>, %arg11: memref<8x1024xbf16, #tpu.memory_space<vmem>>) attributes {dimension_semantics = [#tpu.dimension_semantics<arbitrary>], iteration_bounds = array<i64: 3>, scalar_prefetch = 0 : i64, scratch_operands = 1 : i64, tpu.core_type = #tpu.core_type<tc>, window_params = [{pipeline_mode = #tpu.pipeline_mode<synchronous>, transform_indices = @transform_0, window_bounds = array<i64: 8, 256>}, {pipeline_mode = #tpu.pipeline_mode<synchronous>, transform_indices = @transform_1, window_bounds = array<i64: 256, 1024>}, {pipeline_mode = #tpu.pipeline_mode<synchronous>, transform_indices = @transform_2, window_bounds = array<i64: 1, 1024>}, {pipeline_mode = #tpu.pipeline_mode<synchronous>, transform_indices = @transform_3, window_bounds = array<i64: 1, 1024>}, {transform_indices = @transform_4, window_bounds = array<i64: 1, 1024, 1024>}, {transform_indices = @transform_5, window_bounds = array<i64: 1, 1, 1024>}, {transform_indices = @transform_6, window_bounds = array<i64: 1, 1, 1024>}, {pipeline_mode = #tpu.pipeline_mode<synchronous>, transform_indices = @transform_7, window_bounds = array<i64: 1024, 128>}, {pipeline_mode = #tpu.pipeline_mode<synchronous>, transform_indices = @transform_8, window_bounds = array<i64: 1, 128>}, {pipeline_mode = #tpu.pipeline_mode<synchronous>, transform_indices = @transform_9, window_bounds = array<i64: 8, 128>}]} {
    %c0_i32 = arith.constant 0 : i32
    %0 = arith.cmpi eq, %arg0, %c0_i32 : i32
    %1 = arith.extui %0 : i1 to i32
    %c0_i32_0 = arith.constant 0 : i32
    %2 = arith.cmpi ne, %1, %c0_i32_0 : i32
    scf.if %2 {
      %c0_15 = arith.constant 0 : index
      %c0_16 = arith.constant 0 : index
      %22 = vector.load %arg1[%c0_15, %c0_16] : memref<8x256xbf16, #tpu.memory_space<vmem>>, vector<8x256xbf16>
      %c0_17 = arith.constant 0 : index
      %c0_18 = arith.constant 0 : index
      %23 = vector.load %arg2[%c0_17, %c0_18] : memref<256x1024xbf16, #tpu.memory_space<vmem>>, vector<256x1024xbf16>
      %cst_19 = arith.constant dense<0.000000e+00> : vector<8x1024xf32>
      %24 = tpu.matmul %22, %23, %cst_19 {dimension_numbers = #tpu.dot_dimension_numbers<[1], [0], [0], [1], [0, 0, 1, 1], [], []>} : vector<8x256xbf16>, vector<256x1024xbf16>, vector<8x1024xf32> -> vector<8x1024xf32>
      %c0_20 = arith.constant 0 : index
      %c0_21 = arith.constant 0 : index
      %25 = vector.load %arg3[%c0_20, %c0_21] : memref<1x1024xf32, #tpu.memory_space<vmem>>, vector<1x1024xf32>
      %26 = vector.broadcast %25 : vector<1x1024xf32> to vector<8x1024xf32>
      %27 = arith.mulf %24, %26 : vector<8x1024xf32>
      %c0_22 = arith.constant 0 : index
      %c0_23 = arith.constant 0 : index
      %28 = vector.load %arg4[%c0_22, %c0_23] : memref<1x1024xf32, #tpu.memory_space<vmem>>, vector<1x1024xf32>
      %29 = vector.broadcast %28 : vector<1x1024xf32> to vector<8x1024xf32>
      %30 = arith.addf %27, %29 : vector<8x1024xf32>
      %cst_24 = arith.constant 0.000000e+00 : f32
      %31 = vector.broadcast %cst_24 : f32 to vector<8x1024xf32>
      %32 = arith.maximumf %30, %31 : vector<8x1024xf32>
      %33 = arith.truncf %32 : vector<8x1024xf32> to vector<8x1024xbf16>
      %c0_25 = arith.constant 0 : index
      %c0_26 = arith.constant 0 : index
      %34 = vector.load %arg11[%c0_25, %c0_26] : memref<8x1024xbf16, #tpu.memory_space<vmem>>, vector<8x1024xbf16>
      tpu.vector_store %arg11[%c0_25, %c0_26], %33 {strides = array<i32>} : memref<8x1024xbf16, #tpu.memory_space<vmem>>, vector<8x1024xbf16>,
    } else {
    }
    %c0 = arith.constant 0 : index
    %c0_1 = arith.constant 0 : index
    %3 = vector.load %arg11[%c0, %c0_1] : memref<8x1024xbf16, #tpu.memory_space<vmem>>, vector<8x1024xbf16>
    %c0_2 = arith.constant 0 : index
    %c0_3 = arith.constant 0 : index
    %c0_4 = arith.constant 0 : index
    %4 = vector.load %arg5[%c0_2, %c0_3, %c0_4] : memref<1x1024x1024xbf16, #tpu.memory_space<vmem>>, vector<1x1024x1024xbf16>
    %5 = vector.shape_cast %4 : vector<1x1024x1024xbf16> to vector<1024x1024xbf16>
    %cst = arith.constant dense<0.000000e+00> : vector<8x1024xf32>
    %6 = tpu.matmul %3, %5, %cst {dimension_numbers = #tpu.dot_dimension_numbers<[1], [0], [0], [1], [0, 0, 1, 1], [], []>} : vector<8x1024xbf16>, vector<1024x1024xbf16>, vector<8x1024xf32> -> vector<8x1024xf32>
    %c0_5 = arith.constant 0 : index
    %c0_6 = arith.constant 0 : index
    %c0_7 = arith.constant 0 : index
    %7 = vector.load %arg6[%c0_5, %c0_6, %c0_7] : memref<1x1x1024xf32, #tpu.memory_space<vmem>>, vector<1x1x1024xf32>
    %8 = vector.shape_cast %7 : vector<1x1x1024xf32> to vector<1x1024xf32>
    %9 = vector.broadcast %8 : vector<1x1024xf32> to vector<8x1024xf32>
    %10 = arith.mulf %6, %9 : vector<8x1024xf32>
    %c0_8 = arith.constant 0 : index
    %c0_9 = arith.constant 0 : index
    %c0_10 = arith.constant 0 : index
    %11 = vector.load %arg7[%c0_8, %c0_9, %c0_10] : memref<1x1x1024xf32, #tpu.memory_space<vmem>>, vector<1x1x1024xf32>
    %12 = vector.shape_cast %11 : vector<1x1x1024xf32> to vector<1x1024xf32>
    %13 = vector.broadcast %12 : vector<1x1024xf32> to vector<8x1024xf32>
    %14 = arith.addf %10, %13 : vector<8x1024xf32>
    %cst_11 = arith.constant 0.000000e+00 : f32
    %15 = vector.broadcast %cst_11 : f32 to vector<8x1024xf32>
    %16 = arith.maximumf %14, %15 : vector<8x1024xf32>
    %17 = arith.truncf %16 : vector<8x1024xf32> to vector<8x1024xbf16>
    %c0_12 = arith.constant 0 : index
    %c0_13 = arith.constant 0 : index
    %18 = vector.load %arg11[%c0_12, %c0_13] : memref<8x1024xbf16, #tpu.memory_space<vmem>>, vector<8x1024xbf16>
    tpu.vector_store %arg11[%c0_12, %c0_13], %17 {strides = array<i32>} : memref<8x1024xbf16, #tpu.memory_space<vmem>>, vector<8x1024xbf16>,
    %c2_i32 = arith.constant 2 : i32
    %19 = arith.cmpi eq, %arg0, %c2_i32 : i32
    %20 = arith.extui %19 : i1 to i32
    %c0_i32_14 = arith.constant 0 : i32
    %21 = arith.cmpi ne, %20, %c0_i32_14 : i32
    scf.if %21 {
      %c0_15 = arith.constant 0 : index
      %c0_16 = arith.constant 0 : index
      %22 = vector.load %arg11[%c0_15, %c0_16] : memref<8x1024xbf16, #tpu.memory_space<vmem>>, vector<8x1024xbf16>
      %c0_17 = arith.constant 0 : index
      %c0_18 = arith.constant 0 : index
      %23 = vector.load %arg8[%c0_17, %c0_18] : memref<1024x128xbf16, #tpu.memory_space<vmem>>, vector<1024x128xbf16>
      %cst_19 = arith.constant dense<0.000000e+00> : vector<8x128xf32>
      %24 = tpu.matmul %22, %23, %cst_19 {dimension_numbers = #tpu.dot_dimension_numbers<[1], [0], [0], [1], [0, 0, 1, 1], [], []>} : vector<8x1024xbf16>, vector<1024x128xbf16>, vector<8x128xf32> -> vector<8x128xf32>
      %c0_20 = arith.constant 0 : index
      %c0_21 = arith.constant 0 : index
      %25 = vector.load %arg9[%c0_20, %c0_21] : memref<1x128xf32, #tpu.memory_space<vmem>>, vector<1x128xf32>
      %26 = vector.broadcast %25 : vector<1x128xf32> to vector<8x128xf32>
      %27 = arith.addf %24, %26 : vector<8x128xf32>
      %c0_22 = arith.constant 0 : index
      %c0_23 = arith.constant 0 : index
      %28 = vector.load %arg10[%c0_22, %c0_23] : memref<8x128xf32, #tpu.memory_space<vmem>>, vector<8x128xf32>
      tpu.vector_store %arg10[%c0_22, %c0_23], %27 {strides = array<i32>} : memref<8x128xf32, #tpu.memory_space<vmem>>, vector<8x128xf32>,
    } else {
    }
    return
  }
  func.func @transform_0(%arg0: i32) -> (i32, i32) {
    %c0_i32 = arith.constant 0 : i32
    %c0_i32_0 = arith.constant 0 : i32
    %c0_i32_1 = arith.constant 0 : i32
    return %c0_i32, %c0_i32_0 : i32, i32
  }
  func.func @transform_1(%arg0: i32) -> (i32, i32) {
    %c0_i32 = arith.constant 0 : i32
    %c0_i32_0 = arith.constant 0 : i32
    %c0_i32_1 = arith.constant 0 : i32
    return %c0_i32, %c0_i32_0 : i32, i32
  }
  func.func @transform_2(%arg0: i32) -> (i32, i32) {
    %c0_i32 = arith.constant 0 : i32
    %c0_i32_0 = arith.constant 0 : i32
    %c0_i32_1 = arith.constant 0 : i32
    return %c0_i32, %c0_i32_0 : i32, i32
  }
  func.func @transform_3(%arg0: i32) -> (i32, i32) {
    %c0_i32 = arith.constant 0 : i32
    %c0_i32_0 = arith.constant 0 : i32
    %c0_i32_1 = arith.constant 0 : i32
    return %c0_i32, %c0_i32_0 : i32, i32
  }
  func.func @transform_4(%arg0: i32) -> (i32, i32, i32) {
    %c0_i32 = arith.constant 0 : i32
    %c0_i32_0 = arith.constant 0 : i32
    %c0_i32_1 = arith.constant 0 : i32
    return %arg0, %c0_i32, %c0_i32_0 : i32, i32, i32
  }
  func.func @transform_5(%arg0: i32) -> (i32, i32, i32) {
    %c0_i32 = arith.constant 0 : i32
    %c0_i32_0 = arith.constant 0 : i32
    %c0_i32_1 = arith.constant 0 : i32
    return %arg0, %c0_i32, %c0_i32_0 : i32, i32, i32
  }
  func.func @transform_6(%arg0: i32) -> (i32, i32, i32) {
    %c0_i32 = arith.constant 0 : i32
    %c0_i32_0 = arith.constant 0 : i32
    %c0_i32_1 = arith.constant 0 : i32
    return %arg0, %c0_i32, %c0_i32_0 : i32, i32, i32
  }
  func.func @transform_7(%arg0: i32) -> (i32, i32) {
    %c0_i32 = arith.constant 0 : i32
    %c0_i32_0 = arith.constant 0 : i32
    %c0_i32_1 = arith.constant 0 : i32
    return %c0_i32, %c0_i32_0 : i32, i32
  }
  func.func @transform_8(%arg0: i32) -> (i32, i32) {
    %c0_i32 = arith.constant 0 : i32
    %c0_i32_0 = arith.constant 0 : i32
    %c0_i32_1 = arith.constant 0 : i32
    return %c0_i32, %c0_i32_0 : i32, i32
  }
  func.func @transform_9(%arg0: i32) -> (i32, i32) {
    %c0_i32 = arith.constant 0 : i32
    %c0_i32_0 = arith.constant 0 : i32
    %c0_i32_1 = arith.constant 0 : i32
    return %c0_i32, %c0_i32_0 : i32, i32
  }
}

</mosaic_0001>

<llo_original>
// kernel: forward.1
$region0: #{forward.1}
  #allocation0 [shape = 'u32[]', space=smem, size = 0x4, offset = 0x4, fixed_abs, tag = 'smem constant byte address 0x4 - core index']
  #allocation1 [shape = 'u32[144,128]{1,0:T(1,128)}', space=vmem, size = 0x12000, scoped, tag = 'internal scratch']
  #allocation2 [shape = 'bf16[8,1024]{1,0:T(8,128)(2,1)}', space=vmem, size = 0x4000, scoped, tag = 'scratch operand']
  %s0 = inlined_call_operand.vmem [shape: bf16[8,256], index: 0, kind: input, shape index: {}]
  %s1 = inlined_call_operand.hbm [shape: bf16[256,1024], index: 1, kind: input, shape index: {}]
  %s2 = inlined_call_operand.hbm [shape: f32[1,1024], index: 2, kind: input, shape index: {}]
  %s3 = inlined_call_operand.hbm [shape: f32[1,1024], index: 3, kind: input, shape index: {}]
  %s4 = inlined_call_operand.hbm [shape: bf16[3,1024,1024], index: 4, kind: input, shape index: {}]
  %s5 = inlined_call_operand.hbm [shape: f32[3,1,1024], index: 5, kind: input, shape index: {}]
  %s6 = inlined_call_operand.hbm [shape: f32[3,1,1024], index: 6, kind: input, shape index: {}]
  %s7 = inlined_call_operand.hbm [shape: bf16[1024,128], index: 7, kind: input, shape index: {}]
  %s8 = inlined_call_operand.hbm [shape: f32[1,128], index: 8, kind: input, shape index: {}]
  %s9 = inlined_call_operand.hbm [shape: f32[8,128], index: 9, kind: output, shape index: {}]
  %s10 = sld [smem:[#allocation0]]
  $region109: #{forward.1} parent=0
    _
  %s12 = ssub.s32 1, %s10
  %s13 = scalar_select 0, %s12, %s10
  $region1: #{forward.1} parent=0
    #allocation3 [shape = 'u8[524288]{0}', space=vmem, size = 0x80000, scoped, tag = 'input window, operand 1, single buffered']
    #allocation4 [shape = 's32[2]{0}', space=sflag, size = 0x8, scoped, tag = 'scoped memory for forward.1']
    #allocation5 [shape = 's32[2]{0}', space=sflag, size = 0x8, scoped, tag = 'scoped memory for forward.1']
    #allocation6 [shape = 'u8[4096]{0}', space=vmem, size = 0x1000, scoped, tag = 'input window, operand 2, single buffered']
    #allocation7 [shape = 's32[1]{0}', space=sflag, size = 0x4, scoped, tag = 'scoped memory for forward.1']
    #allocation8 [shape = 'u8[4096]{0}', space=vmem, size = 0x1000, scoped, tag = 'input window, operand 3, single buffered']
    #allocation9 [shape = 'u8[4194304]{0}', space=vmem, size = 0x400000, scoped, tag = 'input window, operand 4']
    #allocation10 [shape = 's32[2]{0}', space=sflag, size = 0x8, scoped, tag = 'scoped memory for forward.1']
    #allocation11 [shape = 'u8[8192]{0}', space=vmem, size = 0x2000, scoped, tag = 'input window, operand 5']
    #allocation12 [shape = 'u8[8192]{0}', space=vmem, size = 0x2000, scoped, tag = 'input window, operand 6']
    #allocation13 [shape = 's32[2]{0}', space=sflag, size = 0x8, scoped, tag = 'scoped memory for forward.1']
    #allocation14 [shape = 'u8[262144]{0}', space=vmem, size = 0x40000, scoped, tag = 'input window, operand 7, single buffered']
    #allocation15 [shape = 'u8[512]{0}', space=vmem, size = 0x400, scoped, tag = 'input window, operand 8, single buffered']
    #allocation16 [shape = 's32[1]{0}', space=sflag, size = 0x4, scoped, tag = 'scoped memory for forward.1']
    #allocation17 [shape = 'u8[4096]{0}', space=vmem, size = 0x1000, scoped, tag = 'output window, operand 0, single buffered']
    %14 = vsyncpa [#allocation4], 0
    %15 = vsyncpa [#allocation7], 0
    %16 = vsyncpa [#allocation10], 0
    %s17 = scalar_lea.sflag [#allocation10], 1
    %18 = vsyncpa %s17, 0
    %19 = vsyncpa [#allocation13], 0
    %s20 = scalar_lea.sflag [#allocation13], 1
    %21 = vsyncpa %s20, 0
    %22 = vsyncpa [#allocation16], 0
    %23 = vsyncpa [#allocation5], 0
    loop: start=0, step=1, limit=5
    $region2: #{forward.1} parent=1 // loop_pre_header
      _
    $region3: #{forward.1} parent=1 // loop_header
      %s25 = sphi 0, %s29
      %p26 = scmp.ge.s32.totalorder %s25, 5
      %s33 = sphi 0, %s33
      %s35 = sphi 0, %s33
      %s36 = sphi 0, %s35
      %s50 = sphi 0, %s36
      %s54 = sphi 0, %s54
      %s56 = sphi 0, %s54
      %s57 = sphi 0, %s56
      %s71 = sphi 0, %s57
      %s75 = sphi 0, %s75
      %s77 = sphi 0, %s75
      %s78 = sphi 0, %s77
      %s92 = sphi 0, %s78
      %s96 = sphi 0, %s96
      %s98 = sphi 0, %s96
      %s99 = sphi 0, %s98
      %s113 = sphi 0, %s99
      %s119 = sphi 0, %s121
      %s122 = sphi 0, %s119
      %s123 = sphi 0, %s122
      %s139 = sphi 0, %s123
      %s145 = sphi 0, %s147
      %s148 = sphi 0, %s145
      %s149 = sphi 0, %s148
      %s165 = sphi 0, %s149
      %s171 = sphi 0, %s173
      %s174 = sphi 0, %s171
      %s175 = sphi 0, %s174
      %s191 = sphi 0, %s175
      %s195 = sphi 0, %s195
      %s197 = sphi 0, %s195
      %s198 = sphi 0, %s197
      %s212 = sphi 0, %s198
      %s216 = sphi 0, %s216
      %s218 = sphi 0, %s216
      %s219 = sphi 0, %s218
      %s233 = sphi 0, %s219
      %s237 = sphi 0, %s237
      %s239 = sphi 0, %s237
      %s240 = sphi 0, %s239
      %s254 = sphi 0, %s240
    $region4: #{forward.1} parent=1 // loop_header_branch
      %28 = sbr.rel (%p26) target = $region8
    $region5: #{forward.1} parent=1 // loop_body
      %s30 = ssub.s32 %s25, 1
      %s31 = ssub.s32 %s25, 2
      %s32 = sadd.s32 %s25, 1
      %s34 = sadd.s32 %s33, 1
      %p37 = scmp.eq.s32.totalorder %s25, 2
      %p38 = scmp.ne.s32.totalorder %s33, %s35
      %p39 = scmp.eq.s32.totalorder %s25, 0
      %p40 = por %p38, %p39
      %p41 = scmp.ne.s32.totalorder %s33, %s35
      %p42 = scmp.eq.s32.totalorder %s30, 2
      %p43 = por %p41, %p42
      %p44 = scmp.ne.s32.totalorder %s35, %s36
      %p45 = scmp.eq.s32.totalorder %s30, 0
      %p46 = por %p44, %p45
      %p47 = scmp.ne.s32.totalorder %s35, %s36
      %p48 = scmp.eq.s32.totalorder %s31, 2
      %p49 = por %p47, %p48
      %p51 = scmp.ne.s32.totalorder %s36, %s50
      %p52 = scmp.eq.s32.totalorder %s31, 0
      %p53 = por %p51, %p52
      %s55 = sadd.s32 %s54, 1
      %p58 = scmp.eq.s32.totalorder %s25, 2
      %p59 = scmp.ne.s32.totalorder %s54, %s56
      %p60 = scmp.eq.s32.totalorder %s25, 0
      %p61 = por %p59, %p60
      %p62 = scmp.ne.s32.totalorder %s54, %s56
      %p63 = scmp.eq.s32.totalorder %s30, 2
      %p64 = por %p62, %p63
      %p65 = scmp.ne.s32.totalorder %s56, %s57
      %p66 = scmp.eq.s32.totalorder %s30, 0
      %p67 = por %p65, %p66
      %p68 = scmp.ne.s32.totalorder %s56, %s57
      %p69 = scmp.eq.s32.totalorder %s31, 2
      %p70 = por %p68, %p69
      %p72 = scmp.ne.s32.totalorder %s57, %s71
      %p73 = scmp.eq.s32.totalorder %s31, 0
      %p74 = por %p72, %p73
      %s76 = sadd.s32 %s75, 1
      %p79 = scmp.eq.s32.totalorder %s25, 2
      %p80 = scmp.ne.s32.totalorder %s75, %s77
      %p81 = scmp.eq.s32.totalorder %s25, 0
      %p82 = por %p80, %p81
      %p83 = scmp.ne.s32.totalorder %s75, %s77
      %p84 = scmp.eq.s32.totalorder %s30, 2
      %p85 = por %p83, %p84
      %p86 = scmp.ne.s32.totalorder %s77, %s78
      %p87 = scmp.eq.s32.totalorder %s30, 0
      %p88 = por %p86, %p87
      %p89 = scmp.ne.s32.totalorder %s77, %s78
      %p90 = scmp.eq.s32.totalorder %s31, 2
      %p91 = por %p89, %p90
      %p93 = scmp.ne.s32.totalorder %s78, %s92
      %p94 = scmp.eq.s32.totalorder %s31, 0
      %p95 = por %p93, %p94
      %s97 = sadd.s32 %s96, 1
      %p100 = scmp.eq.s32.totalorder %s25, 2
      %p101 = scmp.ne.s32.totalorder %s96, %s98
      %p102 = scmp.eq.s32.totalorder %s25, 0
      %p103 = por %p101, %p102
      %p104 = scmp.ne.s32.totalorder %s96, %s98
      %p105 = scmp.eq.s32.totalorder %s30, 2
      %p106 = por %p104, %p105
      %p107 = scmp.ne.s32.totalorder %s98, %s99
      %p108 = scmp.eq.s32.totalorder %s30, 0
      %p109 = por %p107, %p108
      %p110 = scmp.ne.s32.totalorder %s98, %s99
      %p111 = scmp.eq.s32.totalorder %s31, 2
      %p112 = por %p110, %p111
      %p114 = scmp.ne.s32.totalorder %s99, %s113
      %p115 = scmp.eq.s32.totalorder %s31, 0
      %p116 = por %p114, %p115
      %s117 = ssub.s32 %s25, %s32
      %p118 = scmp.eq.s32.totalorder %s117, 0
      %s120 = sadd.s32 %s119, 1
      %s121 = scalar_select %p118, %s119, %s120
      %p124 = pneg %p118
      %p125 = scmp.eq.s32.totalorder %s25, 2
      %p126 = por %p124, %p125
      %p127 = scmp.ne.s32.totalorder %s119, %s122
      %p128 = scmp.eq.s32.totalorder %s25, 0
      %p129 = por %p127, %p128
      %p130 = scmp.ne.s32.totalorder %s119, %s122
      %p131 = scmp.eq.s32.totalorder %s30, 2
      %p132 = por %p130, %p131
      %p133 = scmp.ne.s32.totalorder %s122, %s123
      %p134 = scmp.eq.s32.totalorder %s30, 0
      %p135 = por %p133, %p134
      %p136 = scmp.ne.s32.totalorder %s122, %s123
      %p137 = scmp.eq.s32.totalorder %s31, 2
      %p138 = por %p136, %p137
      %p140 = scmp.ne.s32.totalorder %s123, %s139
      %p141 = scmp.eq.s32.totalorder %s31, 0
      %p142 = por %p140, %p141
      %s143 = ssub.s32 %s25, %s32
      %p144 = scmp.eq.s32.totalorder %s143, 0
      %s146 = sadd.s32 %s145, 1
      %s147 = scalar_select %p144, %s145, %s146
      %p150 = pneg %p144
      %p151 = scmp.eq.s32.totalorder %s25, 2
      %p152 = por %p150, %p151
      %p153 = scmp.ne.s32.totalorder %s145, %s148
      %p154 = scmp.eq.s32.totalorder %s25, 0
      %p155 = por %p153, %p154
      %p156 = scmp.ne.s32.totalorder %s145, %s148
      %p157 = scmp.eq.s32.totalorder %s30, 2
      %p158 = por %p156, %p157
      %p159 = scmp.ne.s32.totalorder %s148, %s149
      %p160 = scmp.eq.s32.totalorder %s30, 0
      %p161 = por %p159, %p160
      %p162 = scmp.ne.s32.totalorder %s148, %s149
      %p163 = scmp.eq.s32.totalorder %s31, 2
      %p164 = por %p162, %p163
      %p166 = scmp.ne.s32.totalorder %s149, %s165
      %p167 = scmp.eq.s32.totalorder %s31, 0
      %p168 = por %p166, %p167
      %s169 = ssub.s32 %s25, %s32
      %p170 = scmp.eq.s32.totalorder %s169, 0
      %s172 = sadd.s32 %s171, 1
      %s173 = scalar_select %p170, %s171, %s172
      %p176 = pneg %p170
      %p177 = scmp.eq.s32.totalorder %s25, 2
      %p178 = por %p176, %p177
      %p179 = scmp.ne.s32.totalorder %s171, %s174
      %p180 = scmp.eq.s32.totalorder %s25, 0
      %p181 = por %p179, %p180
      %p182 = scmp.ne.s32.totalorder %s171, %s174
      %p183 = scmp.eq.s32.totalorder %s30, 2
      %p184 = por %p182, %p183
      %p185 = scmp.ne.s32.totalorder %s174, %s175
      %p186 = scmp.eq.s32.totalorder %s30, 0
      %p187 = por %p185, %p186
      %p188 = scmp.ne.s32.totalorder %s174, %s175
      %p189 = scmp.eq.s32.totalorder %s31, 2
      %p190 = por %p188, %p189
      %p192 = scmp.ne.s32.totalorder %s175, %s191
      %p193 = scmp.eq.s32.totalorder %s31, 0
      %p194 = por %p192, %p193
      %s196 = sadd.s32 %s195, 1
      %p199 = scmp.eq.s32.totalorder %s25, 2
      %p200 = scmp.ne.s32.totalorder %s195, %s197
      %p201 = scmp.eq.s32.totalorder %s25, 0
      %p202 = por %p200, %p201
      %p203 = scmp.ne.s32.totalorder %s195, %s197
      %p204 = scmp.eq.s32.totalorder %s30, 2
      %p205 = por %p203, %p204
      %p206 = scmp.ne.s32.totalorder %s197, %s198
      %p207 = scmp.eq.s32.totalorder %s30, 0
      %p208 = por %p206, %p207
      %p209 = scmp.ne.s32.totalorder %s197, %s198
      %p210 = scmp.eq.s32.totalorder %s31, 2
      %p211 = por %p209, %p210
      %p213 = scmp.ne.s32.totalorder %s198, %s212
      %p214 = scmp.eq.s32.totalorder %s31, 0
      %p215 = por %p213, %p214
      %s217 = sadd.s32 %s216, 1
      %p220 = scmp.eq.s32.totalorder %s25, 2
      %p221 = scmp.ne.s32.totalorder %s216, %s218
      %p222 = scmp.eq.s32.totalorder %s25, 0
      %p223 = por %p221, %p222
      %p224 = scmp.ne.s32.totalorder %s216, %s218
      %p225 = scmp.eq.s32.totalorder %s30, 2
      %p226 = por %p224, %p225
      %p227 = scmp.ne.s32.totalorder %s218, %s219
      %p228 = scmp.eq.s32.totalorder %s30, 0
      %p229 = por %p227, %p228
      %p230 = scmp.ne.s32.totalorder %s218, %s219
      %p231 = scmp.eq.s32.totalorder %s31, 2
      %p232 = por %p230, %p231
      %p234 = scmp.ne.s32.totalorder %s219, %s233
      %p235 = scmp.eq.s32.totalorder %s31, 0
      %p236 = por %p234, %p235
      %s238 = sadd.s32 %s237, 1
      %p241 = scmp.eq.s32.totalorder %s25, 2
      %p242 = scmp.ne.s32.totalorder %s237, %s239
      %p243 = scmp.eq.s32.totalorder %s25, 0
      %p244 = por %p242, %p243
      %p245 = scmp.ne.s32.totalorder %s237, %s239
      %p246 = scmp.eq.s32.totalorder %s30, 2
      %p247 = por %p245, %p246
      %p248 = scmp.ne.s32.totalorder %s239, %s240
      %p249 = scmp.eq.s32.totalorder %s30, 0
      %p250 = por %p248, %p249
      %p251 = scmp.ne.s32.totalorder %s239, %s240
      %p252 = scmp.eq.s32.totalorder %s31, 2
      %p253 = por %p251, %p252
      %p255 = scmp.ne.s32.totalorder %s240, %s254
      %p256 = scmp.eq.s32.totalorder %s31, 0
      %p257 = por %p255, %p256
      %p258 = scmp.le.s32.totalorder 1, %s25
      %p259 = scmp.lt.s32.totalorder %s25, 4
      %p260 = pnand %p258, %p259
      %p261 = pneg %p260
      // Predicated region
      $region9: #{forward.1} parent=5 // pred_check
        _
      $region10: #{forward.1} parent=5 // pred_check_branch
        %263 = sbr.rel (%p260) target = $region12
      $region11: #{forward.1} parent=5 // pred_region
        %s264 = ssub.s32 %s25, 1
        // Predicated region
        $region13: #{forward.1} parent=11 // pred_check
          %p265 = pneg %p46
        $region14: #{forward.1} parent=11 // pred_check_branch
          %267 = sbr.rel (%p265) target = $region16
        $region15: #{forward.1} parent=11 // pred_region
          _
        $region16: #{forward.1} parent=11 // pred_fallthru
          _
        // Predicated region
        $region17: #{forward.1} parent=11 // pred_check
          %p268 = pneg %p67
        $region18: #{forward.1} parent=11 // pred_check_branch
          %270 = sbr.rel (%p268) target = $region20
        $region19: #{forward.1} parent=11 // pred_region
          %s272 = ssub.s32 16384, 16384
          %273 = vsyncadd [#allocation4], %s272
          %s274 = sshll.u32 [#allocation3], 4
          %s275 = int_to_ptr.vmem [resolvable:$true] %s274
          %280 = dma.hbm_to_vmem [thread:$0]  %s1, 16384, %s275, [#allocation4], 512, 512, 32
        $region20: #{forward.1} parent=11 // pred_fallthru
          _
        // Predicated region
        $region21: #{forward.1} parent=11 // pred_check
          %p281 = pneg %p88
        $region22: #{forward.1} parent=11 // pred_check_branch
          %283 = sbr.rel (%p281) target = $region24
        $region23: #{forward.1} parent=11 // pred_region
          %s285 = ssub.s32 128, 128
          %286 = vsyncadd [#allocation7], %s285
          %s288 = sshll.u32 [#allocation6], 4
          %s289 = int_to_ptr.vmem [resolvable:$true] %s288
          %291 = dma.hbm_to_vmem [thread:$0]  %s2, 128, %s289, [#allocation7]
        $region24: #{forward.1} parent=11 // pred_fallthru
          _
        // Predicated region
        $region25: #{forward.1} parent=11 // pred_check
          %p292 = pneg %p109
        $region26: #{forward.1} parent=11 // pred_check_branch
          %294 = sbr.rel (%p292) target = $region28
        $region27: #{forward.1} parent=11 // pred_region
          %s296 = ssub.s32 128, 128
          %297 = vsyncadd [#allocation7], %s296
          %s299 = sshll.u32 [#allocation8], 4
          %s300 = int_to_ptr.vmem [resolvable:$true] %s299
          %302 = dma.hbm_to_vmem [thread:$0]  %s3, 128, %s300, [#allocation7]
        $region28: #{forward.1} parent=11 // pred_fallthru
          _
        // Predicated region
        $region29: #{forward.1} parent=11 // pred_check
          %p303 = pneg %p208
        $region30: #{forward.1} parent=11 // pred_check_branch
          %305 = sbr.rel (%p303) target = $region32
        $region31: #{forward.1} parent=11 // pred_region
          %s307 = ssub.s32 8192, 8192
          %308 = vsyncadd [#allocation13], %s307
          %s309 = sshll.u32 [#allocation14], 4
          %s310 = int_to_ptr.vmem [resolvable:$true] %s309
          %315 = dma.hbm_to_vmem [thread:$0]  %s7, 8192, %s310, [#allocation13], 64, 64, 4
        $region32: #{forward.1} parent=11 // pred_fallthru
          _
        // Predicated region
        $region33: #{forward.1} parent=11 // pred_check
          %p316 = pneg %p229
        $region34: #{forward.1} parent=11 // pred_check_branch
          %318 = sbr.rel (%p316) target = $region36
        $region35: #{forward.1} parent=11 // pred_region
          %s320 = ssub.s32 16, 16
          %321 = vsyncadd [#allocation16], %s320
          %s323 = sshll.u32 [#allocation15], 4
          %s324 = int_to_ptr.vmem [resolvable:$true] %s323
          %326 = dma.hbm_to_vmem [thread:$0]  %s8, 16, %s324, [#allocation16]
        $region36: #{forward.1} parent=11 // pred_fallthru
          _
      $region12: #{forward.1} parent=5 // pred_fallthru
        _
      %p327 = scmp.lt.s32.totalorder %s25, 3
      // Predicated region
      $region37: #{forward.1} parent=5 // pred_check
        %p328 = pneg %p327
      $region38: #{forward.1} parent=5 // pred_check_branch
        %330 = sbr.rel (%p328) target = $region40
      $region39: #{forward.1} parent=5 // pred_region
        // Predicated region
        $region41: #{forward.1} parent=39 // pred_check
          %p331 = pneg %p129
        $region42: #{forward.1} parent=39 // pred_check_branch
          %333 = sbr.rel (%p331) target = $region44
        $region43: #{forward.1} parent=39 // pred_region
          %s334 = sand.u32 %s25, 1
          %s335 = scalar_lea.sflag [#allocation10], %s334
          %s336 = sand.u32 %s119, 1
          %s337 = smul.addr %s336, 4096
          %s338 = scalar_lea.vmem [#allocation9], %s337
          %s340 = ssub.s32 65536, 65536
          %341 = vsyncadd %s335, %s340
          %s342 = smul.addr %s25, 1024
          %s343 = smul.addr %s342, 64
          %s344 = scalar_lea.hbm %s4, %s343
          %s345 = sshll.u32 %s338, 4
          %s346 = int_to_ptr.vmem [resolvable:$true] %s345
          %351 = dma.hbm_to_vmem [thread:$0]  %s344, 65536, %s346, %s335, 512, 512, 32
        $region44: #{forward.1} parent=39 // pred_fallthru
          _
        // Predicated region
        $region45: #{forward.1} parent=39 // pred_check
          %p352 = pneg %p155
        $region46: #{forward.1} parent=39 // pred_check_branch
          %354 = sbr.rel (%p352) target = $region48
        $region47: #{forward.1} parent=39 // pred_region
          %s355 = sand.u32 %s25, 1
          %s356 = scalar_lea.sflag [#allocation10], %s355
          %s357 = sand.u32 %s145, 1
          %s358 = smul.addr %s357, 8
          %s359 = scalar_lea.vmem [#allocation11], %s358
          %s361 = ssub.s32 128, 128
          %362 = vsyncadd %s356, %s361
          %s363 = smul.addr %s25, 8
          %s364 = smul.addr %s363, 16
          %s365 = scalar_lea.hbm %s5, %s364
          %s367 = sshll.u32 %s359, 4
          %s368 = int_to_ptr.vmem [resolvable:$true] %s367
          %370 = dma.hbm_to_vmem [thread:$0]  %s365, 128, %s368, %s356
        $region48: #{forward.1} parent=39 // pred_fallthru
          _
        // Predicated region
        $region49: #{forward.1} parent=39 // pred_check
          %p371 = pneg %p181
        $region50: #{forward.1} parent=39 // pred_check_branch
          %373 = sbr.rel (%p371) target = $region52
        $region51: #{forward.1} parent=39 // pred_region
          %s374 = sand.u32 %s25, 1
          %s375 = scalar_lea.sflag [#allocation13], %s374
          %s376 = sand.u32 %s171, 1
          %s377 = smul.addr %s376, 8
          %s378 = scalar_lea.vmem [#allocation12], %s377
          %s380 = ssub.s32 128, 128
          %381 = vsyncadd %s375, %s380
          %s382 = smul.addr %s25, 8
          %s383 = smul.addr %s382, 16
          %s384 = scalar_lea.hbm %s6, %s383
          %s386 = sshll.u32 %s378, 4
          %s387 = int_to_ptr.vmem [resolvable:$true] %s386
          %389 = dma.hbm_to_vmem [thread:$0]  %s384, 128, %s387, %s375
        $region52: #{forward.1} parent=39 // pred_fallthru
          _
      $region40: #{forward.1} parent=5 // pred_fallthru
        _
      %p390 = scmp.le.s32.totalorder 1, %s25
      %p391 = scmp.lt.s32.totalorder %s25, 4
      %p392 = pnand %p390, %p391
      %p393 = pneg %p392
      // Predicated region
      $region53: #{forward.1} parent=5 // pred_check
        _
      $region54: #{forward.1} parent=5 // pred_check_branch
        %395 = sbr.rel (%p392) target = $region56
      $region55: #{forward.1} parent=5 // pred_region
        %s396 = ssub.s32 %s25, 1
        // Predicated region
        $region57: #{forward.1} parent=55 // pred_check
          %p397 = pneg %p67
        $region58: #{forward.1} parent=55 // pred_check_branch
          %399 = sbr.rel (%p397) target = $region60
        $region59: #{forward.1} parent=55 // pred_region
          %400 = dma.done [#allocation4], 16384
        $region60: #{forward.1} parent=55 // pred_fallthru
          _
        // Predicated region
        $region61: #{forward.1} parent=55 // pred_check
          %p401 = pneg %p88
        $region62: #{forward.1} parent=55 // pred_check_branch
          %403 = sbr.rel (%p401) target = $region64
        $region63: #{forward.1} parent=55 // pred_region
          %404 = dma.done [#allocation7], 128
        $region64: #{forward.1} parent=55 // pred_fallthru
          _
        // Predicated region
        $region65: #{forward.1} parent=55 // pred_check
          %p405 = pneg %p109
        $region66: #{forward.1} parent=55 // pred_check_branch
          %407 = sbr.rel (%p405) target = $region68
        $region67: #{forward.1} parent=55 // pred_region
          %408 = dma.done [#allocation7], 128
        $region68: #{forward.1} parent=55 // pred_fallthru
          _
        %s409 = sand.u32 %s30, 1
        %s410 = scalar_lea.sflag [#allocation10], %s409
        %s411 = sand.u32 %s122, 1
        %s412 = smul.addr %s411, 4096
        %s413 = scalar_lea.vmem [#allocation9], %s412
        // Predicated region
        $region69: #{forward.1} parent=55 // pred_check
          %p414 = pneg %p135
        $region70: #{forward.1} parent=55 // pred_check_branch
          %416 = sbr.rel (%p414) target = $region72
        $region71: #{forward.1} parent=55 // pred_region
          %417 = dma.done %s410, 65536
        $region72: #{forward.1} parent=55 // pred_fallthru
          _
        %s418 = sand.u32 %s30, 1
        %s419 = scalar_lea.sflag [#allocation10], %s418
        %s420 = sand.u32 %s148, 1
        %s421 = smul.addr %s420, 8
        %s422 = scalar_lea.vmem [#allocation11], %s421
        // Predicated region
        $region73: #{forward.1} parent=55 // pred_check
          %p423 = pneg %p161
        $region74: #{forward.1} parent=55 // pred_check_branch
          %425 = sbr.rel (%p423) target = $region76
        $region75: #{forward.1} parent=55 // pred_region
          %426 = dma.done %s419, 128
        $region76: #{forward.1} parent=55 // pred_fallthru
          _
        %s427 = sand.u32 %s30, 1
        %s428 = scalar_lea.sflag [#allocation13], %s427
        %s429 = sand.u32 %s174, 1
        %s430 = smul.addr %s429, 8
        %s431 = scalar_lea.vmem [#allocation12], %s430
        // Predicated region
        $region77: #{forward.1} parent=55 // pred_check
          %p432 = pneg %p187
        $region78: #{forward.1} parent=55 // pred_check_branch
          %434 = sbr.rel (%p432) target = $region80
        $region79: #{forward.1} parent=55 // pred_region
          %435 = dma.done %s428, 128
        $region80: #{forward.1} parent=55 // pred_fallthru
          _
        // Predicated region
        $region81: #{forward.1} parent=55 // pred_check
          %p436 = pneg %p208
        $region82: #{forward.1} parent=55 // pred_check_branch
          %438 = sbr.rel (%p436) target = $region84
        $region83: #{forward.1} parent=55 // pred_region
          %439 = dma.done [#allocation13], 8192
        $region84: #{forward.1} parent=55 // pred_fallthru
          _
        // Predicated region
        $region85: #{forward.1} parent=55 // pred_check
          %p440 = pneg %p229
        $region86: #{forward.1} parent=55 // pred_check_branch
          %442 = sbr.rel (%p440) target = $region88
        $region87: #{forward.1} parent=55 // pred_region
          %443 = dma.done [#allocation16], 16
        $region88: #{forward.1} parent=55 // pred_fallthru
          _
        %p444 = pneg %p46
        %p445 = pneg %p43
        %p446 = pneg %p67
        %p447 = pneg %p64
        %p448 = pneg %p88
        %p449 = pneg %p85
        %p450 = pneg %p109
        %p451 = pneg %p106
        %s452 = sand.u32 %s30, 1
        %s453 = scalar_lea.sflag [#allocation10], %s452
        %s454 = sand.u32 %s122, 1
        %s455 = smul.addr %s454, 4096
        %s456 = scalar_lea.vmem [#allocation9], %s455
        %p457 = pneg %p135
        %p458 = pneg %p132
        %s459 = sand.u32 %s30, 1
        %s460 = scalar_lea.sflag [#allocation10], %s459
        %s461 = sand.u32 %s148, 1
        %s462 = smul.addr %s461, 8
        %s463 = scalar_lea.vmem [#allocation11], %s462
        %p464 = pneg %p161
        %p465 = pneg %p158
        %s466 = sand.u32 %s30, 1
        %s467 = scalar_lea.sflag [#allocation13], %s466
        %s468 = sand.u32 %s174, 1
        %s469 = smul.addr %s468, 8
        %s470 = scalar_lea.vmem [#allocation12], %s469
        %p471 = pneg %p187
        %p472 = pneg %p184
        %p473 = pneg %p208
        %p474 = pneg %p205
        %p475 = pneg %p229
        %p476 = pneg %p226
        %p477 = pneg %p250
        %p478 = pneg %p247
        %p480 = scmp.eq.s32.totalorder %s30, 0
        // Predicated region
        $region89: #{forward.1} parent=55 // pred_check
          %p481 = pneg %p480
        $region90: #{forward.1} parent=55 // pred_check_branch
          %483 = sbr.rel (%p481) target = $region92
        $region91: #{forward.1} parent=55 // pred_region
          %v484 = vld [vmem:[%s0] sm:$0xff]
          %v485 = vld [vmem:[#allocation3] sm:$0xff]
          %v486 = vld [vmem:[#allocation3 + $0x8] sm:$0xff]
          %v487 = vld [vmem:[#allocation3 + $0x10] sm:$0xff]
          %v488 = vld [vmem:[#allocation3 + $0x18] sm:$0xff]
          %v489 = vld [vmem:[#allocation3 + $0x20] sm:$0xff]
          %v490 = vld [vmem:[#allocation3 + $0x28] sm:$0xff]
          %v491 = vld [vmem:[#allocation3 + $0x30] sm:$0xff]
          %v492 = vld [vmem:[#allocation3 + $0x38] sm:$0xff]
          %v493 = vld [vmem:[#allocation3 + $0x40] sm:$0xff]
          %v494 = vld [vmem:[#allocation3 + $0x48] sm:$0xff]
          %v495 = vld [vmem:[#allocation3 + $0x50] sm:$0xff]
          %v496 = vld [vmem:[#allocation3 + $0x58] sm:$0xff]
          %v497 = vld [vmem:[#allocation3 + $0x60] sm:$0xff]
          %v498 = vld [vmem:[#allocation3 + $0x68] sm:$0xff]
          %v499 = vld [vmem:[#allocation3 + $0x70] sm:$0xff]
          %v500 = vld [vmem:[#allocation3 + $0x78] sm:$0xff]
          %v501 = vld [vmem:[#allocation3 + $0x80] sm:$0xff]
          %v502 = vld [vmem:[#allocation3 + $0x88] sm:$0xff]
          %v503 = vld [vmem:[#allocation3 + $0x90] sm:$0xff]
          %v504 = vld [vmem:[#allocation3 + $0x98] sm:$0xff]
          %v505 = vld [vmem:[#allocation3 + $0xa0] sm:$0xff]
          %v506 = vld [vmem:[#allocation3 + $0xa8] sm:$0xff]
          %v507 = vld [vmem:[#allocation3 + $0xb0] sm:$0xff]
          %v508 = vld [vmem:[#allocation3 + $0xb8] sm:$0xff]
          %v509 = vld [vmem:[#allocation3 + $0xc0] sm:$0xff]
          %v510 = vld [vmem:[#allocation3 + $0xc8] sm:$0xff]
          %v511 = vld [vmem:[#allocation3 + $0xd0] sm:$0xff]
          %v512 = vld [vmem:[#allocation3 + $0xd8] sm:$0xff]
          %v513 = vld [vmem:[#allocation3 + $0xe0] sm:$0xff]
          %v514 = vld [vmem:[#allocation3 + $0xe8] sm:$0xff]
          %v515 = vld [vmem:[#allocation3 + $0xf0] sm:$0xff]
          %v516 = vld [vmem:[#allocation3 + $0xf8] sm:$0xff]
          %v517 = vld [vmem:[#allocation3 + $0x100] sm:$0xff]
          %v518 = vld [vmem:[#allocation3 + $0x108] sm:$0xff]
          %v519 = vld [vmem:[#allocation3 + $0x110] sm:$0xff]
          %v520 = vld [vmem:[#allocation3 + $0x118] sm:$0xff]
          %v521 = vld [vmem:[#allocation3 + $0x120] sm:$0xff]
          %v522 = vld [vmem:[#allocation3 + $0x128] sm:$0xff]
          %v523 = vld [vmem:[#allocation3 + $0x130] sm:$0xff]
          %v524 = vld [vmem:[#allocation3 + $0x138] sm:$0xff]
          %v525 = vld [vmem:[#allocation3 + $0x140] sm:$0xff]
          %v526 = vld [vmem:[#allocation3 + $0x148] sm:$0xff]
          %v527 = vld [vmem:[#allocation3 + $0x150] sm:$0xff]
          %v528 = vld [vmem:[#allocation3 + $0x158] sm:$0xff]
          %v529 = vld [vmem:[#allocation3 + $0x160] sm:$0xff]
          %v530 = vld [vmem:[#allocation3 + $0x168] sm:$0xff]
          %v531 = vld [vmem:[#allocation3 + $0x170] sm:$0xff]
          %v532 = vld [vmem:[#allocation3 + $0x178] sm:$0xff]
          %v533 = vld [vmem:[#allocation3 + $0x180] sm:$0xff]
          %v534 = vld [vmem:[#allocation3 + $0x188] sm:$0xff]
          %v535 = vld [vmem:[#allocation3 + $0x190] sm:$0xff]
          %v536 = vld [vmem:[#allocation3 + $0x198] sm:$0xff]
          %v537 = vld [vmem:[#allocation3 + $0x1a0] sm:$0xff]
          %v538 = vld [vmem:[#allocation3 + $0x1a8] sm:$0xff]
          %v539 = vld [vmem:[#allocation3 + $0x1b0] sm:$0xff]
          %v540 = vld [vmem:[#allocation3 + $0x1b8] sm:$0xff]
          %v541 = vld [vmem:[#allocation3 + $0x1c0] sm:$0xff]
          %v542 = vld [vmem:[#allocation3 + $0x1c8] sm:$0xff]
          %v543 = vld [vmem:[#allocation3 + $0x1d0] sm:$0xff]
          %v544 = vld [vmem:[#allocation3 + $0x1d8] sm:$0xff]
          %v545 = vld [vmem:[#allocation3 + $0x1e0] sm:$0xff]
          %v546 = vld [vmem:[#allocation3 + $0x1e8] sm:$0xff]
          %v547 = vld [vmem:[#allocation3 + $0x1f0] sm:$0xff]
          %v548 = vld [vmem:[#allocation3 + $0x1f8] sm:$0xff]
          %v549 = vld [vmem:[#allocation3 + $0x200] sm:$0xff]
          %v550 = vld [vmem:[#allocation3 + $0x208] sm:$0xff]
          %v551 = vld [vmem:[#allocation3 + $0x210] sm:$0xff]
          %v552 = vld [vmem:[#allocation3 + $0x218] sm:$0xff]
          %v553 = vld [vmem:[#allocation3 + $0x220] sm:$0xff]
          %v554 = vld [vmem:[#allocation3 + $0x228] sm:$0xff]
          %v555 = vld [vmem:[#allocation3 + $0x230] sm:$0xff]
          %v556 = vld [vmem:[#allocation3 + $0x238] sm:$0xff]
          %v557 = vld [vmem:[#allocation3 + $0x240] sm:$0xff]
          %v558 = vld [vmem:[#allocation3 + $0x248] sm:$0xff]
          %v559 = vld [vmem:[#allocation3 + $0x250] sm:$0xff]
          %v560 = vld [vmem:[#allocation3 + $0x258] sm:$0xff]
          %v561 = vld [vmem:[#allocation3 + $0x260] sm:$0xff]
          %v562 = vld [vmem:[#allocation3 + $0x268] sm:$0xff]
          %v563 = vld [vmem:[#allocation3 + $0x270] sm:$0xff]
          %v564 = vld [vmem:[#allocation3 + $0x278] sm:$0xff]
          %v565 = vld [vmem:[#allocation3 + $0x280] sm:$0xff]
          %v566 = vld [vmem:[#allocation3 + $0x288] sm:$0xff]
          %v567 = vld [vmem:[#allocation3 + $0x290] sm:$0xff]
          %v568 = vld [vmem:[#allocation3 + $0x298] sm:$0xff]
          %v569 = vld [vmem:[#allocation3 + $0x2a0] sm:$0xff]
          %v570 = vld [vmem:[#allocation3 + $0x2a8] sm:$0xff]
          %v571 = vld [vmem:[#allocation3 + $0x2b0] sm:$0xff]
          %v572 = vld [vmem:[#allocation3 + $0x2b8] sm:$0xff]
          %v573 = vld [vmem:[#allocation3 + $0x2c0] sm:$0xff]
          %v574 = vld [vmem:[#allocation3 + $0x2c8] sm:$0xff]
          %v575 = vld [vmem:[#allocation3 + $0x2d0] sm:$0xff]
          %v576 = vld [vmem:[#allocation3 + $0x2d8] sm:$0xff]
          %v577 = vld [vmem:[#allocation3 + $0x2e0] sm:$0xff]
          %v578 = vld [vmem:[#allocation3 + $0x2e8] sm:$0xff]
          %v579 = vld [vmem:[#allocation3 + $0x2f0] sm:$0xff]
          %v580 = vld [vmem:[#allocation3 + $0x2f8] sm:$0xff]
          %v581 = vld [vmem:[#allocation3 + $0x300] sm:$0xff]
          %v582 = vld [vmem:[#allocation3 + $0x308] sm:$0xff]
          %v583 = vld [vmem:[#allocation3 + $0x310] sm:$0xff]
          %v584 = vld [vmem:[#allocation3 + $0x318] sm:$0xff]
          %v585 = vld [vmem:[#allocation3 + $0x320] sm:$0xff]
          %v586 = vld [vmem:[#allocation3 + $0x328] sm:$0xff]
          %v587 = vld [vmem:[#allocation3 + $0x330] sm:$0xff]
          %v588 = vld [vmem:[#allocation3 + $0x338] sm:$0xff]
          %v589 = vld [vmem:[#allocation3 + $0x340] sm:$0xff]
          %v590 = vld [vmem:[#allocation3 + $0x348] sm:$0xff]
          %v591 = vld [vmem:[#allocation3 + $0x350] sm:$0xff]
          %v592 = vld [vmem:[#allocation3 + $0x358] sm:$0xff]
          %v593 = vld [vmem:[#allocation3 + $0x360] sm:$0xff]
          %v594 = vld [vmem:[#allocation3 + $0x368] sm:$0xff]
          %v595 = vld [vmem:[#allocation3 + $0x370] sm:$0xff]
          %v596 = vld [vmem:[#allocation3 + $0x378] sm:$0xff]
          %v597 = vld [vmem:[#allocation3 + $0x380] sm:$0xff]
          %v598 = vld [vmem:[#allocation3 + $0x388] sm:$0xff]
          %v599 = vld [vmem:[#allocation3 + $0x390] sm:$0xff]
          %v600 = vld [vmem:[#allocation3 + $0x398] sm:$0xff]
          %v601 = vld [vmem:[#allocation3 + $0x3a0] sm:$0xff]
          %v602 = vld [vmem:[#allocation3 + $0x3a8] sm:$0xff]
          %v603 = vld [vmem:[#allocation3 + $0x3b0] sm:$0xff]
          %v604 = vld [vmem:[#allocation3 + $0x3b8] sm:$0xff]
          %v605 = vld [vmem:[#allocation3 + $0x3c0] sm:$0xff]
          %v606 = vld [vmem:[#allocation3 + $0x3c8] sm:$0xff]
          %v607 = vld [vmem:[#allocation3 + $0x3d0] sm:$0xff]
          %v608 = vld [vmem:[#allocation3 + $0x3d8] sm:$0xff]
          %v609 = vld [vmem:[#allocation3 + $0x3e0] sm:$0xff]
          %v610 = vld [vmem:[#allocation3 + $0x3e8] sm:$0xff]
          %v611 = vld [vmem:[#allocation3 + $0x3f0] sm:$0xff]
          %v612 = vld [vmem:[#allocation3 + $0x3f8] sm:$0xff]
          %v614 = vunpack.c.l.b16 %v484
          %v615 = vunpack.c.h.b16 %v484
          %v616 = vpack.c.b16 %v614, %v614
          %v617 = vpack.c.b16 %v615, %v615
          %v748 = vunpack.c.l.b16 %v485
          %v749 = vunpack.c.h.b16 %v485
          %v750 = vunpack.c.l.b16 %v486
          %v751 = vunpack.c.h.b16 %v486
          %v752 = vunpack.c.l.b16 %v487
          %v753 = vunpack.c.h.b16 %v487
          %v754 = vunpack.c.l.b16 %v488
          %v755 = vunpack.c.h.b16 %v488
          %v756 = vunpack.c.l.b16 %v489
          %v757 = vunpack.c.h.b16 %v489
          %v758 = vunpack.c.l.b16 %v490
          %v759 = vunpack.c.h.b16 %v490
          %v760 = vunpack.c.l.b16 %v491
          %v761 = vunpack.c.h.b16 %v491
          %v762 = vunpack.c.l.b16 %v492
          %v763 = vunpack.c.h.b16 %v492
          %v764 = vunpack.c.l.b16 %v493
          %v765 = vunpack.c.h.b16 %v493
          %v766 = vunpack.c.l.b16 %v494
          %v767 = vunpack.c.h.b16 %v494
          %v768 = vunpack.c.l.b16 %v495
          %v769 = vunpack.c.h.b16 %v495
          %v770 = vunpack.c.l.b16 %v496
          %v771 = vunpack.c.h.b16 %v496
          %v772 = vunpack.c.l.b16 %v497
          %v773 = vunpack.c.h.b16 %v497
          %v774 = vunpack.c.l.b16 %v498
          %v775 = vunpack.c.h.b16 %v498
          %v776 = vunpack.c.l.b16 %v499
          %v777 = vunpack.c.h.b16 %v499
          %v778 = vunpack.c.l.b16 %v500
          %v779 = vunpack.c.h.b16 %v500
          %v780 = vunpack.c.l.b16 %v501
          %v781 = vunpack.c.h.b16 %v501
          %v782 = vunpack.c.l.b16 %v502
          %v783 = vunpack.c.h.b16 %v502
          %v784 = vunpack.c.l.b16 %v503
          %v785 = vunpack.c.h.b16 %v503
          %v786 = vunpack.c.l.b16 %v504
          %v787 = vunpack.c.h.b16 %v504
          %v788 = vunpack.c.l.b16 %v505
          %v789 = vunpack.c.h.b16 %v505
          %v790 = vunpack.c.l.b16 %v506
          %v791 = vunpack.c.h.b16 %v506
          %v792 = vunpack.c.l.b16 %v507
          %v793 = vunpack.c.h.b16 %v507
          %v794 = vunpack.c.l.b16 %v508
          %v795 = vunpack.c.h.b16 %v508
          %v796 = vunpack.c.l.b16 %v509
          %v797 = vunpack.c.h.b16 %v509
          %v798 = vunpack.c.l.b16 %v510
          %v799 = vunpack.c.h.b16 %v510
          %v800 = vunpack.c.l.b16 %v511
          %v801 = vunpack.c.h.b16 %v511
          %v802 = vunpack.c.l.b16 %v512
          %v803 = vunpack.c.h.b16 %v512
          %v804 = vunpack.c.l.b16 %v513
          %v805 = vunpack.c.h.b16 %v513
          %v806 = vunpack.c.l.b16 %v514
          %v807 = vunpack.c.h.b16 %v514
          %v808 = vunpack.c.l.b16 %v515
          %v809 = vunpack.c.h.b16 %v515
          %v810 = vunpack.c.l.b16 %v516
          %v811 = vunpack.c.h.b16 %v516
          %v812 = vunpack.c.l.b16 %v517
          %v813 = vunpack.c.h.b16 %v517
          %v814 = vunpack.c.l.b16 %v518
          %v815 = vunpack.c.h.b16 %v518
          %v816 = vunpack.c.l.b16 %v519
          %v817 = vunpack.c.h.b16 %v519
          %v818 = vunpack.c.l.b16 %v520
          %v819 = vunpack.c.h.b16 %v520
          %v820 = vunpack.c.l.b16 %v521
          %v821 = vunpack.c.h.b16 %v521
          %v822 = vunpack.c.l.b16 %v522
          %v823 = vunpack.c.h.b16 %v522
          %v824 = vunpack.c.l.b16 %v523
          %v825 = vunpack.c.h.b16 %v523
          %v826 = vunpack.c.l.b16 %v524
          %v827 = vunpack.c.h.b16 %v524
          %v828 = vunpack.c.l.b16 %v525
          %v829 = vunpack.c.h.b16 %v525
          %v830 = vunpack.c.l.b16 %v526
          %v831 = vunpack.c.h.b16 %v526
          %v832 = vunpack.c.l.b16 %v527
          %v833 = vunpack.c.h.b16 %v527
          %v834 = vunpack.c.l.b16 %v528
          %v835 = vunpack.c.h.b16 %v528
          %v836 = vunpack.c.l.b16 %v529
          %v837 = vunpack.c.h.b16 %v529
          %v838 = vunpack.c.l.b16 %v530
          %v839 = vunpack.c.h.b16 %v530
          %v840 = vunpack.c.l.b16 %v531
          %v841 = vunpack.c.h.b16 %v531
          %v842 = vunpack.c.l.b16 %v532
          %v843 = vunpack.c.h.b16 %v532
          %v844 = vunpack.c.l.b16 %v533
          %v845 = vunpack.c.h.b16 %v533
          %v846 = vunpack.c.l.b16 %v534
          %v847 = vunpack.c.h.b16 %v534
          %v848 = vunpack.c.l.b16 %v535
          %v849 = vunpack.c.h.b16 %v535
          %v850 = vunpack.c.l.b16 %v536
          %v851 = vunpack.c.h.b16 %v536
          %v852 = vunpack.c.l.b16 %v537
          %v853 = vunpack.c.h.b16 %v537
          %v854 = vunpack.c.l.b16 %v538
          %v855 = vunpack.c.h.b16 %v538
          %v856 = vunpack.c.l.b16 %v539
          %v857 = vunpack.c.h.b16 %v539
          %v858 = vunpack.c.l.b16 %v540
          %v859 = vunpack.c.h.b16 %v540
          %v860 = vunpack.c.l.b16 %v541
          %v861 = vunpack.c.h.b16 %v541
          %v862 = vunpack.c.l.b16 %v542
          %v863 = vunpack.c.h.b16 %v542
          %v864 = vunpack.c.l.b16 %v543
          %v865 = vunpack.c.h.b16 %v543
          %v866 = vunpack.c.l.b16 %v544
          %v867 = vunpack.c.h.b16 %v544
          %v868 = vunpack.c.l.b16 %v545
          %v869 = vunpack.c.h.b16 %v545
          %v870 = vunpack.c.l.b16 %v546
          %v871 = vunpack.c.h.b16 %v546
          %v872 = vunpack.c.l.b16 %v547
          %v873 = vunpack.c.h.b16 %v547
          %v874 = vunpack.c.l.b16 %v548
          %v875 = vunpack.c.h.b16 %v548
          %v876 = vunpack.c.l.b16 %v549
          %v877 = vunpack.c.h.b16 %v549
          %v878 = vunpack.c.l.b16 %v550
          %v879 = vunpack.c.h.b16 %v550
          %v880 = vunpack.c.l.b16 %v551
          %v881 = vunpack.c.h.b16 %v551
          %v882 = vunpack.c.l.b16 %v552
          %v883 = vunpack.c.h.b16 %v552
          %v884 = vunpack.c.l.b16 %v553
          %v885 = vunpack.c.h.b16 %v553
          %v886 = vunpack.c.l.b16 %v554
          %v887 = vunpack.c.h.b16 %v554
          %v888 = vunpack.c.l.b16 %v555
          %v889 = vunpack.c.h.b16 %v555
          %v890 = vunpack.c.l.b16 %v556
          %v891 = vunpack.c.h.b16 %v556
          %v892 = vunpack.c.l.b16 %v557
          %v893 = vunpack.c.h.b16 %v557
          %v894 = vunpack.c.l.b16 %v558
          %v895 = vunpack.c.h.b16 %v558
          %v896 = vunpack.c.l.b16 %v559
          %v897 = vunpack.c.h.b16 %v559
          %v898 = vunpack.c.l.b16 %v560
          %v899 = vunpack.c.h.b16 %v560
          %v900 = vunpack.c.l.b16 %v561
          %v901 = vunpack.c.h.b16 %v561
          %v902 = vunpack.c.l.b16 %v562
          %v903 = vunpack.c.h.b16 %v562
          %v904 = vunpack.c.l.b16 %v563
          %v905 = vunpack.c.h.b16 %v563
          %v906 = vunpack.c.l.b16 %v564
          %v907 = vunpack.c.h.b16 %v564
          %v908 = vunpack.c.l.b16 %v565
          %v909 = vunpack.c.h.b16 %v565
          %v910 = vunpack.c.l.b16 %v566
          %v911 = vunpack.c.h.b16 %v566
          %v912 = vunpack.c.l.b16 %v567
          %v913 = vunpack.c.h.b16 %v567
          %v914 = vunpack.c.l.b16 %v568
          %v915 = vunpack.c.h.b16 %v568
          %v916 = vunpack.c.l.b16 %v569
          %v917 = vunpack.c.h.b16 %v569
          %v918 = vunpack.c.l.b16 %v570
          %v919 = vunpack.c.h.b16 %v570
          %v920 = vunpack.c.l.b16 %v571
          %v921 = vunpack.c.h.b16 %v571
          %v922 = vunpack.c.l.b16 %v572
          %v923 = vunpack.c.h.b16 %v572
          %v924 = vunpack.c.l.b16 %v573
          %v925 = vunpack.c.h.b16 %v573
          %v926 = vunpack.c.l.b16 %v574
          %v927 = vunpack.c.h.b16 %v574
          %v928 = vunpack.c.l.b16 %v575
          %v929 = vunpack.c.h.b16 %v575
          %v930 = vunpack.c.l.b16 %v576
          %v931 = vunpack.c.h.b16 %v576
          %v932 = vunpack.c.l.b16 %v577
          %v933 = vunpack.c.h.b16 %v577
          %v934 = vunpack.c.l.b16 %v578
          %v935 = vunpack.c.h.b16 %v578
          %v936 = vunpack.c.l.b16 %v579
          %v937 = vunpack.c.h.b16 %v579
          %v938 = vunpack.c.l.b16 %v580
          %v939 = vunpack.c.h.b16 %v580
          %v940 = vunpack.c.l.b16 %v581
          %v941 = vunpack.c.h.b16 %v581
          %v942 = vunpack.c.l.b16 %v582
          %v943 = vunpack.c.h.b16 %v582
          %v944 = vunpack.c.l.b16 %v583
          %v945 = vunpack.c.h.b16 %v583
          %v946 = vunpack.c.l.b16 %v584
          %v947 = vunpack.c.h.b16 %v584
          %v948 = vunpack.c.l.b16 %v585
          %v949 = vunpack.c.h.b16 %v585
          %v950 = vunpack.c.l.b16 %v586
          %v951 = vunpack.c.h.b16 %v586
          %v952 = vunpack.c.l.b16 %v587
          %v953 = vunpack.c.h.b16 %v587
          %v954 = vunpack.c.l.b16 %v588
          %v955 = vunpack.c.h.b16 %v588
          %v956 = vunpack.c.l.b16 %v589
          %v957 = vunpack.c.h.b16 %v589
          %v958 = vunpack.c.l.b16 %v590
          %v959 = vunpack.c.h.b16 %v590
          %v960 = vunpack.c.l.b16 %v591
          %v961 = vunpack.c.h.b16 %v591
          %v962 = vunpack.c.l.b16 %v592
          %v963 = vunpack.c.h.b16 %v592
          %v964 = vunpack.c.l.b16 %v593
          %v965 = vunpack.c.h.b16 %v593
          %v966 = vunpack.c.l.b16 %v594
          %v967 = vunpack.c.h.b16 %v594
          %v968 = vunpack.c.l.b16 %v595
          %v969 = vunpack.c.h.b16 %v595
          %v970 = vunpack.c.l.b16 %v596
          %v971 = vunpack.c.h.b16 %v596
          %v972 = vunpack.c.l.b16 %v597
          %v973 = vunpack.c.h.b16 %v597
          %v974 = vunpack.c.l.b16 %v598
          %v975 = vunpack.c.h.b16 %v598
          %v976 = vunpack.c.l.b16 %v599
          %v977 = vunpack.c.h.b16 %v599
          %v978 = vunpack.c.l.b16 %v600
          %v979 = vunpack.c.h.b16 %v600
          %v980 = vunpack.c.l.b16 %v601
          %v981 = vunpack.c.h.b16 %v601
          %v982 = vunpack.c.l.b16 %v602
          %v983 = vunpack.c.h.b16 %v602
          %v984 = vunpack.c.l.b16 %v603
          %v985 = vunpack.c.h.b16 %v603
          %v986 = vunpack.c.l.b16 %v604
          %v987 = vunpack.c.h.b16 %v604
          %v988 = vunpack.c.l.b16 %v605
          %v989 = vunpack.c.h.b16 %v605
          %v990 = vunpack.c.l.b16 %v606
          %v991 = vunpack.c.h.b16 %v606
          %v992 = vunpack.c.l.b16 %v607
          %v993 = vunpack.c.h.b16 %v607
          %v994 = vunpack.c.l.b16 %v608
          %v995 = vunpack.c.h.b16 %v608
          %v996 = vunpack.c.l.b16 %v609
          %v997 = vunpack.c.h.b16 %v609
          %v998 = vunpack.c.l.b16 %v610
          %v999 = vunpack.c.h.b16 %v610
          %v1000 = vunpack.c.l.b16 %v611
          %v1001 = vunpack.c.h.b16 %v611
          %v1002 = vunpack.c.l.b16 %v612
          %v1003 = vunpack.c.h.b16 %v612
          %v1004 = vpack.c.b16 %v756, %v748
          %v1005 = vpack.c.b16 %v757, %v749
          %v1006 = vpack.c.b16 %v758, %v750
          %v1007 = vpack.c.b16 %v759, %v751
          %v1008 = vpack.c.b16 %v760, %v752
          %v1009 = vpack.c.b16 %v761, %v753
          %v1010 = vpack.c.b16 %v762, %v754
          %v1011 = vpack.c.b16 %v763, %v755
          %v1012 = vpack.c.b16 %v772, %v764
          %v1013 = vpack.c.b16 %v773, %v765
          %v1014 = vpack.c.b16 %v774, %v766
          %v1015 = vpack.c.b16 %v775, %v767
          %v1016 = vpack.c.b16 %v776, %v768
          %v1017 = vpack.c.b16 %v777, %v769
          %v1018 = vpack.c.b16 %v778, %v770
          %v1019 = vpack.c.b16 %v779, %v771
          %v1020 = vpack.c.b16 %v788, %v780
          %v1021 = vpack.c.b16 %v789, %v781
          %v1022 = vpack.c.b16 %v790, %v782
          %v1023 = vpack.c.b16 %v791, %v783
          %v1024 = vpack.c.b16 %v792, %v784
          %v1025 = vpack.c.b16 %v793, %v785
          %v1026 = vpack.c.b16 %v794, %v786
          %v1027 = vpack.c.b16 %v795, %v787
          %v1028 = vpack.c.b16 %v804, %v796
          %v1029 = vpack.c.b16 %v805, %v797
          %v1030 = vpack.c.b16 %v806, %v798
          %v1031 = vpack.c.b16 %v807, %v799
          %v1032 = vpack.c.b16 %v808, %v800
          %v1033 = vpack.c.b16 %v809, %v801
          %v1034 = vpack.c.b16 %v810, %v802
          %v1035 = vpack.c.b16 %v811, %v803
          %v1036 = vpack.c.b16 %v820, %v812
          %v1037 = vpack.c.b16 %v821, %v813
          %v1038 = vpack.c.b16 %v822, %v814
          %v1039 = vpack.c.b16 %v823, %v815
          %v1040 = vpack.c.b16 %v824, %v816
          %v1041 = vpack.c.b16 %v825, %v817
          %v1042 = vpack.c.b16 %v826, %v818
          %v1043 = vpack.c.b16 %v827, %v819
          %v1044 = vpack.c.b16 %v836, %v828
          %v1045 = vpack.c.b16 %v837, %v829
          %v1046 = vpack.c.b16 %v838, %v830
          %v1047 = vpack.c.b16 %v839, %v831
          %v1048 = vpack.c.b16 %v840, %v832
          %v1049 = vpack.c.b16 %v841, %v833
          %v1050 = vpack.c.b16 %v842, %v834
          %v1051 = vpack.c.b16 %v843, %v835
          %v1052 = vpack.c.b16 %v852, %v844
          %v1053 = vpack.c.b16 %v853, %v845
          %v1054 = vpack.c.b16 %v854, %v846
          %v1055 = vpack.c.b16 %v855, %v847
          %v1056 = vpack.c.b16 %v856, %v848
          %v1057 = vpack.c.b16 %v857, %v849
          %v1058 = vpack.c.b16 %v858, %v850
          %v1059 = vpack.c.b16 %v859, %v851
          %v1060 = vpack.c.b16 %v868, %v860
          %v1061 = vpack.c.b16 %v869, %v861
          %v1062 = vpack.c.b16 %v870, %v862
          %v1063 = vpack.c.b16 %v871, %v863
          %v1064 = vpack.c.b16 %v872, %v864
          %v1065 = vpack.c.b16 %v873, %v865
          %v1066 = vpack.c.b16 %v874, %v866
          %v1067 = vpack.c.b16 %v875, %v867
          %v1068 = vpack.c.b16 %v884, %v876
          %v1069 = vpack.c.b16 %v885, %v877
          %v1070 = vpack.c.b16 %v886, %v878
          %v1071 = vpack.c.b16 %v887, %v879
          %v1072 = vpack.c.b16 %v888, %v880
          %v1073 = vpack.c.b16 %v889, %v881
          %v1074 = vpack.c.b16 %v890, %v882
          %v1075 = vpack.c.b16 %v891, %v883
          %v1076 = vpack.c.b16 %v900, %v892
          %v1077 = vpack.c.b16 %v901, %v893
          %v1078 = vpack.c.b16 %v902, %v894
          %v1079 = vpack.c.b16 %v903, %v895
          %v1080 = vpack.c.b16 %v904, %v896
          %v1081 = vpack.c.b16 %v905, %v897
          %v1082 = vpack.c.b16 %v906, %v898
          %v1083 = vpack.c.b16 %v907, %v899
          %v1084 = vpack.c.b16 %v916, %v908
          %v1085 = vpack.c.b16 %v917, %v909
          %v1086 = vpack.c.b16 %v918, %v910
          %v1087 = vpack.c.b16 %v919, %v911
          %v1088 = vpack.c.b16 %v920, %v912
          %v1089 = vpack.c.b16 %v921, %v913
          %v1090 = vpack.c.b16 %v922, %v914
          %v1091 = vpack.c.b16 %v923, %v915
          %v1092 = vpack.c.b16 %v932, %v924
          %v1093 = vpack.c.b16 %v933, %v925
          %v1094 = vpack.c.b16 %v934, %v926
          %v1095 = vpack.c.b16 %v935, %v927
          %v1096 = vpack.c.b16 %v936, %v928
          %v1097 = vpack.c.b16 %v937, %v929
          %v1098 = vpack.c.b16 %v938, %v930
          %v1099 = vpack.c.b16 %v939, %v931
          %v1100 = vpack.c.b16 %v948, %v940
          %v1101 = vpack.c.b16 %v949, %v941
          %v1102 = vpack.c.b16 %v950, %v942
          %v1103 = vpack.c.b16 %v951, %v943
          %v1104 = vpack.c.b16 %v952, %v944
          %v1105 = vpack.c.b16 %v953, %v945
          %v1106 = vpack.c.b16 %v954, %v946
          %v1107 = vpack.c.b16 %v955, %v947
          %v1108 = vpack.c.b16 %v964, %v956
          %v1109 = vpack.c.b16 %v965, %v957
          %v1110 = vpack.c.b16 %v966, %v958
          %v1111 = vpack.c.b16 %v967, %v959
          %v1112 = vpack.c.b16 %v968, %v960
          %v1113 = vpack.c.b16 %v969, %v961
          %v1114 = vpack.c.b16 %v970, %v962
          %v1115 = vpack.c.b16 %v971, %v963
          %v1116 = vpack.c.b16 %v980, %v972
          %v1117 = vpack.c.b16 %v981, %v973
          %v1118 = vpack.c.b16 %v982, %v974
          %v1119 = vpack.c.b16 %v983, %v975
          %v1120 = vpack.c.b16 %v984, %v976
          %v1121 = vpack.c.b16 %v985, %v977
          %v1122 = vpack.c.b16 %v986, %v978
          %v1123 = vpack.c.b16 %v987, %v979
          %v1124 = vpack.c.b16 %v996, %v988
          %v1125 = vpack.c.b16 %v997, %v989
          %v1126 = vpack.c.b16 %v998, %v990
          %v1127 = vpack.c.b16 %v999, %v991
          %v1128 = vpack.c.b16 %v1000, %v992
          %v1129 = vpack.c.b16 %v1001, %v993
          %v1130 = vpack.c.b16 %v1002, %v994
          %v1131 = vpack.c.b16 %v1003, %v995
          %1260 = vmatprep.subr.bf16.mxu0 %v1005
          %1261 = vmatpush1.bf16.msra.mxu0 %v1004
          %1262 = vmatprep.subr.bf16.mxu0 %v1013
          %1263 = vmatpush1.bf16.msra.mxu0 %v1012
          %1264 = vmatprep.subr.bf16.mxu0 %v1021
          %1265 = vmatpush1.bf16.msra.mxu0 %v1020
          %1266 = vmatprep.subr.bf16.mxu0 %v1029
          %1267 = vmatpush1.bf16.msra.mxu0 %v1028
          %1268 = vmatprep.subr.bf16.mxu0 %v1037
          %1269 = vmatpush1.bf16.msra.mxu0 %v1036
          %1270 = vmatprep.subr.bf16.mxu0 %v1045
          %1271 = vmatpush1.bf16.msra.mxu0 %v1044
          %1272 = vmatprep.subr.bf16.mxu0 %v1053
          %1273 = vmatpush1.bf16.msra.mxu0 %v1052
          %1274 = vmatprep.subr.bf16.mxu0 %v1061
          %1275 = vmatpush1.bf16.msra.mxu0 %v1060
          %1276 = vmatprep.subr.bf16.mxu0 %v1069
          %1277 = vmatpush1.bf16.msra.mxu0 %v1068
          %1278 = vmatprep.subr.bf16.mxu0 %v1077
          %1279 = vmatpush1.bf16.msra.mxu0 %v1076
          %1280 = vmatprep.subr.bf16.mxu0 %v1085
          %1281 = vmatpush1.bf16.msra.mxu0 %v1084
          %1282 = vmatprep.subr.bf16.mxu0 %v1093
          %1283 = vmatpush1.bf16.msra.mxu0 %v1092
          %1284 = vmatprep.subr.bf16.mxu0 %v1101
          %1285 = vmatpush1.bf16.msra.mxu0 %v1100
          %1286 = vmatprep.subr.bf16.mxu0 %v1109
          %1287 = vmatpush1.bf16.msra.mxu0 %v1108
          %1288 = vmatprep.subr.bf16.mxu0 %v1117
          %1289 = vmatpush1.bf16.msra.mxu0 %v1116
          %1290 = vmatprep.subr.bf16.mxu0 %v1125
          %1291 = vmatpush1.bf16.msra.mxu0 %v1124
          %1292 = vmatprep.mubr.bf16.mxu0 %v617
          %1293 = vmatmul.mubr.bf16.gmra.mrb[0].mxu0 %v616
          %v1294 = vpop.f32.mrb[0].mxu0
          %v1295 = vadd.f32 0.0, %v1294
          %v1296 = vpop.f32.mrb[0].mxu0
          %v1297 = vadd.f32 0.0, %v1296
          %v1298 = vpop.f32.mrb[0].mxu0
          %v1299 = vpop.f32.mrb[0].mxu0
          %1300 = vdwg.mxu0
          %1301 = vmatprep.subr.bf16.mxu0 %v1007
          %1302 = vmatpush1.bf16.msra.mxu0 %v1006
          %1303 = vmatprep.subr.bf16.mxu0 %v1015
          %1304 = vmatpush1.bf16.msra.mxu0 %v1014
          %1305 = vmatprep.subr.bf16.mxu0 %v1023
          %1306 = vmatpush1.bf16.msra.mxu0 %v1022
          %1307 = vmatprep.subr.bf16.mxu0 %v1031
          %1308 = vmatpush1.bf16.msra.mxu0 %v1030
          %1309 = vmatprep.subr.bf16.mxu0 %v1039
          %1310 = vmatpush1.bf16.msra.mxu0 %v1038
          %1311 = vmatprep.subr.bf16.mxu0 %v1047
          %1312 = vmatpush1.bf16.msra.mxu0 %v1046
          %1313 = vmatprep.subr.bf16.mxu0 %v1055
          %1314 = vmatpush1.bf16.msra.mxu0 %v1054
          %1315 = vmatprep.subr.bf16.mxu0 %v1063
          %1316 = vmatpush1.bf16.msra.mxu0 %v1062
          %1317 = vmatprep.subr.bf16.mxu0 %v1071
          %1318 = vmatpush1.bf16.msra.mxu0 %v1070
          %1319 = vmatprep.subr.bf16.mxu0 %v1079
          %1320 = vmatpush1.bf16.msra.mxu0 %v1078
          %1321 = vmatprep.subr.bf16.mxu0 %v1087
          %1322 = vmatpush1.bf16.msra.mxu0 %v1086
          %1323 = vmatprep.subr.bf16.mxu0 %v1095
          %1324 = vmatpush1.bf16.msra.mxu0 %v1094
          %1325 = vmatprep.subr.bf16.mxu0 %v1103
          %1326 = vmatpush1.bf16.msra.mxu0 %v1102
          %1327 = vmatprep.subr.bf16.mxu0 %v1111
          %1328 = vmatpush1.bf16.msra.mxu0 %v1110
          %1329 = vmatprep.subr.bf16.mxu0 %v1119
          %1330 = vmatpush1.bf16.msra.mxu0 %v1118
          %1331 = vmatprep.subr.bf16.mxu0 %v1127
          %1332 = vmatpush1.bf16.msra.mxu0 %v1126
          %1333 = vmatprep.mubr.bf16.mxu0 %v617
          %1334 = vmatmul.mubr.bf16.gmra.mrb[0].mxu0 %v616
          %v1335 = vpop.f32.mrb[0].mxu0
          %v1336 = vadd.f32 0.0, %v1335
          %v1337 = vpop.f32.mrb[0].mxu0
          %v1338 = vadd.f32 0.0, %v1337
          %v1339 = vpop.f32.mrb[0].mxu0
          %v1340 = vpop.f32.mrb[0].mxu0
          %1341 = vdwg.mxu0
          %1342 = vmatprep.subr.bf16.mxu0 %v1009
          %1343 = vmatpush1.bf16.msra.mxu0 %v1008
          %1344 = vmatprep.subr.bf16.mxu0 %v1017
          %1345 = vmatpush1.bf16.msra.mxu0 %v1016
          %1346 = vmatprep.subr.bf16.mxu0 %v1025
          %1347 = vmatpush1.bf16.msra.mxu0 %v1024
          %1348 = vmatprep.subr.bf16.mxu0 %v1033
          %1349 = vmatpush1.bf16.msra.mxu0 %v1032
          %1350 = vmatprep.subr.bf16.mxu0 %v1041
          %1351 = vmatpush1.bf16.msra.mxu0 %v1040
          %1352 = vmatprep.subr.bf16.mxu0 %v1049
          %1353 = vmatpush1.bf16.msra.mxu0 %v1048
          %1354 = vmatprep.subr.bf16.mxu0 %v1057
          %1355 = vmatpush1.bf16.msra.mxu0 %v1056
          %1356 = vmatprep.subr.bf16.mxu0 %v1065
          %1357 = vmatpush1.bf16.msra.mxu0 %v1064
          %1358 = vmatprep.subr.bf16.mxu0 %v1073
          %1359 = vmatpush1.bf16.msra.mxu0 %v1072
          %1360 = vmatprep.subr.bf16.mxu0 %v1081
          %1361 = vmatpush1.bf16.msra.mxu0 %v1080
          %1362 = vmatprep.subr.bf16.mxu0 %v1089
          %1363 = vmatpush1.bf16.msra.mxu0 %v1088
          %1364 = vmatprep.subr.bf16.mxu0 %v1097
          %1365 = vmatpush1.bf16.msra.mxu0 %v1096
          %1366 = vmatprep.subr.bf16.mxu0 %v1105
          %1367 = vmatpush1.bf16.msra.mxu0 %v1104
          %1368 = vmatprep.subr.bf16.mxu0 %v1113
          %1369 = vmatpush1.bf16.msra.mxu0 %v1112
          %1370 = vmatprep.subr.bf16.mxu0 %v1121
          %1371 = vmatpush1.bf16.msra.mxu0 %v1120
          %1372 = vmatprep.subr.bf16.mxu0 %v1129
          %1373 = vmatpush1.bf16.msra.mxu0 %v1128
          %1374 = vmatprep.mubr.bf16.mxu0 %v617
          %1375 = vmatmul.mubr.bf16.gmra.mrb[0].mxu0 %v616
          %v1376 = vpop.f32.mrb[0].mxu0
          %v1377 = vadd.f32 0.0, %v1376
          %v1378 = vpop.f32.mrb[0].mxu0
          %v1379 = vadd.f32 0.0, %v1378
          %v1380 = vpop.f32.mrb[0].mxu0
          %v1381 = vpop.f32.mrb[0].mxu0
          %1382 = vdwg.mxu0
          %1383 = vmatprep.subr.bf16.mxu0 %v1011
          %1384 = vmatpush1.bf16.msra.mxu0 %v1010
          %1385 = vmatprep.subr.bf16.mxu0 %v1019
          %1386 = vmatpush1.bf16.msra.mxu0 %v1018
          %1387 = vmatprep.subr.bf16.mxu0 %v1027
          %1388 = vmatpush1.bf16.msra.mxu0 %v1026
          %1389 = vmatprep.subr.bf16.mxu0 %v1035
          %1390 = vmatpush1.bf16.msra.mxu0 %v1034
          %1391 = vmatprep.subr.bf16.mxu0 %v1043
          %1392 = vmatpush1.bf16.msra.mxu0 %v1042
          %1393 = vmatprep.subr.bf16.mxu0 %v1051
          %1394 = vmatpush1.bf16.msra.mxu0 %v1050
          %1395 = vmatprep.subr.bf16.mxu0 %v1059
          %1396 = vmatpush1.bf16.msra.mxu0 %v1058
          %1397 = vmatprep.subr.bf16.mxu0 %v1067
          %1398 = vmatpush1.bf16.msra.mxu0 %v1066
          %1399 = vmatprep.subr.bf16.mxu0 %v1075
          %1400 = vmatpush1.bf16.msra.mxu0 %v1074
          %1401 = vmatprep.subr.bf16.mxu0 %v1083
          %1402 = vmatpush1.bf16.msra.mxu0 %v1082
          %1403 = vmatprep.subr.bf16.mxu0 %v1091
          %1404 = vmatpush1.bf16.msra.mxu0 %v1090
          %1405 = vmatprep.subr.bf16.mxu0 %v1099
          %1406 = vmatpush1.bf16.msra.mxu0 %v1098
          %1407 = vmatprep.subr.bf16.mxu0 %v1107
          %1408 = vmatpush1.bf16.msra.mxu0 %v1106
          %1409 = vmatprep.subr.bf16.mxu0 %v1115
          %1410 = vmatpush1.bf16.msra.mxu0 %v1114
          %1411 = vmatprep.subr.bf16.mxu0 %v1123
          %1412 = vmatpush1.bf16.msra.mxu0 %v1122
          %1413 = vmatprep.subr.bf16.mxu0 %v1131
          %1414 = vmatpush1.bf16.msra.mxu0 %v1130
          %1415 = vmatprep.mubr.bf16.mxu0 %v617
          %1416 = vmatmul.mubr.bf16.gmra.mrb[0].mxu0 %v616
          %v1417 = vpop.f32.mrb[0].mxu0
          %v1418 = vadd.f32 0.0, %v1417
          %v1419 = vpop.f32.mrb[0].mxu0
          %v1420 = vadd.f32 0.0, %v1419
          %v1421 = vpop.f32.mrb[0].mxu0
          %v1422 = vpop.f32.mrb[0].mxu0
          %1423 = vdwg.mxu0
          %v1424 = vld [vmem:[#allocation6] sm:$0xff]
          %v1426 = vlaneseq
          %v1427 = vshrl.u32 %v1426, 7
          %v1428 = vsub.s32 0, %v1427
          %v1429 = vrot.slane %v1424, %v1428
          %v1430 = vlaneseq
          %v1431 = vshrl.u32 %v1430, 7
          %v1432 = vsub.s32 1, %v1431
          %v1433 = vrot.slane %v1424, %v1432
          %v1434 = vlaneseq
          %v1435 = vshrl.u32 %v1434, 7
          %v1436 = vsub.s32 2, %v1435
          %v1437 = vrot.slane %v1424, %v1436
          %v1438 = vlaneseq
          %v1439 = vshrl.u32 %v1438, 7
          %v1440 = vsub.s32 3, %v1439
          %v1441 = vrot.slane %v1424, %v1440
          %v1442 = vlaneseq
          %v1443 = vshrl.u32 %v1442, 7
          %v1444 = vsub.s32 4, %v1443
          %v1445 = vrot.slane %v1424, %v1444
          %v1446 = vlaneseq
          %v1447 = vshrl.u32 %v1446, 7
          %v1448 = vsub.s32 5, %v1447
          %v1449 = vrot.slane %v1424, %v1448
          %v1450 = vlaneseq
          %v1451 = vshrl.u32 %v1450, 7
          %v1452 = vsub.s32 6, %v1451
          %v1453 = vrot.slane %v1424, %v1452
          %v1454 = vlaneseq
          %v1455 = vshrl.u32 %v1454, 7
          %v1456 = vsub.s32 7, %v1455
          %v1457 = vrot.slane %v1424, %v1456
          %v1466 = vmul.f32 %v1295, %v1429
          %v1467 = vmul.f32 %v1297, %v1433
          %v1468 = vmul.f32 %v1336, %v1437
          %v1469 = vmul.f32 %v1338, %v1441
          %v1470 = vmul.f32 %v1377, %v1445
          %v1471 = vmul.f32 %v1379, %v1449
          %v1472 = vmul.f32 %v1418, %v1453
          %v1473 = vmul.f32 %v1420, %v1457
          %v1474 = vld [vmem:[#allocation8] sm:$0xff]
          %v1476 = vlaneseq
          %v1477 = vshrl.u32 %v1476, 7
          %v1478 = vsub.s32 0, %v1477
          %v1479 = vrot.slane %v1474, %v1478
          %v1480 = vlaneseq
          %v1481 = vshrl.u32 %v1480, 7
          %v1482 = vsub.s32 1, %v1481
          %v1483 = vrot.slane %v1474, %v1482
          %v1484 = vlaneseq
          %v1485 = vshrl.u32 %v1484, 7
          %v1486 = vsub.s32 2, %v1485
          %v1487 = vrot.slane %v1474, %v1486
          %v1488 = vlaneseq
          %v1489 = vshrl.u32 %v1488, 7
          %v1490 = vsub.s32 3, %v1489
          %v1491 = vrot.slane %v1474, %v1490
          %v1492 = vlaneseq
          %v1493 = vshrl.u32 %v1492, 7
          %v1494 = vsub.s32 4, %v1493
          %v1495 = vrot.slane %v1474, %v1494
          %v1496 = vlaneseq
          %v1497 = vshrl.u32 %v1496, 7
          %v1498 = vsub.s32 5, %v1497
          %v1499 = vrot.slane %v1474, %v1498
          %v1500 = vlaneseq
          %v1501 = vshrl.u32 %v1500, 7
          %v1502 = vsub.s32 6, %v1501
          %v1503 = vrot.slane %v1474, %v1502
          %v1504 = vlaneseq
          %v1505 = vshrl.u32 %v1504, 7
          %v1506 = vsub.s32 7, %v1505
          %v1507 = vrot.slane %v1474, %v1506
          %v1516 = vadd.f32 %v1466, %v1479
          %v1517 = vadd.f32 %v1467, %v1483
          %v1518 = vadd.f32 %v1468, %v1487
          %v1519 = vadd.f32 %v1469, %v1491
          %v1520 = vadd.f32 %v1470, %v1495
          %v1521 = vadd.f32 %v1471, %v1499
          %v1522 = vadd.f32 %v1472, %v1503
          %v1523 = vadd.f32 %v1473, %v1507
          %v1524 = vmax.f32 %v1516, 0.0
          %v1525 = vmax.f32 %v1517, 0.0
          %v1526 = vmax.f32 %v1518, 0.0
          %v1527 = vmax.f32 %v1519, 0.0
          %v1528 = vmax.f32 %v1520, 0.0
          %v1529 = vmax.f32 %v1521, 0.0
          %v1530 = vmax.f32 %v1522, 0.0
          %v1531 = vmax.f32 %v1523, 0.0
          %v1532 = vpack.c.bf16 %v1524, %v1524
          %v1533 = vpack.c.bf16 %v1525, %v1525
          %v1534 = vpack.c.bf16 %v1526, %v1526
          %v1535 = vpack.c.bf16 %v1527, %v1527
          %v1536 = vpack.c.bf16 %v1528, %v1528
          %v1537 = vpack.c.bf16 %v1529, %v1529
          %v1538 = vpack.c.bf16 %v1530, %v1530
          %v1539 = vpack.c.bf16 %v1531, %v1531
          %v1548 = vunpack.c.l.b16 %v1532
          %v1549 = vunpack.c.l.b16 %v1533
          %v1550 = vunpack.c.l.b16 %v1534
          %v1551 = vunpack.c.l.b16 %v1535
          %v1552 = vunpack.c.l.b16 %v1536
          %v1553 = vunpack.c.l.b16 %v1537
          %v1554 = vunpack.c.l.b16 %v1538
          %v1555 = vunpack.c.l.b16 %v1539
          %v1556 = vpack.c.b16 %v1549, %v1548
          %v1557 = vpack.c.b16 %v1551, %v1550
          %v1558 = vpack.c.b16 %v1553, %v1552
          %v1559 = vpack.c.b16 %v1555, %v1554
          %1564 = vst [vmem:[#allocation2] sm:$0xff] %v1556
          %1565 = vst [vmem:[#allocation2 + $0x8] sm:$0xff] %v1557
          %1566 = vst [vmem:[#allocation2 + $0x10] sm:$0xff] %v1558
          %1567 = vst [vmem:[#allocation2 + $0x18] sm:$0xff] %v1559
        $region92: #{forward.1} parent=55 // pred_fallthru
          _
        %v1568 = vld [vmem:[#allocation2] sm:$0xff]
        %v1569 = vld [vmem:[#allocation2 + $0x8] sm:$0xff]
        %v1570 = vld [vmem:[#allocation2 + $0x10] sm:$0xff]
        %v1571 = vld [vmem:[#allocation2 + $0x18] sm:$0xff]
        %v1572 = vld [vmem:[%s413] sm:$0xff]
        %v1573 = vld [vmem:[%s413 + $0x8] sm:$0xff]
        %v1574 = vld [vmem:[%s413 + $0x10] sm:$0xff]
        %v1575 = vld [vmem:[%s413 + $0x18] sm:$0xff]
        %v1576 = vld [vmem:[%s413 + $0x20] sm:$0xff]
        %v1577 = vld [vmem:[%s413 + $0x28] sm:$0xff]
        %v1578 = vld [vmem:[%s413 + $0x30] sm:$0xff]
        %v1579 = vld [vmem:[%s413 + $0x38] sm:$0xff]
        %v1580 = vld [vmem:[%s413 + $0x40] sm:$0xff]
        %v1581 = vld [vmem:[%s413 + $0x48] sm:$0xff]
        %v1582 = vld [vmem:[%s413 + $0x50] sm:$0xff]
        %v1583 = vld [vmem:[%s413 + $0x58] sm:$0xff]
        %v1584 = vld [vmem:[%s413 + $0x60] sm:$0xff]
        %v1585 = vld [vmem:[%s413 + $0x68] sm:$0xff]
        %v1586 = vld [vmem:[%s413 + $0x70] sm:$0xff]
        %v1587 = vld [vmem:[%s413 + $0x78] sm:$0xff]
        %v1588 = vld [vmem:[%s413 + $0x80] sm:$0xff]
        %v1589 = vld [vmem:[%s413 + $0x88] sm:$0xff]
        %v1590 = vld [vmem:[%s413 + $0x90] sm:$0xff]
        %v1591 = vld [vmem:[%s413 + $0x98] sm:$0xff]
        %v1592 = vld [vmem:[%s413 + $0xa0] sm:$0xff]
        %v1593 = vld [vmem:[%s413 + $0xa8] sm:$0xff]
        %v1594 = vld [vmem:[%s413 + $0xb0] sm:$0xff]
        %v1595 = vld [vmem:[%s413 + $0xb8] sm:$0xff]
        %v1596 = vld [vmem:[%s413 + $0xc0] sm:$0xff]
        %v1597 = vld [vmem:[%s413 + $0xc8] sm:$0xff]
        %v1598 = vld [vmem:[%s413 + $0xd0] sm:$0xff]
        %v1599 = vld [vmem:[%s413 + $0xd8] sm:$0xff]
        %v1600 = vld [vmem:[%s413 + $0xe0] sm:$0xff]
        %v1601 = vld [vmem:[%s413 + $0xe8] sm:$0xff]
        %v1602 = vld [vmem:[%s413 + $0xf0] sm:$0xff]
        %v1603 = vld [vmem:[%s413 + $0xf8] sm:$0xff]
        %v1604 = vld [vmem:[%s413 + $0x100] sm:$0xff]
        %v1605 = vld [vmem:[%s413 + $0x108] sm:$0xff]
        %v1606 = vld [vmem:[%s413 + $0x110] sm:$0xff]
        %v1607 = vld [vmem:[%s413 + $0x118] sm:$0xff]
        %v1608 = vld [vmem:[%s413 + $0x120] sm:$0xff]
        %v1609 = vld [vmem:[%s413 + $0x128] sm:$0xff]
        %v1610 = vld [vmem:[%s413 + $0x130] sm:$0xff]
        %v1611 = vld [vmem:[%s413 + $0x138] sm:$0xff]
        %v1612 = vld [vmem:[%s413 + $0x140] sm:$0xff]
        %v1613 = vld [vmem:[%s413 + $0x148] sm:$0xff]
        %v1614 = vld [vmem:[%s413 + $0x150] sm:$0xff]
        %v1615 = vld [vmem:[%s413 + $0x158] sm:$0xff]
        %v1616 = vld [vmem:[%s413 + $0x160] sm:$0xff]
        %v1617 = vld [vmem:[%s413 + $0x168] sm:$0xff]
        %v1618 = vld [vmem:[%s413 + $0x170] sm:$0xff]
        %v1619 = vld [vmem:[%s413 + $0x178] sm:$0xff]
        %v1620 = vld [vmem:[%s413 + $0x180] sm:$0xff]
        %v1621 = vld [vmem:[%s413 + $0x188] sm:$0xff]
        %v1622 = vld [vmem:[%s413 + $0x190] sm:$0xff]
        %v1623 = vld [vmem:[%s413 + $0x198] sm:$0xff]
        %v1624 = vld [vmem:[%s413 + $0x1a0] sm:$0xff]
        %v1625 = vld [vmem:[%s413 + $0x1a8] sm:$0xff]
        %v1626 = vld [vmem:[%s413 + $0x1b0] sm:$0xff]
        %v1627 = vld [vmem:[%s413 + $0x1b8] sm:$0xff]
        %v1628 = vld [vmem:[%s413 + $0x1c0] sm:$0xff]
        %v1629 = vld [vmem:[%s413 + $0x1c8] sm:$0xff]
        %v1630 = vld [vmem:[%s413 + $0x1d0] sm:$0xff]
        %v1631 = vld [vmem:[%s413 + $0x1d8] sm:$0xff]
        %v1632 = vld [vmem:[%s413 + $0x1e0] sm:$0xff]
        %v1633 = vld [vmem:[%s413 + $0x1e8] sm:$0xff]
        %v1634 = vld [vmem:[%s413 + $0x1f0] sm:$0xff]
        %v1635 = vld [vmem:[%s413 + $0x1f8] sm:$0xff]
        %v1636 = vld [vmem:[%s413 + $0x200] sm:$0xff]
        %v1637 = vld [vmem:[%s413 + $0x208] sm:$0xff]
        %v1638 = vld [vmem:[%s413 + $0x210] sm:$0xff]
        %v1639 = vld [vmem:[%s413 + $0x218] sm:$0xff]
        %v1640 = vld [vmem:[%s413 + $0x220] sm:$0xff]
        %v1641 = vld [vmem:[%s413 + $0x228] sm:$0xff]
        %v1642 = vld [vmem:[%s413 + $0x230] sm:$0xff]
        %v1643 = vld [vmem:[%s413 + $0x238] sm:$0xff]
        %v1644 = vld [vmem:[%s413 + $0x240] sm:$0xff]
        %v1645 = vld [vmem:[%s413 + $0x248] sm:$0xff]
        %v1646 = vld [vmem:[%s413 + $0x250] sm:$0xff]
        %v1647 = vld [vmem:[%s413 + $0x258] sm:$0xff]
        %v1648 = vld [vmem:[%s413 + $0x260] sm:$0xff]
        %v1649 = vld [vmem:[%s413 + $0x268] sm:$0xff]
        %v1650 = vld [vmem:[%s413 + $0x270] sm:$0xff]
        %v1651 = vld [vmem:[%s413 + $0x278] sm:$0xff]
        %v1652 = vld [vmem:[%s413 + $0x280] sm:$0xff]
        %v1653 = vld [vmem:[%s413 + $0x288] sm:$0xff]
        %v1654 = vld [vmem:[%s413 + $0x290] sm:$0xff]
        %v1655 = vld [vmem:[%s413 + $0x298] sm:$0xff]
        %v1656 = vld [vmem:[%s413 + $0x2a0] sm:$0xff]
        %v1657 = vld [vmem:[%s413 + $0x2a8] sm:$0xff]
        %v1658 = vld [vmem:[%s413 + $0x2b0] sm:$0xff]
        %v1659 = vld [vmem:[%s413 + $0x2b8] sm:$0xff]
        %v1660 = vld [vmem:[%s413 + $0x2c0] sm:$0xff]
        %v1661 = vld [vmem:[%s413 + $0x2c8] sm:$0xff]
        %v1662 = vld [vmem:[%s413 + $0x2d0] sm:$0xff]
        %v1663 = vld [vmem:[%s413 + $0x2d8] sm:$0xff]
        %v1664 = vld [vmem:[%s413 + $0x2e0] sm:$0xff]
        %v1665 = vld [vmem:[%s413 + $0x2e8] sm:$0xff]
        %v1666 = vld [vmem:[%s413 + $0x2f0] sm:$0xff]
        %v1667 = vld [vmem:[%s413 + $0x2f8] sm:$0xff]
        %v1668 = vld [vmem:[%s413 + $0x300] sm:$0xff]
        %v1669 = vld [vmem:[%s413 + $0x308] sm:$0xff]
        %v1670 = vld [vmem:[%s413 + $0x310] sm:$0xff]
        %v1671 = vld [vmem:[%s413 + $0x318] sm:$0xff]
        %v1672 = vld [vmem:[%s413 + $0x320] sm:$0xff]
        %v1673 = vld [vmem:[%s413 + $0x328] sm:$0xff]
        %v1674 = vld [vmem:[%s413 + $0x330] sm:$0xff]
        %v1675 = vld [vmem:[%s413 + $0x338] sm:$0xff]
        %v1676 = vld [vmem:[%s413 + $0x340] sm:$0xff]
        %v1677 = vld [vmem:[%s413 + $0x348] sm:$0xff]
        %v1678 = vld [vmem:[%s413 + $0x350] sm:$0xff]
        %v1679 = vld [vmem:[%s413 + $0x358] sm:$0xff]
        %v1680 = vld [vmem:[%s413 + $0x360] sm:$0xff]
        %v1681 = vld [vmem:[%s413 + $0x368] sm:$0xff]
        %v1682 = vld [vmem:[%s413 + $0x370] sm:$0xff]
        %v1683 = vld [vmem:[%s413 + $0x378] sm:$0xff]
        %v1684 = vld [vmem:[%s413 + $0x380] sm:$0xff]
        %v1685 = vld [vmem:[%s413 + $0x388] sm:$0xff]
        %v1686 = vld [vmem:[%s413 + $0x390] sm:$0xff]
        %v1687 = vld [vmem:[%s413 + $0x398] sm:$0xff]
        %v1688 = vld [vmem:[%s413 + $0x3a0] sm:$0xff]
        %v1689 = vld [vmem:[%s413 + $0x3a8] sm:$0xff]
        %v1690 = vld [vmem:[%s413 + $0x3b0] sm:$0xff]
        %v1691 = vld [vmem:[%s413 + $0x3b8] sm:$0xff]
        %v1692 = vld [vmem:[%s413 + $0x3c0] sm:$0xff]
        %v1693 = vld [vmem:[%s413 + $0x3c8] sm:$0xff]
        %v1694 = vld [vmem:[%s413 + $0x3d0] sm:$0xff]
        %v1695 = vld [vmem:[%s413 + $0x3d8] sm:$0xff]
        %v1696 = vld [vmem:[%s413 + $0x3e0] sm:$0xff]
        %v1697 = vld [vmem:[%s413 + $0x3e8] sm:$0xff]
        %v1698 = vld [vmem:[%s413 + $0x3f0] sm:$0xff]
        %v1699 = vld [vmem:[%s413 + $0x3f8] sm:$0xff]
        %v1700 = vld [vmem:[%s413 + $0x400] sm:$0xff]
        %v1701 = vld [vmem:[%s413 + $0x408] sm:$0xff]
        %v1702 = vld [vmem:[%s413 + $0x410] sm:$0xff]
        %v1703 = vld [vmem:[%s413 + $0x418] sm:$0xff]
        %v1704 = vld [vmem:[%s413 + $0x420] sm:$0xff]
        %v1705 = vld [vmem:[%s413 + $0x428] sm:$0xff]
        %v1706 = vld [vmem:[%s413 + $0x430] sm:$0xff]
        %v1707 = vld [vmem:[%s413 + $0x438] sm:$0xff]
        %v1708 = vld [vmem:[%s413 + $0x440] sm:$0xff]
        %v1709 = vld [vmem:[%s413 + $0x448] sm:$0xff]
        %v1710 = vld [vmem:[%s413 + $0x450] sm:$0xff]
        %v1711 = vld [vmem:[%s413 + $0x458] sm:$0xff]
        %v1712 = vld [vmem:[%s413 + $0x460] sm:$0xff]
        %v1713 = vld [vmem:[%s413 + $0x468] sm:$0xff]
        %v1714 = vld [vmem:[%s413 + $0x470] sm:$0xff]
        %v1715 = vld [vmem:[%s413 + $0x478] sm:$0xff]
        %v1716 = vld [vmem:[%s413 + $0x480] sm:$0xff]
        %v1717 = vld [vmem:[%s413 + $0x488] sm:$0xff]
        %v1718 = vld [vmem:[%s413 + $0x490] sm:$0xff]
        %v1719 = vld [vmem:[%s413 + $0x498] sm:$0xff]
        %v1720 = vld [vmem:[%s413 + $0x4a0] sm:$0xff]
        %v1721 = vld [vmem:[%s413 + $0x4a8] sm:$0xff]
        %v1722 = vld [vmem:[%s413 + $0x4b0] sm:$0xff]
        %v1723 = vld [vmem:[%s413 + $0x4b8] sm:$0xff]
        %v1724 = vld [vmem:[%s413 + $0x4c0] sm:$0xff]
        %v1725 = vld [vmem:[%s413 + $0x4c8] sm:$0xff]
        %v1726 = vld [vmem:[%s413 + $0x4d0] sm:$0xff]
        %v1727 = vld [vmem:[%s413 + $0x4d8] sm:$0xff]
        %v1728 = vld [vmem:[%s413 + $0x4e0] sm:$0xff]
        %v1729 = vld [vmem:[%s413 + $0x4e8] sm:$0xff]
        %v1730 = vld [vmem:[%s413 + $0x4f0] sm:$0xff]
        %v1731 = vld [vmem:[%s413 + $0x4f8] sm:$0xff]
        %v1732 = vld [vmem:[%s413 + $0x500] sm:$0xff]
        %v1733 = vld [vmem:[%s413 + $0x508] sm:$0xff]
        %v1734 = vld [vmem:[%s413 + $0x510] sm:$0xff]
        %v1735 = vld [vmem:[%s413 + $0x518] sm:$0xff]
        %v1736 = vld [vmem:[%s413 + $0x520] sm:$0xff]
        %v1737 = vld [vmem:[%s413 + $0x528] sm:$0xff]
        %v1738 = vld [vmem:[%s413 + $0x530] sm:$0xff]
        %v1739 = vld [vmem:[%s413 + $0x538] sm:$0xff]
        %v1740 = vld [vmem:[%s413 + $0x540] sm:$0xff]
        %v1741 = vld [vmem:[%s413 + $0x548] sm:$0xff]
        %v1742 = vld [vmem:[%s413 + $0x550] sm:$0xff]
        %v1743 = vld [vmem:[%s413 + $0x558] sm:$0xff]
        %v1744 = vld [vmem:[%s413 + $0x560] sm:$0xff]
        %v1745 = vld [vmem:[%s413 + $0x568] sm:$0xff]
        %v1746 = vld [vmem:[%s413 + $0x570] sm:$0xff]
        %v1747 = vld [vmem:[%s413 + $0x578] sm:$0xff]
        %v1748 = vld [vmem:[%s413 + $0x580] sm:$0xff]
        %v1749 = vld [vmem:[%s413 + $0x588] sm:$0xff]
        %v1750 = vld [vmem:[%s413 + $0x590] sm:$0xff]
        %v1751 = vld [vmem:[%s413 + $0x598] sm:$0xff]
        %v1752 = vld [vmem:[%s413 + $0x5a0] sm:$0xff]
        %v1753 = vld [vmem:[%s413 + $0x5a8] sm:$0xff]
        %v1754 = vld [vmem:[%s413 + $0x5b0] sm:$0xff]
        %v1755 = vld [vmem:[%s413 + $0x5b8] sm:$0xff]
        %v1756 = vld [vmem:[%s413 + $0x5c0] sm:$0xff]
        %v1757 = vld [vmem:[%s413 + $0x5c8] sm:$0xff]
        %v1758 = vld [vmem:[%s413 + $0x5d0] sm:$0xff]
        %v1759 = vld [vmem:[%s413 + $0x5d8] sm:$0xff]
        %v1760 = vld [vmem:[%s413 + $0x5e0] sm:$0xff]
        %v1761 = vld [vmem:[%s413 + $0x5e8] sm:$0xff]
        %v1762 = vld [vmem:[%s413 + $0x5f0] sm:$0xff]
        %v1763 = vld [vmem:[%s413 + $0x5f8] sm:$0xff]
        %v1764 = vld [vmem:[%s413 + $0x600] sm:$0xff]
        %v1765 = vld [vmem:[%s413 + $0x608] sm:$0xff]
        %v1766 = vld [vmem:[%s413 + $0x610] sm:$0xff]
        %v1767 = vld [vmem:[%s413 + $0x618] sm:$0xff]
        %v1768 = vld [vmem:[%s413 + $0x620] sm:$0xff]
        %v1769 = vld [vmem:[%s413 + $0x628] sm:$0xff]
        %v1770 = vld [vmem:[%s413 + $0x630] sm:$0xff]
        %v1771 = vld [vmem:[%s413 + $0x638] sm:$0xff]
        %v1772 = vld [vmem:[%s413 + $0x640] sm:$0xff]
        %v1773 = vld [vmem:[%s413 + $0x648] sm:$0xff]
        %v1774 = vld [vmem:[%s413 + $0x650] sm:$0xff]
        %v1775 = vld [vmem:[%s413 + $0x658] sm:$0xff]
        %v1776 = vld [vmem:[%s413 + $0x660] sm:$0xff]
        %v1777 = vld [vmem:[%s413 + $0x668] sm:$0xff]
        %v1778 = vld [vmem:[%s413 + $0x670] sm:$0xff]
        %v1779 = vld [vmem:[%s413 + $0x678] sm:$0xff]
        %v1780 = vld [vmem:[%s413 + $0x680] sm:$0xff]
        %v1781 = vld [vmem:[%s413 + $0x688] sm:$0xff]
        %v1782 = vld [vmem:[%s413 + $0x690] sm:$0xff]
        %v1783 = vld [vmem:[%s413 + $0x698] sm:$0xff]
        %v1784 = vld [vmem:[%s413 + $0x6a0] sm:$0xff]
        %v1785 = vld [vmem:[%s413 + $0x6a8] sm:$0xff]
        %v1786 = vld [vmem:[%s413 + $0x6b0] sm:$0xff]
        %v1787 = vld [vmem:[%s413 + $0x6b8] sm:$0xff]
        %v1788 = vld [vmem:[%s413 + $0x6c0] sm:$0xff]
        %v1789 = vld [vmem:[%s413 + $0x6c8] sm:$0xff]
        %v1790 = vld [vmem:[%s413 + $0x6d0] sm:$0xff]
        %v1791 = vld [vmem:[%s413 + $0x6d8] sm:$0xff]
        %v1792 = vld [vmem:[%s413 + $0x6e0] sm:$0xff]
        %v1793 = vld [vmem:[%s413 + $0x6e8] sm:$0xff]
        %v1794 = vld [vmem:[%s413 + $0x6f0] sm:$0xff]
        %v1795 = vld [vmem:[%s413 + $0x6f8] sm:$0xff]
        %v1796 = vld [vmem:[%s413 + $0x700] sm:$0xff]
        %v1797 = vld [vmem:[%s413 + $0x708] sm:$0xff]
        %v1798 = vld [vmem:[%s413 + $0x710] sm:$0xff]
        %v1799 = vld [vmem:[%s413 + $0x718] sm:$0xff]
        %v1800 = vld [vmem:[%s413 + $0x720] sm:$0xff]
        %v1801 = vld [vmem:[%s413 + $0x728] sm:$0xff]
        %v1802 = vld [vmem:[%s413 + $0x730] sm:$0xff]
        %v1803 = vld [vmem:[%s413 + $0x738] sm:$0xff]
        %v1804 = vld [vmem:[%s413 + $0x740] sm:$0xff]
        %v1805 = vld [vmem:[%s413 + $0x748] sm:$0xff]
        %v1806 = vld [vmem:[%s413 + $0x750] sm:$0xff]
        %v1807 = vld [vmem:[%s413 + $0x758] sm:$0xff]
        %v1808 = vld [vmem:[%s413 + $0x760] sm:$0xff]
        %v1809 = vld [vmem:[%s413 + $0x768] sm:$0xff]
        %v1810 = vld [vmem:[%s413 + $0x770] sm:$0xff]
        %v1811 = vld [vmem:[%s413 + $0x778] sm:$0xff]
        %v1812 = vld [vmem:[%s413 + $0x780] sm:$0xff]
        %v1813 = vld [vmem:[%s413 + $0x788] sm:$0xff]
        %v1814 = vld [vmem:[%s413 + $0x790] sm:$0xff]
        %v1815 = vld [vmem:[%s413 + $0x798] sm:$0xff]
        %v1816 = vld [vmem:[%s413 + $0x7a0] sm:$0xff]
        %v1817 = vld [vmem:[%s413 + $0x7a8] sm:$0xff]
        %v1818 = vld [vmem:[%s413 + $0x7b0] sm:$0xff]
        %v1819 = vld [vmem:[%s413 + $0x7b8] sm:$0xff]
        %v1820 = vld [vmem:[%s413 + $0x7c0] sm:$0xff]
        %v1821 = vld [vmem:[%s413 + $0x7c8] sm:$0xff]
        %v1822 = vld [vmem:[%s413 + $0x7d0] sm:$0xff]
        %v1823 = vld [vmem:[%s413 + $0x7d8] sm:$0xff]
        %v1824 = vld [vmem:[%s413 + $0x7e0] sm:$0xff]
        %v1825 = vld [vmem:[%s413 + $0x7e8] sm:$0xff]
        %v1826 = vld [vmem:[%s413 + $0x7f0] sm:$0xff]
        %v1827 = vld [vmem:[%s413 + $0x7f8] sm:$0xff]
        %v1828 = vld [vmem:[%s413 + $0x800] sm:$0xff]
        %v1829 = vld [vmem:[%s413 + $0x808] sm:$0xff]
        %v1830 = vld [vmem:[%s413 + $0x810] sm:$0xff]
        %v1831 = vld [vmem:[%s413 + $0x818] sm:$0xff]
        %v1832 = vld [vmem:[%s413 + $0x820] sm:$0xff]
        %v1833 = vld [vmem:[%s413 + $0x828] sm:$0xff]
        %v1834 = vld [vmem:[%s413 + $0x830] sm:$0xff]
        %v1835 = vld [vmem:[%s413 + $0x838] sm:$0xff]
        %v1836 = vld [vmem:[%s413 + $0x840] sm:$0xff]
        %v1837 = vld [vmem:[%s413 + $0x848] sm:$0xff]
        %v1838 = vld [vmem:[%s413 + $0x850] sm:$0xff]
        %v1839 = vld [vmem:[%s413 + $0x858] sm:$0xff]
        %v1840 = vld [vmem:[%s413 + $0x860] sm:$0xff]
        %v1841 = vld [vmem:[%s413 + $0x868] sm:$0xff]
        %v1842 = vld [vmem:[%s413 + $0x870] sm:$0xff]
        %v1843 = vld [vmem:[%s413 + $0x878] sm:$0xff]
        %v1844 = vld [vmem:[%s413 + $0x880] sm:$0xff]
        %v1845 = vld [vmem:[%s413 + $0x888] sm:$0xff]
        %v1846 = vld [vmem:[%s413 + $0x890] sm:$0xff]
        %v1847 = vld [vmem:[%s413 + $0x898] sm:$0xff]
        %v1848 = vld [vmem:[%s413 + $0x8a0] sm:$0xff]
        %v1849 = vld [vmem:[%s413 + $0x8a8] sm:$0xff]
        %v1850 = vld [vmem:[%s413 + $0x8b0] sm:$0xff]
        %v1851 = vld [vmem:[%s413 + $0x8b8] sm:$0xff]
        %v1852 = vld [vmem:[%s413 + $0x8c0] sm:$0xff]
        %v1853 = vld [vmem:[%s413 + $0x8c8] sm:$0xff]
        %v1854 = vld [vmem:[%s413 + $0x8d0] sm:$0xff]
        %v1855 = vld [vmem:[%s413 + $0x8d8] sm:$0xff]
        %v1856 = vld [vmem:[%s413 + $0x8e0] sm:$0xff]
        %v1857 = vld [vmem:[%s413 + $0x8e8] sm:$0xff]
        %v1858 = vld [vmem:[%s413 + $0x8f0] sm:$0xff]
        %v1859 = vld [vmem:[%s413 + $0x8f8] sm:$0xff]
        %v1860 = vld [vmem:[%s413 + $0x900] sm:$0xff]
        %v1861 = vld [vmem:[%s413 + $0x908] sm:$0xff]
        %v1862 = vld [vmem:[%s413 + $0x910] sm:$0xff]
        %v1863 = vld [vmem:[%s413 + $0x918] sm:$0xff]
        %v1864 = vld [vmem:[%s413 + $0x920] sm:$0xff]
        %v1865 = vld [vmem:[%s413 + $0x928] sm:$0xff]
        %v1866 = vld [vmem:[%s413 + $0x930] sm:$0xff]
        %v1867 = vld [vmem:[%s413 + $0x938] sm:$0xff]
        %v1868 = vld [vmem:[%s413 + $0x940] sm:$0xff]
        %v1869 = vld [vmem:[%s413 + $0x948] sm:$0xff]
        %v1870 = vld [vmem:[%s413 + $0x950] sm:$0xff]
        %v1871 = vld [vmem:[%s413 + $0x958] sm:$0xff]
        %v1872 = vld [vmem:[%s413 + $0x960] sm:$0xff]
        %v1873 = vld [vmem:[%s413 + $0x968] sm:$0xff]
        %v1874 = vld [vmem:[%s413 + $0x970] sm:$0xff]
        %v1875 = vld [vmem:[%s413 + $0x978] sm:$0xff]
        %v1876 = vld [vmem:[%s413 + $0x980] sm:$0xff]
        %v1877 = vld [vmem:[%s413 + $0x988] sm:$0xff]
        %v1878 = vld [vmem:[%s413 + $0x990] sm:$0xff]
        %v1879 = vld [vmem:[%s413 + $0x998] sm:$0xff]
        %v1880 = vld [vmem:[%s413 + $0x9a0] sm:$0xff]
        %v1881 = vld [vmem:[%s413 + $0x9a8] sm:$0xff]
        %v1882 = vld [vmem:[%s413 + $0x9b0] sm:$0xff]
        %v1883 = vld [vmem:[%s413 + $0x9b8] sm:$0xff]
        %v1884 = vld [vmem:[%s413 + $0x9c0] sm:$0xff]
        %v1885 = vld [vmem:[%s413 + $0x9c8] sm:$0xff]
        %v1886 = vld [vmem:[%s413 + $0x9d0] sm:$0xff]
        %v1887 = vld [vmem:[%s413 + $0x9d8] sm:$0xff]
        %v1888 = vld [vmem:[%s413 + $0x9e0] sm:$0xff]
        %v1889 = vld [vmem:[%s413 + $0x9e8] sm:$0xff]
        %v1890 = vld [vmem:[%s413 + $0x9f0] sm:$0xff]
        %v1891 = vld [vmem:[%s413 + $0x9f8] sm:$0xff]
        %v1892 = vld [vmem:[%s413 + $0xa00] sm:$0xff]
        %v1893 = vld [vmem:[%s413 + $0xa08] sm:$0xff]
        %v1894 = vld [vmem:[%s413 + $0xa10] sm:$0xff]
        %v1895 = vld [vmem:[%s413 + $0xa18] sm:$0xff]
        %v1896 = vld [vmem:[%s413 + $0xa20] sm:$0xff]
        %v1897 = vld [vmem:[%s413 + $0xa28] sm:$0xff]
        %v1898 = vld [vmem:[%s413 + $0xa30] sm:$0xff]
        %v1899 = vld [vmem:[%s413 + $0xa38] sm:$0xff]
        %v1900 = vld [vmem:[%s413 + $0xa40] sm:$0xff]
        %v1901 = vld [vmem:[%s413 + $0xa48] sm:$0xff]
        %v1902 = vld [vmem:[%s413 + $0xa50] sm:$0xff]
        %v1903 = vld [vmem:[%s413 + $0xa58] sm:$0xff]
        %v1904 = vld [vmem:[%s413 + $0xa60] sm:$0xff]
        %v1905 = vld [vmem:[%s413 + $0xa68] sm:$0xff]
        %v1906 = vld [vmem:[%s413 + $0xa70] sm:$0xff]
        %v1907 = vld [vmem:[%s413 + $0xa78] sm:$0xff]
        %v1908 = vld [vmem:[%s413 + $0xa80] sm:$0xff]
        %v1909 = vld [vmem:[%s413 + $0xa88] sm:$0xff]
        %v1910 = vld [vmem:[%s413 + $0xa90] sm:$0xff]
        %v1911 = vld [vmem:[%s413 + $0xa98] sm:$0xff]
        %v1912 = vld [vmem:[%s413 + $0xaa0] sm:$0xff]
        %v1913 = vld [vmem:[%s413 + $0xaa8] sm:$0xff]
        %v1914 = vld [vmem:[%s413 + $0xab0] sm:$0xff]
        %v1915 = vld [vmem:[%s413 + $0xab8] sm:$0xff]
        %v1916 = vld [vmem:[%s413 + $0xac0] sm:$0xff]
        %v1917 = vld [vmem:[%s413 + $0xac8] sm:$0xff]
        %v1918 = vld [vmem:[%s413 + $0xad0] sm:$0xff]
        %v1919 = vld [vmem:[%s413 + $0xad8] sm:$0xff]
        %v1920 = vld [vmem:[%s413 + $0xae0] sm:$0xff]
        %v1921 = vld [vmem:[%s413 + $0xae8] sm:$0xff]
        %v1922 = vld [vmem:[%s413 + $0xaf0] sm:$0xff]
        %v1923 = vld [vmem:[%s413 + $0xaf8] sm:$0xff]
        %v1924 = vld [vmem:[%s413 + $0xb00] sm:$0xff]
        %v1925 = vld [vmem:[%s413 + $0xb08] sm:$0xff]
        %v1926 = vld [vmem:[%s413 + $0xb10] sm:$0xff]
        %v1927 = vld [vmem:[%s413 + $0xb18] sm:$0xff]
        %v1928 = vld [vmem:[%s413 + $0xb20] sm:$0xff]
        %v1929 = vld [vmem:[%s413 + $0xb28] sm:$0xff]
        %v1930 = vld [vmem:[%s413 + $0xb30] sm:$0xff]
        %v1931 = vld [vmem:[%s413 + $0xb38] sm:$0xff]
        %v1932 = vld [vmem:[%s413 + $0xb40] sm:$0xff]
        %v1933 = vld [vmem:[%s413 + $0xb48] sm:$0xff]
        %v1934 = vld [vmem:[%s413 + $0xb50] sm:$0xff]
        %v1935 = vld [vmem:[%s413 + $0xb58] sm:$0xff]
        %v1936 = vld [vmem:[%s413 + $0xb60] sm:$0xff]
        %v1937 = vld [vmem:[%s413 + $0xb68] sm:$0xff]
        %v1938 = vld [vmem:[%s413 + $0xb70] sm:$0xff]
        %v1939 = vld [vmem:[%s413 + $0xb78] sm:$0xff]
        %v1940 = vld [vmem:[%s413 + $0xb80] sm:$0xff]
        %v1941 = vld [vmem:[%s413 + $0xb88] sm:$0xff]
        %v1942 = vld [vmem:[%s413 + $0xb90] sm:$0xff]
        %v1943 = vld [vmem:[%s413 + $0xb98] sm:$0xff]
        %v1944 = vld [vmem:[%s413 + $0xba0] sm:$0xff]
        %v1945 = vld [vmem:[%s413 + $0xba8] sm:$0xff]
        %v1946 = vld [vmem:[%s413 + $0xbb0] sm:$0xff]
        %v1947 = vld [vmem:[%s413 + $0xbb8] sm:$0xff]
        %v1948 = vld [vmem:[%s413 + $0xbc0] sm:$0xff]
        %v1949 = vld [vmem:[%s413 + $0xbc8] sm:$0xff]
        %v1950 = vld [vmem:[%s413 + $0xbd0] sm:$0xff]
        %v1951 = vld [vmem:[%s413 + $0xbd8] sm:$0xff]
        %v1952 = vld [vmem:[%s413 + $0xbe0] sm:$0xff]
        %v1953 = vld [vmem:[%s413 + $0xbe8] sm:$0xff]
        %v1954 = vld [vmem:[%s413 + $0xbf0] sm:$0xff]
        %v1955 = vld [vmem:[%s413 + $0xbf8] sm:$0xff]
        %v1956 = vld [vmem:[%s413 + $0xc00] sm:$0xff]
        %v1957 = vld [vmem:[%s413 + $0xc08] sm:$0xff]
        %v1958 = vld [vmem:[%s413 + $0xc10] sm:$0xff]
        %v1959 = vld [vmem:[%s413 + $0xc18] sm:$0xff]
        %v1960 = vld [vmem:[%s413 + $0xc20] sm:$0xff]
        %v1961 = vld [vmem:[%s413 + $0xc28] sm:$0xff]
        %v1962 = vld [vmem:[%s413 + $0xc30] sm:$0xff]
        %v1963 = vld [vmem:[%s413 + $0xc38] sm:$0xff]
        %v1964 = vld [vmem:[%s413 + $0xc40] sm:$0xff]
        %v1965 = vld [vmem:[%s413 + $0xc48] sm:$0xff]
        %v1966 = vld [vmem:[%s413 + $0xc50] sm:$0xff]
        %v1967 = vld [vmem:[%s413 + $0xc58] sm:$0xff]
        %v1968 = vld [vmem:[%s413 + $0xc60] sm:$0xff]
        %v1969 = vld [vmem:[%s413 + $0xc68] sm:$0xff]
        %v1970 = vld [vmem:[%s413 + $0xc70] sm:$0xff]
        %v1971 = vld [vmem:[%s413 + $0xc78] sm:$0xff]
        %v1972 = vld [vmem:[%s413 + $0xc80] sm:$0xff]
        %v1973 = vld [vmem:[%s413 + $0xc88] sm:$0xff]
        %v1974 = vld [vmem:[%s413 + $0xc90] sm:$0xff]
        %v1975 = vld [vmem:[%s413 + $0xc98] sm:$0xff]
        %v1976 = vld [vmem:[%s413 + $0xca0] sm:$0xff]
        %v1977 = vld [vmem:[%s413 + $0xca8] sm:$0xff]
        %v1978 = vld [vmem:[%s413 + $0xcb0] sm:$0xff]
        %v1979 = vld [vmem:[%s413 + $0xcb8] sm:$0xff]
        %v1980 = vld [vmem:[%s413 + $0xcc0] sm:$0xff]
        %v1981 = vld [vmem:[%s413 + $0xcc8] sm:$0xff]
        %v1982 = vld [vmem:[%s413 + $0xcd0] sm:$0xff]
        %v1983 = vld [vmem:[%s413 + $0xcd8] sm:$0xff]
        %v1984 = vld [vmem:[%s413 + $0xce0] sm:$0xff]
        %v1985 = vld [vmem:[%s413 + $0xce8] sm:$0xff]
        %v1986 = vld [vmem:[%s413 + $0xcf0] sm:$0xff]
        %v1987 = vld [vmem:[%s413 + $0xcf8] sm:$0xff]
        %v1988 = vld [vmem:[%s413 + $0xd00] sm:$0xff]
        %v1989 = vld [vmem:[%s413 + $0xd08] sm:$0xff]
        %v1990 = vld [vmem:[%s413 + $0xd10] sm:$0xff]
        %v1991 = vld [vmem:[%s413 + $0xd18] sm:$0xff]
        %v1992 = vld [vmem:[%s413 + $0xd20] sm:$0xff]
        %v1993 = vld [vmem:[%s413 + $0xd28] sm:$0xff]
        %v1994 = vld [vmem:[%s413 + $0xd30] sm:$0xff]
        %v1995 = vld [vmem:[%s413 + $0xd38] sm:$0xff]
        %v1996 = vld [vmem:[%s413 + $0xd40] sm:$0xff]
        %v1997 = vld [vmem:[%s413 + $0xd48] sm:$0xff]
        %v1998 = vld [vmem:[%s413 + $0xd50] sm:$0xff]
        %v1999 = vld [vmem:[%s413 + $0xd58] sm:$0xff]
        %v2000 = vld [vmem:[%s413 + $0xd60] sm:$0xff]
        %v2001 = vld [vmem:[%s413 + $0xd68] sm:$0xff]
        %v2002 = vld [vmem:[%s413 + $0xd70] sm:$0xff]
        %v2003 = vld [vmem:[%s413 + $0xd78] sm:$0xff]
        %v2004 = vld [vmem:[%s413 + $0xd80] sm:$0xff]
        %v2005 = vld [vmem:[%s413 + $0xd88] sm:$0xff]
        %v2006 = vld [vmem:[%s413 + $0xd90] sm:$0xff]
        %v2007 = vld [vmem:[%s413 + $0xd98] sm:$0xff]
        %v2008 = vld [vmem:[%s413 + $0xda0] sm:$0xff]
        %v2009 = vld [vmem:[%s413 + $0xda8] sm:$0xff]
        %v2010 = vld [vmem:[%s413 + $0xdb0] sm:$0xff]
        %v2011 = vld [vmem:[%s413 + $0xdb8] sm:$0xff]
        %v2012 = vld [vmem:[%s413 + $0xdc0] sm:$0xff]
        %v2013 = vld [vmem:[%s413 + $0xdc8] sm:$0xff]
        %v2014 = vld [vmem:[%s413 + $0xdd0] sm:$0xff]
        %v2015 = vld [vmem:[%s413 + $0xdd8] sm:$0xff]
        %v2016 = vld [vmem:[%s413 + $0xde0] sm:$0xff]
        %v2017 = vld [vmem:[%s413 + $0xde8] sm:$0xff]
        %v2018 = vld [vmem:[%s413 + $0xdf0] sm:$0xff]
        %v2019 = vld [vmem:[%s413 + $0xdf8] sm:$0xff]
        %v2020 = vld [vmem:[%s413 + $0xe00] sm:$0xff]
        %v2021 = vld [vmem:[%s413 + $0xe08] sm:$0xff]
        %v2022 = vld [vmem:[%s413 + $0xe10] sm:$0xff]
        %v2023 = vld [vmem:[%s413 + $0xe18] sm:$0xff]
        %v2024 = vld [vmem:[%s413 + $0xe20] sm:$0xff]
        %v2025 = vld [vmem:[%s413 + $0xe28] sm:$0xff]
        %v2026 = vld [vmem:[%s413 + $0xe30] sm:$0xff]
        %v2027 = vld [vmem:[%s413 + $0xe38] sm:$0xff]
        %v2028 = vld [vmem:[%s413 + $0xe40] sm:$0xff]
        %v2029 = vld [vmem:[%s413 + $0xe48] sm:$0xff]
        %v2030 = vld [vmem:[%s413 + $0xe50] sm:$0xff]
        %v2031 = vld [vmem:[%s413 + $0xe58] sm:$0xff]
        %v2032 = vld [vmem:[%s413 + $0xe60] sm:$0xff]
        %v2033 = vld [vmem:[%s413 + $0xe68] sm:$0xff]
        %v2034 = vld [vmem:[%s413 + $0xe70] sm:$0xff]
        %v2035 = vld [vmem:[%s413 + $0xe78] sm:$0xff]
        %v2036 = vld [vmem:[%s413 + $0xe80] sm:$0xff]
        %v2037 = vld [vmem:[%s413 + $0xe88] sm:$0xff]
        %v2038 = vld [vmem:[%s413 + $0xe90] sm:$0xff]
        %v2039 = vld [vmem:[%s413 + $0xe98] sm:$0xff]
        %v2040 = vld [vmem:[%s413 + $0xea0] sm:$0xff]
        %v2041 = vld [vmem:[%s413 + $0xea8] sm:$0xff]
        %v2042 = vld [vmem:[%s413 + $0xeb0] sm:$0xff]
        %v2043 = vld [vmem:[%s413 + $0xeb8] sm:$0xff]
        %v2044 = vld [vmem:[%s413 + $0xec0] sm:$0xff]
        %v2045 = vld [vmem:[%s413 + $0xec8] sm:$0xff]
        %v2046 = vld [vmem:[%s413 + $0xed0] sm:$0xff]
        %v2047 = vld [vmem:[%s413 + $0xed8] sm:$0xff]
        %v2048 = vld [vmem:[%s413 + $0xee0] sm:$0xff]
        %v2049 = vld [vmem:[%s413 + $0xee8] sm:$0xff]
        %v2050 = vld [vmem:[%s413 + $0xef0] sm:$0xff]
        %v2051 = vld [vmem:[%s413 + $0xef8] sm:$0xff]
        %v2052 = vld [vmem:[%s413 + $0xf00] sm:$0xff]
        %v2053 = vld [vmem:[%s413 + $0xf08] sm:$0xff]
        %v2054 = vld [vmem:[%s413 + $0xf10] sm:$0xff]
        %v2055 = vld [vmem:[%s413 + $0xf18] sm:$0xff]
        %v2056 = vld [vmem:[%s413 + $0xf20] sm:$0xff]
        %v2057 = vld [vmem:[%s413 + $0xf28] sm:$0xff]
        %v2058 = vld [vmem:[%s413 + $0xf30] sm:$0xff]
        %v2059 = vld [vmem:[%s413 + $0xf38] sm:$0xff]
        %v2060 = vld [vmem:[%s413 + $0xf40] sm:$0xff]
        %v2061 = vld [vmem:[%s413 + $0xf48] sm:$0xff]
        %v2062 = vld [vmem:[%s413 + $0xf50] sm:$0xff]
        %v2063 = vld [vmem:[%s413 + $0xf58] sm:$0xff]
        %v2064 = vld [vmem:[%s413 + $0xf60] sm:$0xff]
        %v2065 = vld [vmem:[%s413 + $0xf68] sm:$0xff]
        %v2066 = vld [vmem:[%s413 + $0xf70] sm:$0xff]
        %v2067 = vld [vmem:[%s413 + $0xf78] sm:$0xff]
        %v2068 = vld [vmem:[%s413 + $0xf80] sm:$0xff]
        %v2069 = vld [vmem:[%s413 + $0xf88] sm:$0xff]
        %v2070 = vld [vmem:[%s413 + $0xf90] sm:$0xff]
        %v2071 = vld [vmem:[%s413 + $0xf98] sm:$0xff]
        %v2072 = vld [vmem:[%s413 + $0xfa0] sm:$0xff]
        %v2073 = vld [vmem:[%s413 + $0xfa8] sm:$0xff]
        %v2074 = vld [vmem:[%s413 + $0xfb0] sm:$0xff]
        %v2075 = vld [vmem:[%s413 + $0xfb8] sm:$0xff]
        %v2076 = vld [vmem:[%s413 + $0xfc0] sm:$0xff]
        %v2077 = vld [vmem:[%s413 + $0xfc8] sm:$0xff]
        %v2078 = vld [vmem:[%s413 + $0xfd0] sm:$0xff]
        %v2079 = vld [vmem:[%s413 + $0xfd8] sm:$0xff]
        %v2080 = vld [vmem:[%s413 + $0xfe0] sm:$0xff]
        %v2081 = vld [vmem:[%s413 + $0xfe8] sm:$0xff]
        %v2082 = vld [vmem:[%s413 + $0xff0] sm:$0xff]
        %v2083 = vld [vmem:[%s413 + $0xff8] sm:$0xff]
        %v2088 = vunpack.c.l.b16 %v1568
        %v2089 = vunpack.c.h.b16 %v1568
        %v2090 = vunpack.c.l.b16 %v1569
        %v2091 = vunpack.c.h.b16 %v1569
        %v2092 = vunpack.c.l.b16 %v1570
        %v2093 = vunpack.c.h.b16 %v1570
        %v2094 = vunpack.c.l.b16 %v1571
        %v2095 = vunpack.c.h.b16 %v1571
        %v2096 = vpack.c.b16 %v2088, %v2088
        %v2097 = vpack.c.b16 %v2089, %v2089
        %v2098 = vpack.c.b16 %v2090, %v2090
        %v2099 = vpack.c.b16 %v2091, %v2091
        %v2100 = vpack.c.b16 %v2092, %v2092
        %v2101 = vpack.c.b16 %v2093, %v2093
        %v2102 = vpack.c.b16 %v2094, %v2094
        %v2103 = vpack.c.b16 %v2095, %v2095
        %v2624 = vunpack.c.l.b16 %v1572
        %v2625 = vunpack.c.h.b16 %v1572
        %v2626 = vunpack.c.l.b16 %v1573
        %v2627 = vunpack.c.h.b16 %v1573
        %v2628 = vunpack.c.l.b16 %v1574
        %v2629 = vunpack.c.h.b16 %v1574
        %v2630 = vunpack.c.l.b16 %v1575
        %v2631 = vunpack.c.h.b16 %v1575
        %v2632 = vunpack.c.l.b16 %v1576
        %v2633 = vunpack.c.h.b16 %v1576
        %v2634 = vunpack.c.l.b16 %v1577
        %v2635 = vunpack.c.h.b16 %v1577
        %v2636 = vunpack.c.l.b16 %v1578
        %v2637 = vunpack.c.h.b16 %v1578
        %v2638 = vunpack.c.l.b16 %v1579
        %v2639 = vunpack.c.h.b16 %v1579
        %v2640 = vunpack.c.l.b16 %v1580
        %v2641 = vunpack.c.h.b16 %v1580
        %v2642 = vunpack.c.l.b16 %v1581
        %v2643 = vunpack.c.h.b16 %v1581
        %v2644 = vunpack.c.l.b16 %v1582
        %v2645 = vunpack.c.h.b16 %v1582
        %v2646 = vunpack.c.l.b16 %v1583
        %v2647 = vunpack.c.h.b16 %v1583
        %v2648 = vunpack.c.l.b16 %v1584
        %v2649 = vunpack.c.h.b16 %v1584
        %v2650 = vunpack.c.l.b16 %v1585
        %v2651 = vunpack.c.h.b16 %v1585
        %v2652 = vunpack.c.l.b16 %v1586
        %v2653 = vunpack.c.h.b16 %v1586
        %v2654 = vunpack.c.l.b16 %v1587
        %v2655 = vunpack.c.h.b16 %v1587
        %v2656 = vunpack.c.l.b16 %v1588
        %v2657 = vunpack.c.h.b16 %v1588
        %v2658 = vunpack.c.l.b16 %v1589
        %v2659 = vunpack.c.h.b16 %v1589
        %v2660 = vunpack.c.l.b16 %v1590
        %v2661 = vunpack.c.h.b16 %v1590
        %v2662 = vunpack.c.l.b16 %v1591
        %v2663 = vunpack.c.h.b16 %v1591
        %v2664 = vunpack.c.l.b16 %v1592
        %v2665 = vunpack.c.h.b16 %v1592
        %v2666 = vunpack.c.l.b16 %v1593
        %v2667 = vunpack.c.h.b16 %v1593
        %v2668 = vunpack.c.l.b16 %v1594
        %v2669 = vunpack.c.h.b16 %v1594
        %v2670 = vunpack.c.l.b16 %v1595
        %v2671 = vunpack.c.h.b16 %v1595
        %v2672 = vunpack.c.l.b16 %v1596
        %v2673 = vunpack.c.h.b16 %v1596
        %v2674 = vunpack.c.l.b16 %v1597
        %v2675 = vunpack.c.h.b16 %v1597
        %v2676 = vunpack.c.l.b16 %v1598
        %v2677 = vunpack.c.h.b16 %v1598
        %v2678 = vunpack.c.l.b16 %v1599
        %v2679 = vunpack.c.h.b16 %v1599
        %v2680 = vunpack.c.l.b16 %v1600
        %v2681 = vunpack.c.h.b16 %v1600
        %v2682 = vunpack.c.l.b16 %v1601
        %v2683 = vunpack.c.h.b16 %v1601
        %v2684 = vunpack.c.l.b16 %v1602
        %v2685 = vunpack.c.h.b16 %v1602
        %v2686 = vunpack.c.l.b16 %v1603
        %v2687 = vunpack.c.h.b16 %v1603
        %v2688 = vunpack.c.l.b16 %v1604
        %v2689 = vunpack.c.h.b16 %v1604
        %v2690 = vunpack.c.l.b16 %v1605
        %v2691 = vunpack.c.h.b16 %v1605
        %v2692 = vunpack.c.l.b16 %v1606
        %v2693 = vunpack.c.h.b16 %v1606
        %v2694 = vunpack.c.l.b16 %v1607
        %v2695 = vunpack.c.h.b16 %v1607
        %v2696 = vunpack.c.l.b16 %v1608
        %v2697 = vunpack.c.h.b16 %v1608
        %v2698 = vunpack.c.l.b16 %v1609
        %v2699 = vunpack.c.h.b16 %v1609
        %v2700 = vunpack.c.l.b16 %v1610
        %v2701 = vunpack.c.h.b16 %v1610
        %v2702 = vunpack.c.l.b16 %v1611
        %v2703 = vunpack.c.h.b16 %v1611
        %v2704 = vunpack.c.l.b16 %v1612
        %v2705 = vunpack.c.h.b16 %v1612
        %v2706 = vunpack.c.l.b16 %v1613
        %v2707 = vunpack.c.h.b16 %v1613
        %v2708 = vunpack.c.l.b16 %v1614
        %v2709 = vunpack.c.h.b16 %v1614
        %v2710 = vunpack.c.l.b16 %v1615
        %v2711 = vunpack.c.h.b16 %v1615
        %v2712 = vunpack.c.l.b16 %v1616
        %v2713 = vunpack.c.h.b16 %v1616
        %v2714 = vunpack.c.l.b16 %v1617
        %v2715 = vunpack.c.h.b16 %v1617
        %v2716 = vunpack.c.l.b16 %v1618
        %v2717 = vunpack.c.h.b16 %v1618
        %v2718 = vunpack.c.l.b16 %v1619
        %v2719 = vunpack.c.h.b16 %v1619
        %v2720 = vunpack.c.l.b16 %v1620
        %v2721 = vunpack.c.h.b16 %v1620
        %v2722 = vunpack.c.l.b16 %v1621
        %v2723 = vunpack.c.h.b16 %v1621
        %v2724 = vunpack.c.l.b16 %v1622
        %v2725 = vunpack.c.h.b16 %v1622
        %v2726 = vunpack.c.l.b16 %v1623
        %v2727 = vunpack.c.h.b16 %v1623
        %v2728 = vunpack.c.l.b16 %v1624
        %v2729 = vunpack.c.h.b16 %v1624
        %v2730 = vunpack.c.l.b16 %v1625
        %v2731 = vunpack.c.h.b16 %v1625
        %v2732 = vunpack.c.l.b16 %v1626
        %v2733 = vunpack.c.h.b16 %v1626
        %v2734 = vunpack.c.l.b16 %v1627
        %v2735 = vunpack.c.h.b16 %v1627
        %v2736 = vunpack.c.l.b16 %v1628
        %v2737 = vunpack.c.h.b16 %v1628
        %v2738 = vunpack.c.l.b16 %v1629
        %v2739 = vunpack.c.h.b16 %v1629
        %v2740 = vunpack.c.l.b16 %v1630
        %v2741 = vunpack.c.h.b16 %v1630
        %v2742 = vunpack.c.l.b16 %v1631
        %v2743 = vunpack.c.h.b16 %v1631
        %v2744 = vunpack.c.l.b16 %v1632
        %v2745 = vunpack.c.h.b16 %v1632
        %v2746 = vunpack.c.l.b16 %v1633
        %v2747 = vunpack.c.h.b16 %v1633
        %v2748 = vunpack.c.l.b16 %v1634
        %v2749 = vunpack.c.h.b16 %v1634
        %v2750 = vunpack.c.l.b16 %v1635
        %v2751 = vunpack.c.h.b16 %v1635
        %v2752 = vunpack.c.l.b16 %v1636
        %v2753 = vunpack.c.h.b16 %v1636
        %v2754 = vunpack.c.l.b16 %v1637
        %v2755 = vunpack.c.h.b16 %v1637
        %v2756 = vunpack.c.l.b16 %v1638
        %v2757 = vunpack.c.h.b16 %v1638
        %v2758 = vunpack.c.l.b16 %v1639
        %v2759 = vunpack.c.h.b16 %v1639
        %v2760 = vunpack.c.l.b16 %v1640
        %v2761 = vunpack.c.h.b16 %v1640
        %v2762 = vunpack.c.l.b16 %v1641
        %v2763 = vunpack.c.h.b16 %v1641
        %v2764 = vunpack.c.l.b16 %v1642
        %v2765 = vunpack.c.h.b16 %v1642
        %v2766 = vunpack.c.l.b16 %v1643
        %v2767 = vunpack.c.h.b16 %v1643
        %v2768 = vunpack.c.l.b16 %v1644
        %v2769 = vunpack.c.h.b16 %v1644
        %v2770 = vunpack.c.l.b16 %v1645
        %v2771 = vunpack.c.h.b16 %v1645
        %v2772 = vunpack.c.l.b16 %v1646
        %v2773 = vunpack.c.h.b16 %v1646
        %v2774 = vunpack.c.l.b16 %v1647
        %v2775 = vunpack.c.h.b16 %v1647
        %v2776 = vunpack.c.l.b16 %v1648
        %v2777 = vunpack.c.h.b16 %v1648
        %v2778 = vunpack.c.l.b16 %v1649
        %v2779 = vunpack.c.h.b16 %v1649
        %v2780 = vunpack.c.l.b16 %v1650
        %v2781 = vunpack.c.h.b16 %v1650
        %v2782 = vunpack.c.l.b16 %v1651
        %v2783 = vunpack.c.h.b16 %v1651
        %v2784 = vunpack.c.l.b16 %v1652
        %v2785 = vunpack.c.h.b16 %v1652
        %v2786 = vunpack.c.l.b16 %v1653
        %v2787 = vunpack.c.h.b16 %v1653
        %v2788 = vunpack.c.l.b16 %v1654
        %v2789 = vunpack.c.h.b16 %v1654
        %v2790 = vunpack.c.l.b16 %v1655
        %v2791 = vunpack.c.h.b16 %v1655
        %v2792 = vunpack.c.l.b16 %v1656
        %v2793 = vunpack.c.h.b16 %v1656
        %v2794 = vunpack.c.l.b16 %v1657
        %v2795 = vunpack.c.h.b16 %v1657
        %v2796 = vunpack.c.l.b16 %v1658
        %v2797 = vunpack.c.h.b16 %v1658
        %v2798 = vunpack.c.l.b16 %v1659
        %v2799 = vunpack.c.h.b16 %v1659
        %v2800 = vunpack.c.l.b16 %v1660
        %v2801 = vunpack.c.h.b16 %v1660
        %v2802 = vunpack.c.l.b16 %v1661
        %v2803 = vunpack.c.h.b16 %v1661
        %v2804 = vunpack.c.l.b16 %v1662
        %v2805 = vunpack.c.h.b16 %v1662
        %v2806 = vunpack.c.l.b16 %v1663
        %v2807 = vunpack.c.h.b16 %v1663
        %v2808 = vunpack.c.l.b16 %v1664
        %v2809 = vunpack.c.h.b16 %v1664
        %v2810 = vunpack.c.l.b16 %v1665
        %v2811 = vunpack.c.h.b16 %v1665
        %v2812 = vunpack.c.l.b16 %v1666
        %v2813 = vunpack.c.h.b16 %v1666
        %v2814 = vunpack.c.l.b16 %v1667
        %v2815 = vunpack.c.h.b16 %v1667
        %v2816 = vunpack.c.l.b16 %v1668
        %v2817 = vunpack.c.h.b16 %v1668
        %v2818 = vunpack.c.l.b16 %v1669
        %v2819 = vunpack.c.h.b16 %v1669
        %v2820 = vunpack.c.l.b16 %v1670
        %v2821 = vunpack.c.h.b16 %v1670
        %v2822 = vunpack.c.l.b16 %v1671
        %v2823 = vunpack.c.h.b16 %v1671
        %v2824 = vunpack.c.l.b16 %v1672
        %v2825 = vunpack.c.h.b16 %v1672
        %v2826 = vunpack.c.l.b16 %v1673
        %v2827 = vunpack.c.h.b16 %v1673
        %v2828 = vunpack.c.l.b16 %v1674
        %v2829 = vunpack.c.h.b16 %v1674
        %v2830 = vunpack.c.l.b16 %v1675
        %v2831 = vunpack.c.h.b16 %v1675
        %v2832 = vunpack.c.l.b16 %v1676
        %v2833 = vunpack.c.h.b16 %v1676
        %v2834 = vunpack.c.l.b16 %v1677
        %v2835 = vunpack.c.h.b16 %v1677
        %v2836 = vunpack.c.l.b16 %v1678
        %v2837 = vunpack.c.h.b16 %v1678
        %v2838 = vunpack.c.l.b16 %v1679
        %v2839 = vunpack.c.h.b16 %v1679
        %v2840 = vunpack.c.l.b16 %v1680
        %v2841 = vunpack.c.h.b16 %v1680
        %v2842 = vunpack.c.l.b16 %v1681
        %v2843 = vunpack.c.h.b16 %v1681
        %v2844 = vunpack.c.l.b16 %v1682
        %v2845 = vunpack.c.h.b16 %v1682
        %v2846 = vunpack.c.l.b16 %v1683
        %v2847 = vunpack.c.h.b16 %v1683
        %v2848 = vunpack.c.l.b16 %v1684
        %v2849 = vunpack.c.h.b16 %v1684
        %v2850 = vunpack.c.l.b16 %v1685
        %v2851 = vunpack.c.h.b16 %v1685
        %v2852 = vunpack.c.l.b16 %v1686
        %v2853 = vunpack.c.h.b16 %v1686
        %v2854 = vunpack.c.l.b16 %v1687
        %v2855 = vunpack.c.h.b16 %v1687
        %v2856 = vunpack.c.l.b16 %v1688
        %v2857 = vunpack.c.h.b16 %v1688
        %v2858 = vunpack.c.l.b16 %v1689
        %v2859 = vunpack.c.h.b16 %v1689
        %v2860 = vunpack.c.l.b16 %v1690
        %v2861 = vunpack.c.h.b16 %v1690
        %v2862 = vunpack.c.l.b16 %v1691
        %v2863 = vunpack.c.h.b16 %v1691
        %v2864 = vunpack.c.l.b16 %v1692
        %v2865 = vunpack.c.h.b16 %v1692
        %v2866 = vunpack.c.l.b16 %v1693
        %v2867 = vunpack.c.h.b16 %v1693
        %v2868 = vunpack.c.l.b16 %v1694
        %v2869 = vunpack.c.h.b16 %v1694
        %v2870 = vunpack.c.l.b16 %v1695
        %v2871 = vunpack.c.h.b16 %v1695
        %v2872 = vunpack.c.l.b16 %v1696
        %v2873 = vunpack.c.h.b16 %v1696
        %v2874 = vunpack.c.l.b16 %v1697
        %v2875 = vunpack.c.h.b16 %v1697
        %v2876 = vunpack.c.l.b16 %v1698
        %v2877 = vunpack.c.h.b16 %v1698
        %v2878 = vunpack.c.l.b16 %v1699
        %v2879 = vunpack.c.h.b16 %v1699
        %v2880 = vunpack.c.l.b16 %v1700
        %v2881 = vunpack.c.h.b16 %v1700
        %v2882 = vunpack.c.l.b16 %v1701
        %v2883 = vunpack.c.h.b16 %v1701
        %v2884 = vunpack.c.l.b16 %v1702
        %v2885 = vunpack.c.h.b16 %v1702
        %v2886 = vunpack.c.l.b16 %v1703
        %v2887 = vunpack.c.h.b16 %v1703
        %v2888 = vunpack.c.l.b16 %v1704
        %v2889 = vunpack.c.h.b16 %v1704
        %v2890 = vunpack.c.l.b16 %v1705
        %v2891 = vunpack.c.h.b16 %v1705
        %v2892 = vunpack.c.l.b16 %v1706
        %v2893 = vunpack.c.h.b16 %v1706
        %v2894 = vunpack.c.l.b16 %v1707
        %v2895 = vunpack.c.h.b16 %v1707
        %v2896 = vunpack.c.l.b16 %v1708
        %v2897 = vunpack.c.h.b16 %v1708
        %v2898 = vunpack.c.l.b16 %v1709
        %v2899 = vunpack.c.h.b16 %v1709
        %v2900 = vunpack.c.l.b16 %v1710
        %v2901 = vunpack.c.h.b16 %v1710
        %v2902 = vunpack.c.l.b16 %v1711
        %v2903 = vunpack.c.h.b16 %v1711
        %v2904 = vunpack.c.l.b16 %v1712
        %v2905 = vunpack.c.h.b16 %v1712
        %v2906 = vunpack.c.l.b16 %v1713
        %v2907 = vunpack.c.h.b16 %v1713
        %v2908 = vunpack.c.l.b16 %v1714
        %v2909 = vunpack.c.h.b16 %v1714
        %v2910 = vunpack.c.l.b16 %v1715
        %v2911 = vunpack.c.h.b16 %v1715
        %v2912 = vunpack.c.l.b16 %v1716
        %v2913 = vunpack.c.h.b16 %v1716
        %v2914 = vunpack.c.l.b16 %v1717
        %v2915 = vunpack.c.h.b16 %v1717
        %v2916 = vunpack.c.l.b16 %v1718
        %v2917 = vunpack.c.h.b16 %v1718
        %v2918 = vunpack.c.l.b16 %v1719
        %v2919 = vunpack.c.h.b16 %v1719
        %v2920 = vunpack.c.l.b16 %v1720
        %v2921 = vunpack.c.h.b16 %v1720
        %v2922 = vunpack.c.l.b16 %v1721
        %v2923 = vunpack.c.h.b16 %v1721
        %v2924 = vunpack.c.l.b16 %v1722
        %v2925 = vunpack.c.h.b16 %v1722
        %v2926 = vunpack.c.l.b16 %v1723
        %v2927 = vunpack.c.h.b16 %v1723
        %v2928 = vunpack.c.l.b16 %v1724
        %v2929 = vunpack.c.h.b16 %v1724
        %v2930 = vunpack.c.l.b16 %v1725
        %v2931 = vunpack.c.h.b16 %v1725
        %v2932 = vunpack.c.l.b16 %v1726
        %v2933 = vunpack.c.h.b16 %v1726
        %v2934 = vunpack.c.l.b16 %v1727
        %v2935 = vunpack.c.h.b16 %v1727
        %v2936 = vunpack.c.l.b16 %v1728
        %v2937 = vunpack.c.h.b16 %v1728
        %v2938 = vunpack.c.l.b16 %v1729
        %v2939 = vunpack.c.h.b16 %v1729
        %v2940 = vunpack.c.l.b16 %v1730
        %v2941 = vunpack.c.h.b16 %v1730
        %v2942 = vunpack.c.l.b16 %v1731
        %v2943 = vunpack.c.h.b16 %v1731
        %v2944 = vunpack.c.l.b16 %v1732
        %v2945 = vunpack.c.h.b16 %v1732
        %v2946 = vunpack.c.l.b16 %v1733
        %v2947 = vunpack.c.h.b16 %v1733
        %v2948 = vunpack.c.l.b16 %v1734
        %v2949 = vunpack.c.h.b16 %v1734
        %v2950 = vunpack.c.l.b16 %v1735
        %v2951 = vunpack.c.h.b16 %v1735
        %v2952 = vunpack.c.l.b16 %v1736
        %v2953 = vunpack.c.h.b16 %v1736
        %v2954 = vunpack.c.l.b16 %v1737
        %v2955 = vunpack.c.h.b16 %v1737
        %v2956 = vunpack.c.l.b16 %v1738
        %v2957 = vunpack.c.h.b16 %v1738
        %v2958 = vunpack.c.l.b16 %v1739
        %v2959 = vunpack.c.h.b16 %v1739
        %v2960 = vunpack.c.l.b16 %v1740
        %v2961 = vunpack.c.h.b16 %v1740
        %v2962 = vunpack.c.l.b16 %v1741
        %v2963 = vunpack.c.h.b16 %v1741
        %v2964 = vunpack.c.l.b16 %v1742
        %v2965 = vunpack.c.h.b16 %v1742
        %v2966 = vunpack.c.l.b16 %v1743
        %v2967 = vunpack.c.h.b16 %v1743
        %v2968 = vunpack.c.l.b16 %v1744
        %v2969 = vunpack.c.h.b16 %v1744
        %v2970 = vunpack.c.l.b16 %v1745
        %v2971 = vunpack.c.h.b16 %v1745
        %v2972 = vunpack.c.l.b16 %v1746
        %v2973 = vunpack.c.h.b16 %v1746
        %v2974 = vunpack.c.l.b16 %v1747
        %v2975 = vunpack.c.h.b16 %v1747
        %v2976 = vunpack.c.l.b16 %v1748
        %v2977 = vunpack.c.h.b16 %v1748
        %v2978 = vunpack.c.l.b16 %v1749
        %v2979 = vunpack.c.h.b16 %v1749
        %v2980 = vunpack.c.l.b16 %v1750
        %v2981 = vunpack.c.h.b16 %v1750
        %v2982 = vunpack.c.l.b16 %v1751
        %v2983 = vunpack.c.h.b16 %v1751
        %v2984 = vunpack.c.l.b16 %v1752
        %v2985 = vunpack.c.h.b16 %v1752
        %v2986 = vunpack.c.l.b16 %v1753
        %v2987 = vunpack.c.h.b16 %v1753
        %v2988 = vunpack.c.l.b16 %v1754
        %v2989 = vunpack.c.h.b16 %v1754
        %v2990 = vunpack.c.l.b16 %v1755
        %v2991 = vunpack.c.h.b16 %v1755
        %v2992 = vunpack.c.l.b16 %v1756
        %v2993 = vunpack.c.h.b16 %v1756
        %v2994 = vunpack.c.l.b16 %v1757
        %v2995 = vunpack.c.h.b16 %v1757
        %v2996 = vunpack.c.l.b16 %v1758
        %v2997 = vunpack.c.h.b16 %v1758
        %v2998 = vunpack.c.l.b16 %v1759
        %v2999 = vunpack.c.h.b16 %v1759
        %v3000 = vunpack.c.l.b16 %v1760
        %v3001 = vunpack.c.h.b16 %v1760
        %v3002 = vunpack.c.l.b16 %v1761
        %v3003 = vunpack.c.h.b16 %v1761
        %v3004 = vunpack.c.l.b16 %v1762
        %v3005 = vunpack.c.h.b16 %v1762
        %v3006 = vunpack.c.l.b16 %v1763
        %v3007 = vunpack.c.h.b16 %v1763
        %v3008 = vunpack.c.l.b16 %v1764
        %v3009 = vunpack.c.h.b16 %v1764
        %v3010 = vunpack.c.l.b16 %v1765
        %v3011 = vunpack.c.h.b16 %v1765
        %v3012 = vunpack.c.l.b16 %v1766
        %v3013 = vunpack.c.h.b16 %v1766
        %v3014 = vunpack.c.l.b16 %v1767
        %v3015 = vunpack.c.h.b16 %v1767
        %v3016 = vunpack.c.l.b16 %v1768
        %v3017 = vunpack.c.h.b16 %v1768
        %v3018 = vunpack.c.l.b16 %v1769
        %v3019 = vunpack.c.h.b16 %v1769
        %v3020 = vunpack.c.l.b16 %v1770
        %v3021 = vunpack.c.h.b16 %v1770
        %v3022 = vunpack.c.l.b16 %v1771
        %v3023 = vunpack.c.h.b16 %v1771
        %v3024 = vunpack.c.l.b16 %v1772
        %v3025 = vunpack.c.h.b16 %v1772
        %v3026 = vunpack.c.l.b16 %v1773
        %v3027 = vunpack.c.h.b16 %v1773
        %v3028 = vunpack.c.l.b16 %v1774
        %v3029 = vunpack.c.h.b16 %v1774
        %v3030 = vunpack.c.l.b16 %v1775
        %v3031 = vunpack.c.h.b16 %v1775
        %v3032 = vunpack.c.l.b16 %v1776
        %v3033 = vunpack.c.h.b16 %v1776
        %v3034 = vunpack.c.l.b16 %v1777
        %v3035 = vunpack.c.h.b16 %v1777
        %v3036 = vunpack.c.l.b16 %v1778
        %v3037 = vunpack.c.h.b16 %v1778
        %v3038 = vunpack.c.l.b16 %v1779
        %v3039 = vunpack.c.h.b16 %v1779
        %v3040 = vunpack.c.l.b16 %v1780
        %v3041 = vunpack.c.h.b16 %v1780
        %v3042 = vunpack.c.l.b16 %v1781
        %v3043 = vunpack.c.h.b16 %v1781
        %v3044 = vunpack.c.l.b16 %v1782
        %v3045 = vunpack.c.h.b16 %v1782
        %v3046 = vunpack.c.l.b16 %v1783
        %v3047 = vunpack.c.h.b16 %v1783
        %v3048 = vunpack.c.l.b16 %v1784
        %v3049 = vunpack.c.h.b16 %v1784
        %v3050 = vunpack.c.l.b16 %v1785
        %v3051 = vunpack.c.h.b16 %v1785
        %v3052 = vunpack.c.l.b16 %v1786
        %v3053 = vunpack.c.h.b16 %v1786
        %v3054 = vunpack.c.l.b16 %v1787
        %v3055 = vunpack.c.h.b16 %v1787
        %v3056 = vunpack.c.l.b16 %v1788
        %v3057 = vunpack.c.h.b16 %v1788
        %v3058 = vunpack.c.l.b16 %v1789
        %v3059 = vunpack.c.h.b16 %v1789
        %v3060 = vunpack.c.l.b16 %v1790
        %v3061 = vunpack.c.h.b16 %v1790
        %v3062 = vunpack.c.l.b16 %v1791
        %v3063 = vunpack.c.h.b16 %v1791
        %v3064 = vunpack.c.l.b16 %v1792
        %v3065 = vunpack.c.h.b16 %v1792
        %v3066 = vunpack.c.l.b16 %v1793
        %v3067 = vunpack.c.h.b16 %v1793
        %v3068 = vunpack.c.l.b16 %v1794
        %v3069 = vunpack.c.h.b16 %v1794
        %v3070 = vunpack.c.l.b16 %v1795
        %v3071 = vunpack.c.h.b16 %v1795
        %v3072 = vunpack.c.l.b16 %v1796
        %v3073 = vunpack.c.h.b16 %v1796
        %v3074 = vunpack.c.l.b16 %v1797
        %v3075 = vunpack.c.h.b16 %v1797
        %v3076 = vunpack.c.l.b16 %v1798
        %v3077 = vunpack.c.h.b16 %v1798
        %v3078 = vunpack.c.l.b16 %v1799
        %v3079 = vunpack.c.h.b16 %v1799
        %v3080 = vunpack.c.l.b16 %v1800
        %v3081 = vunpack.c.h.b16 %v1800
        %v3082 = vunpack.c.l.b16 %v1801
        %v3083 = vunpack.c.h.b16 %v1801
        %v3084 = vunpack.c.l.b16 %v1802
        %v3085 = vunpack.c.h.b16 %v1802
        %v3086 = vunpack.c.l.b16 %v1803
        %v3087 = vunpack.c.h.b16 %v1803
        %v3088 = vunpack.c.l.b16 %v1804
        %v3089 = vunpack.c.h.b16 %v1804
        %v3090 = vunpack.c.l.b16 %v1805
        %v3091 = vunpack.c.h.b16 %v1805
        %v3092 = vunpack.c.l.b16 %v1806
        %v3093 = vunpack.c.h.b16 %v1806
        %v3094 = vunpack.c.l.b16 %v1807
        %v3095 = vunpack.c.h.b16 %v1807
        %v3096 = vunpack.c.l.b16 %v1808
        %v3097 = vunpack.c.h.b16 %v1808
        %v3098 = vunpack.c.l.b16 %v1809
        %v3099 = vunpack.c.h.b16 %v1809
        %v3100 = vunpack.c.l.b16 %v1810
        %v3101 = vunpack.c.h.b16 %v1810
        %v3102 = vunpack.c.l.b16 %v1811
        %v3103 = vunpack.c.h.b16 %v1811
        %v3104 = vunpack.c.l.b16 %v1812
        %v3105 = vunpack.c.h.b16 %v1812
        %v3106 = vunpack.c.l.b16 %v1813
        %v3107 = vunpack.c.h.b16 %v1813
        %v3108 = vunpack.c.l.b16 %v1814
        %v3109 = vunpack.c.h.b16 %v1814
        %v3110 = vunpack.c.l.b16 %v1815
        %v3111 = vunpack.c.h.b16 %v1815
        %v3112 = vunpack.c.l.b16 %v1816
        %v3113 = vunpack.c.h.b16 %v1816
        %v3114 = vunpack.c.l.b16 %v1817
        %v3115 = vunpack.c.h.b16 %v1817
        %v3116 = vunpack.c.l.b16 %v1818
        %v3117 = vunpack.c.h.b16 %v1818
        %v3118 = vunpack.c.l.b16 %v1819
        %v3119 = vunpack.c.h.b16 %v1819
        %v3120 = vunpack.c.l.b16 %v1820
        %v3121 = vunpack.c.h.b16 %v1820
        %v3122 = vunpack.c.l.b16 %v1821
        %v3123 = vunpack.c.h.b16 %v1821
        %v3124 = vunpack.c.l.b16 %v1822
        %v3125 = vunpack.c.h.b16 %v1822
        %v3126 = vunpack.c.l.b16 %v1823
        %v3127 = vunpack.c.h.b16 %v1823
        %v3128 = vunpack.c.l.b16 %v1824
        %v3129 = vunpack.c.h.b16 %v1824
        %v3130 = vunpack.c.l.b16 %v1825
        %v3131 = vunpack.c.h.b16 %v1825
        %v3132 = vunpack.c.l.b16 %v1826
        %v3133 = vunpack.c.h.b16 %v1826
        %v3134 = vunpack.c.l.b16 %v1827
        %v3135 = vunpack.c.h.b16 %v1827
        %v3136 = vunpack.c.l.b16 %v1828
        %v3137 = vunpack.c.h.b16 %v1828
        %v3138 = vunpack.c.l.b16 %v1829
        %v3139 = vunpack.c.h.b16 %v1829
        %v3140 = vunpack.c.l.b16 %v1830
        %v3141 = vunpack.c.h.b16 %v1830
        %v3142 = vunpack.c.l.b16 %v1831
        %v3143 = vunpack.c.h.b16 %v1831
        %v3144 = vunpack.c.l.b16 %v1832
        %v3145 = vunpack.c.h.b16 %v1832
        %v3146 = vunpack.c.l.b16 %v1833
        %v3147 = vunpack.c.h.b16 %v1833
        %v3148 = vunpack.c.l.b16 %v1834
        %v3149 = vunpack.c.h.b16 %v1834
        %v3150 = vunpack.c.l.b16 %v1835
        %v3151 = vunpack.c.h.b16 %v1835
        %v3152 = vunpack.c.l.b16 %v1836
        %v3153 = vunpack.c.h.b16 %v1836
        %v3154 = vunpack.c.l.b16 %v1837
        %v3155 = vunpack.c.h.b16 %v1837
        %v3156 = vunpack.c.l.b16 %v1838
        %v3157 = vunpack.c.h.b16 %v1838
        %v3158 = vunpack.c.l.b16 %v1839
        %v3159 = vunpack.c.h.b16 %v1839
        %v3160 = vunpack.c.l.b16 %v1840
        %v3161 = vunpack.c.h.b16 %v1840
        %v3162 = vunpack.c.l.b16 %v1841
        %v3163 = vunpack.c.h.b16 %v1841
        %v3164 = vunpack.c.l.b16 %v1842
        %v3165 = vunpack.c.h.b16 %v1842
        %v3166 = vunpack.c.l.b16 %v1843
        %v3167 = vunpack.c.h.b16 %v1843
        %v3168 = vunpack.c.l.b16 %v1844
        %v3169 = vunpack.c.h.b16 %v1844
        %v3170 = vunpack.c.l.b16 %v1845
        %v3171 = vunpack.c.h.b16 %v1845
        %v3172 = vunpack.c.l.b16 %v1846
        %v3173 = vunpack.c.h.b16 %v1846
        %v3174 = vunpack.c.l.b16 %v1847
        %v3175 = vunpack.c.h.b16 %v1847
        %v3176 = vunpack.c.l.b16 %v1848
        %v3177 = vunpack.c.h.b16 %v1848
        %v3178 = vunpack.c.l.b16 %v1849
        %v3179 = vunpack.c.h.b16 %v1849
        %v3180 = vunpack.c.l.b16 %v1850
        %v3181 = vunpack.c.h.b16 %v1850
        %v3182 = vunpack.c.l.b16 %v1851
        %v3183 = vunpack.c.h.b16 %v1851
        %v3184 = vunpack.c.l.b16 %v1852
        %v3185 = vunpack.c.h.b16 %v1852
        %v3186 = vunpack.c.l.b16 %v1853
        %v3187 = vunpack.c.h.b16 %v1853
        %v3188 = vunpack.c.l.b16 %v1854
        %v3189 = vunpack.c.h.b16 %v1854
        %v3190 = vunpack.c.l.b16 %v1855
        %v3191 = vunpack.c.h.b16 %v1855
        %v3192 = vunpack.c.l.b16 %v1856
        %v3193 = vunpack.c.h.b16 %v1856
        %v3194 = vunpack.c.l.b16 %v1857
        %v3195 = vunpack.c.h.b16 %v1857
        %v3196 = vunpack.c.l.b16 %v1858
        %v3197 = vunpack.c.h.b16 %v1858
        %v3198 = vunpack.c.l.b16 %v1859
        %v3199 = vunpack.c.h.b16 %v1859
        %v3200 = vunpack.c.l.b16 %v1860
        %v3201 = vunpack.c.h.b16 %v1860
        %v3202 = vunpack.c.l.b16 %v1861
        %v3203 = vunpack.c.h.b16 %v1861
        %v3204 = vunpack.c.l.b16 %v1862
        %v3205 = vunpack.c.h.b16 %v1862
        %v3206 = vunpack.c.l.b16 %v1863
        %v3207 = vunpack.c.h.b16 %v1863
        %v3208 = vunpack.c.l.b16 %v1864
        %v3209 = vunpack.c.h.b16 %v1864
        %v3210 = vunpack.c.l.b16 %v1865
        %v3211 = vunpack.c.h.b16 %v1865
        %v3212 = vunpack.c.l.b16 %v1866
        %v3213 = vunpack.c.h.b16 %v1866
        %v3214 = vunpack.c.l.b16 %v1867
        %v3215 = vunpack.c.h.b16 %v1867
        %v3216 = vunpack.c.l.b16 %v1868
        %v3217 = vunpack.c.h.b16 %v1868
        %v3218 = vunpack.c.l.b16 %v1869
        %v3219 = vunpack.c.h.b16 %v1869
        %v3220 = vunpack.c.l.b16 %v1870
        %v3221 = vunpack.c.h.b16 %v1870
        %v3222 = vunpack.c.l.b16 %v1871
        %v3223 = vunpack.c.h.b16 %v1871
        %v3224 = vunpack.c.l.b16 %v1872
        %v3225 = vunpack.c.h.b16 %v1872
        %v3226 = vunpack.c.l.b16 %v1873
        %v3227 = vunpack.c.h.b16 %v1873
        %v3228 = vunpack.c.l.b16 %v1874
        %v3229 = vunpack.c.h.b16 %v1874
        %v3230 = vunpack.c.l.b16 %v1875
        %v3231 = vunpack.c.h.b16 %v1875
        %v3232 = vunpack.c.l.b16 %v1876
        %v3233 = vunpack.c.h.b16 %v1876
        %v3234 = vunpack.c.l.b16 %v1877
        %v3235 = vunpack.c.h.b16 %v1877
        %v3236 = vunpack.c.l.b16 %v1878
        %v3237 = vunpack.c.h.b16 %v1878
        %v3238 = vunpack.c.l.b16 %v1879
        %v3239 = vunpack.c.h.b16 %v1879
        %v3240 = vunpack.c.l.b16 %v1880
        %v3241 = vunpack.c.h.b16 %v1880
        %v3242 = vunpack.c.l.b16 %v1881
        %v3243 = vunpack.c.h.b16 %v1881
        %v3244 = vunpack.c.l.b16 %v1882
        %v3245 = vunpack.c.h.b16 %v1882
        %v3246 = vunpack.c.l.b16 %v1883
        %v3247 = vunpack.c.h.b16 %v1883
        %v3248 = vunpack.c.l.b16 %v1884
        %v3249 = vunpack.c.h.b16 %v1884
        %v3250 = vunpack.c.l.b16 %v1885
        %v3251 = vunpack.c.h.b16 %v1885
        %v3252 = vunpack.c.l.b16 %v1886
        %v3253 = vunpack.c.h.b16 %v1886
        %v3254 = vunpack.c.l.b16 %v1887
        %v3255 = vunpack.c.h.b16 %v1887
        %v3256 = vunpack.c.l.b16 %v1888
        %v3257 = vunpack.c.h.b16 %v1888
        %v3258 = vunpack.c.l.b16 %v1889
        %v3259 = vunpack.c.h.b16 %v1889
        %v3260 = vunpack.c.l.b16 %v1890
        %v3261 = vunpack.c.h.b16 %v1890
        %v3262 = vunpack.c.l.b16 %v1891
        %v3263 = vunpack.c.h.b16 %v1891
        %v3264 = vunpack.c.l.b16 %v1892
        %v3265 = vunpack.c.h.b16 %v1892
        %v3266 = vunpack.c.l.b16 %v1893
        %v3267 = vunpack.c.h.b16 %v1893
        %v3268 = vunpack.c.l.b16 %v1894
        %v3269 = vunpack.c.h.b16 %v1894
        %v3270 = vunpack.c.l.b16 %v1895
        %v3271 = vunpack.c.h.b16 %v1895
        %v3272 = vunpack.c.l.b16 %v1896
        %v3273 = vunpack.c.h.b16 %v1896
        %v3274 = vunpack.c.l.b16 %v1897
        %v3275 = vunpack.c.h.b16 %v1897
        %v3276 = vunpack.c.l.b16 %v1898
        %v3277 = vunpack.c.h.b16 %v1898
        %v3278 = vunpack.c.l.b16 %v1899
        %v3279 = vunpack.c.h.b16 %v1899
        %v3280 = vunpack.c.l.b16 %v1900
        %v3281 = vunpack.c.h.b16 %v1900
        %v3282 = vunpack.c.l.b16 %v1901
        %v3283 = vunpack.c.h.b16 %v1901
        %v3284 = vunpack.c.l.b16 %v1902
        %v3285 = vunpack.c.h.b16 %v1902
        %v3286 = vunpack.c.l.b16 %v1903
        %v3287 = vunpack.c.h.b16 %v1903
        %v3288 = vunpack.c.l.b16 %v1904
        %v3289 = vunpack.c.h.b16 %v1904
        %v3290 = vunpack.c.l.b16 %v1905
        %v3291 = vunpack.c.h.b16 %v1905
        %v3292 = vunpack.c.l.b16 %v1906
        %v3293 = vunpack.c.h.b16 %v1906
        %v3294 = vunpack.c.l.b16 %v1907
        %v3295 = vunpack.c.h.b16 %v1907
        %v3296 = vunpack.c.l.b16 %v1908
        %v3297 = vunpack.c.h.b16 %v1908
        %v3298 = vunpack.c.l.b16 %v1909
        %v3299 = vunpack.c.h.b16 %v1909
        %v3300 = vunpack.c.l.b16 %v1910
        %v3301 = vunpack.c.h.b16 %v1910
        %v3302 = vunpack.c.l.b16 %v1911
        %v3303 = vunpack.c.h.b16 %v1911
        %v3304 = vunpack.c.l.b16 %v1912
        %v3305 = vunpack.c.h.b16 %v1912
        %v3306 = vunpack.c.l.b16 %v1913
        %v3307 = vunpack.c.h.b16 %v1913
        %v3308 = vunpack.c.l.b16 %v1914
        %v3309 = vunpack.c.h.b16 %v1914
        %v3310 = vunpack.c.l.b16 %v1915
        %v3311 = vunpack.c.h.b16 %v1915
        %v3312 = vunpack.c.l.b16 %v1916
        %v3313 = vunpack.c.h.b16 %v1916
        %v3314 = vunpack.c.l.b16 %v1917
        %v3315 = vunpack.c.h.b16 %v1917
        %v3316 = vunpack.c.l.b16 %v1918
        %v3317 = vunpack.c.h.b16 %v1918
        %v3318 = vunpack.c.l.b16 %v1919
        %v3319 = vunpack.c.h.b16 %v1919
        %v3320 = vunpack.c.l.b16 %v1920
        %v3321 = vunpack.c.h.b16 %v1920
        %v3322 = vunpack.c.l.b16 %v1921
        %v3323 = vunpack.c.h.b16 %v1921
        %v3324 = vunpack.c.l.b16 %v1922
        %v3325 = vunpack.c.h.b16 %v1922
        %v3326 = vunpack.c.l.b16 %v1923
        %v3327 = vunpack.c.h.b16 %v1923
        %v3328 = vunpack.c.l.b16 %v1924
        %v3329 = vunpack.c.h.b16 %v1924
        %v3330 = vunpack.c.l.b16 %v1925
        %v3331 = vunpack.c.h.b16 %v1925
        %v3332 = vunpack.c.l.b16 %v1926
        %v3333 = vunpack.c.h.b16 %v1926
        %v3334 = vunpack.c.l.b16 %v1927
        %v3335 = vunpack.c.h.b16 %v1927
        %v3336 = vunpack.c.l.b16 %v1928
        %v3337 = vunpack.c.h.b16 %v1928
        %v3338 = vunpack.c.l.b16 %v1929
        %v3339 = vunpack.c.h.b16 %v1929
        %v3340 = vunpack.c.l.b16 %v1930
        %v3341 = vunpack.c.h.b16 %v1930
        %v3342 = vunpack.c.l.b16 %v1931
        %v3343 = vunpack.c.h.b16 %v1931
        %v3344 = vunpack.c.l.b16 %v1932
        %v3345 = vunpack.c.h.b16 %v1932
        %v3346 = vunpack.c.l.b16 %v1933
        %v3347 = vunpack.c.h.b16 %v1933
        %v3348 = vunpack.c.l.b16 %v1934
        %v3349 = vunpack.c.h.b16 %v1934
        %v3350 = vunpack.c.l.b16 %v1935
        %v3351 = vunpack.c.h.b16 %v1935
        %v3352 = vunpack.c.l.b16 %v1936
        %v3353 = vunpack.c.h.b16 %v1936
        %v3354 = vunpack.c.l.b16 %v1937
        %v3355 = vunpack.c.h.b16 %v1937
        %v3356 = vunpack.c.l.b16 %v1938
        %v3357 = vunpack.c.h.b16 %v1938
        %v3358 = vunpack.c.l.b16 %v1939
        %v3359 = vunpack.c.h.b16 %v1939
        %v3360 = vunpack.c.l.b16 %v1940
        %v3361 = vunpack.c.h.b16 %v1940
        %v3362 = vunpack.c.l.b16 %v1941
        %v3363 = vunpack.c.h.b16 %v1941
        %v3364 = vunpack.c.l.b16 %v1942
        %v3365 = vunpack.c.h.b16 %v1942
        %v3366 = vunpack.c.l.b16 %v1943
        %v3367 = vunpack.c.h.b16 %v1943
        %v3368 = vunpack.c.l.b16 %v1944
        %v3369 = vunpack.c.h.b16 %v1944
        %v3370 = vunpack.c.l.b16 %v1945
        %v3371 = vunpack.c.h.b16 %v1945
        %v3372 = vunpack.c.l.b16 %v1946
        %v3373 = vunpack.c.h.b16 %v1946
        %v3374 = vunpack.c.l.b16 %v1947
        %v3375 = vunpack.c.h.b16 %v1947
        %v3376 = vunpack.c.l.b16 %v1948
        %v3377 = vunpack.c.h.b16 %v1948
        %v3378 = vunpack.c.l.b16 %v1949
        %v3379 = vunpack.c.h.b16 %v1949
        %v3380 = vunpack.c.l.b16 %v1950
        %v3381 = vunpack.c.h.b16 %v1950
        %v3382 = vunpack.c.l.b16 %v1951
        %v3383 = vunpack.c.h.b16 %v1951
        %v3384 = vunpack.c.l.b16 %v1952
        %v3385 = vunpack.c.h.b16 %v1952
        %v3386 = vunpack.c.l.b16 %v1953
        %v3387 = vunpack.c.h.b16 %v1953
        %v3388 = vunpack.c.l.b16 %v1954
        %v3389 = vunpack.c.h.b16 %v1954
        %v3390 = vunpack.c.l.b16 %v1955
        %v3391 = vunpack.c.h.b16 %v1955
        %v3392 = vunpack.c.l.b16 %v1956
        %v3393 = vunpack.c.h.b16 %v1956
        %v3394 = vunpack.c.l.b16 %v1957
        %v3395 = vunpack.c.h.b16 %v1957
        %v3396 = vunpack.c.l.b16 %v1958
        %v3397 = vunpack.c.h.b16 %v1958
        %v3398 = vunpack.c.l.b16 %v1959
        %v3399 = vunpack.c.h.b16 %v1959
        %v3400 = vunpack.c.l.b16 %v1960
        %v3401 = vunpack.c.h.b16 %v1960
        %v3402 = vunpack.c.l.b16 %v1961
        %v3403 = vunpack.c.h.b16 %v1961
        %v3404 = vunpack.c.l.b16 %v1962
        %v3405 = vunpack.c.h.b16 %v1962
        %v3406 = vunpack.c.l.b16 %v1963
        %v3407 = vunpack.c.h.b16 %v1963
        %v3408 = vunpack.c.l.b16 %v1964
        %v3409 = vunpack.c.h.b16 %v1964
        %v3410 = vunpack.c.l.b16 %v1965
        %v3411 = vunpack.c.h.b16 %v1965
        %v3412 = vunpack.c.l.b16 %v1966
        %v3413 = vunpack.c.h.b16 %v1966
        %v3414 = vunpack.c.l.b16 %v1967
        %v3415 = vunpack.c.h.b16 %v1967
        %v3416 = vunpack.c.l.b16 %v1968
        %v3417 = vunpack.c.h.b16 %v1968
        %v3418 = vunpack.c.l.b16 %v1969
        %v3419 = vunpack.c.h.b16 %v1969
        %v3420 = vunpack.c.l.b16 %v1970
        %v3421 = vunpack.c.h.b16 %v1970
        %v3422 = vunpack.c.l.b16 %v1971
        %v3423 = vunpack.c.h.b16 %v1971
        %v3424 = vunpack.c.l.b16 %v1972
        %v3425 = vunpack.c.h.b16 %v1972
        %v3426 = vunpack.c.l.b16 %v1973
        %v3427 = vunpack.c.h.b16 %v1973
        %v3428 = vunpack.c.l.b16 %v1974
        %v3429 = vunpack.c.h.b16 %v1974
        %v3430 = vunpack.c.l.b16 %v1975
        %v3431 = vunpack.c.h.b16 %v1975
        %v3432 = vunpack.c.l.b16 %v1976
        %v3433 = vunpack.c.h.b16 %v1976
        %v3434 = vunpack.c.l.b16 %v1977
        %v3435 = vunpack.c.h.b16 %v1977
        %v3436 = vunpack.c.l.b16 %v1978
        %v3437 = vunpack.c.h.b16 %v1978
        %v3438 = vunpack.c.l.b16 %v1979
        %v3439 = vunpack.c.h.b16 %v1979
        %v3440 = vunpack.c.l.b16 %v1980
        %v3441 = vunpack.c.h.b16 %v1980
        %v3442 = vunpack.c.l.b16 %v1981
        %v3443 = vunpack.c.h.b16 %v1981
        %v3444 = vunpack.c.l.b16 %v1982
        %v3445 = vunpack.c.h.b16 %v1982
        %v3446 = vunpack.c.l.b16 %v1983
        %v3447 = vunpack.c.h.b16 %v1983
        %v3448 = vunpack.c.l.b16 %v1984
        %v3449 = vunpack.c.h.b16 %v1984
        %v3450 = vunpack.c.l.b16 %v1985
        %v3451 = vunpack.c.h.b16 %v1985
        %v3452 = vunpack.c.l.b16 %v1986
        %v3453 = vunpack.c.h.b16 %v1986
        %v3454 = vunpack.c.l.b16 %v1987
        %v3455 = vunpack.c.h.b16 %v1987
        %v3456 = vunpack.c.l.b16 %v1988
        %v3457 = vunpack.c.h.b16 %v1988
        %v3458 = vunpack.c.l.b16 %v1989
        %v3459 = vunpack.c.h.b16 %v1989
        %v3460 = vunpack.c.l.b16 %v1990
        %v3461 = vunpack.c.h.b16 %v1990
        %v3462 = vunpack.c.l.b16 %v1991
        %v3463 = vunpack.c.h.b16 %v1991
        %v3464 = vunpack.c.l.b16 %v1992
        %v3465 = vunpack.c.h.b16 %v1992
        %v3466 = vunpack.c.l.b16 %v1993
        %v3467 = vunpack.c.h.b16 %v1993
        %v3468 = vunpack.c.l.b16 %v1994
        %v3469 = vunpack.c.h.b16 %v1994
        %v3470 = vunpack.c.l.b16 %v1995
        %v3471 = vunpack.c.h.b16 %v1995
        %v3472 = vunpack.c.l.b16 %v1996
        %v3473 = vunpack.c.h.b16 %v1996
        %v3474 = vunpack.c.l.b16 %v1997
        %v3475 = vunpack.c.h.b16 %v1997
        %v3476 = vunpack.c.l.b16 %v1998
        %v3477 = vunpack.c.h.b16 %v1998
        %v3478 = vunpack.c.l.b16 %v1999
        %v3479 = vunpack.c.h.b16 %v1999
        %v3480 = vunpack.c.l.b16 %v2000
        %v3481 = vunpack.c.h.b16 %v2000
        %v3482 = vunpack.c.l.b16 %v2001
        %v3483 = vunpack.c.h.b16 %v2001
        %v3484 = vunpack.c.l.b16 %v2002
        %v3485 = vunpack.c.h.b16 %v2002
        %v3486 = vunpack.c.l.b16 %v2003
        %v3487 = vunpack.c.h.b16 %v2003
        %v3488 = vunpack.c.l.b16 %v2004
        %v3489 = vunpack.c.h.b16 %v2004
        %v3490 = vunpack.c.l.b16 %v2005
        %v3491 = vunpack.c.h.b16 %v2005
        %v3492 = vunpack.c.l.b16 %v2006
        %v3493 = vunpack.c.h.b16 %v2006
        %v3494 = vunpack.c.l.b16 %v2007
        %v3495 = vunpack.c.h.b16 %v2007
        %v3496 = vunpack.c.l.b16 %v2008
        %v3497 = vunpack.c.h.b16 %v2008
        %v3498 = vunpack.c.l.b16 %v2009
        %v3499 = vunpack.c.h.b16 %v2009
        %v3500 = vunpack.c.l.b16 %v2010
        %v3501 = vunpack.c.h.b16 %v2010
        %v3502 = vunpack.c.l.b16 %v2011
        %v3503 = vunpack.c.h.b16 %v2011
        %v3504 = vunpack.c.l.b16 %v2012
        %v3505 = vunpack.c.h.b16 %v2012
        %v3506 = vunpack.c.l.b16 %v2013
        %v3507 = vunpack.c.h.b16 %v2013
        %v3508 = vunpack.c.l.b16 %v2014
        %v3509 = vunpack.c.h.b16 %v2014
        %v3510 = vunpack.c.l.b16 %v2015
        %v3511 = vunpack.c.h.b16 %v2015
        %v3512 = vunpack.c.l.b16 %v2016
        %v3513 = vunpack.c.h.b16 %v2016
        %v3514 = vunpack.c.l.b16 %v2017
        %v3515 = vunpack.c.h.b16 %v2017
        %v3516 = vunpack.c.l.b16 %v2018
        %v3517 = vunpack.c.h.b16 %v2018
        %v3518 = vunpack.c.l.b16 %v2019
        %v3519 = vunpack.c.h.b16 %v2019
        %v3520 = vunpack.c.l.b16 %v2020
        %v3521 = vunpack.c.h.b16 %v2020
        %v3522 = vunpack.c.l.b16 %v2021
        %v3523 = vunpack.c.h.b16 %v2021
        %v3524 = vunpack.c.l.b16 %v2022
        %v3525 = vunpack.c.h.b16 %v2022
        %v3526 = vunpack.c.l.b16 %v2023
        %v3527 = vunpack.c.h.b16 %v2023
        %v3528 = vunpack.c.l.b16 %v2024
        %v3529 = vunpack.c.h.b16 %v2024
        %v3530 = vunpack.c.l.b16 %v2025
        %v3531 = vunpack.c.h.b16 %v2025
        %v3532 = vunpack.c.l.b16 %v2026
        %v3533 = vunpack.c.h.b16 %v2026
        %v3534 = vunpack.c.l.b16 %v2027
        %v3535 = vunpack.c.h.b16 %v2027
        %v3536 = vunpack.c.l.b16 %v2028
        %v3537 = vunpack.c.h.b16 %v2028
        %v3538 = vunpack.c.l.b16 %v2029
        %v3539 = vunpack.c.h.b16 %v2029
        %v3540 = vunpack.c.l.b16 %v2030
        %v3541 = vunpack.c.h.b16 %v2030
        %v3542 = vunpack.c.l.b16 %v2031
        %v3543 = vunpack.c.h.b16 %v2031
        %v3544 = vunpack.c.l.b16 %v2032
        %v3545 = vunpack.c.h.b16 %v2032
        %v3546 = vunpack.c.l.b16 %v2033
        %v3547 = vunpack.c.h.b16 %v2033
        %v3548 = vunpack.c.l.b16 %v2034
        %v3549 = vunpack.c.h.b16 %v2034
        %v3550 = vunpack.c.l.b16 %v2035
        %v3551 = vunpack.c.h.b16 %v2035
        %v3552 = vunpack.c.l.b16 %v2036
        %v3553 = vunpack.c.h.b16 %v2036
        %v3554 = vunpack.c.l.b16 %v2037
        %v3555 = vunpack.c.h.b16 %v2037
        %v3556 = vunpack.c.l.b16 %v2038
        %v3557 = vunpack.c.h.b16 %v2038
        %v3558 = vunpack.c.l.b16 %v2039
        %v3559 = vunpack.c.h.b16 %v2039
        %v3560 = vunpack.c.l.b16 %v2040
        %v3561 = vunpack.c.h.b16 %v2040
        %v3562 = vunpack.c.l.b16 %v2041
        %v3563 = vunpack.c.h.b16 %v2041
        %v3564 = vunpack.c.l.b16 %v2042
        %v3565 = vunpack.c.h.b16 %v2042
        %v3566 = vunpack.c.l.b16 %v2043
        %v3567 = vunpack.c.h.b16 %v2043
        %v3568 = vunpack.c.l.b16 %v2044
        %v3569 = vunpack.c.h.b16 %v2044
        %v3570 = vunpack.c.l.b16 %v2045
        %v3571 = vunpack.c.h.b16 %v2045
        %v3572 = vunpack.c.l.b16 %v2046
        %v3573 = vunpack.c.h.b16 %v2046
        %v3574 = vunpack.c.l.b16 %v2047
        %v3575 = vunpack.c.h.b16 %v2047
        %v3576 = vunpack.c.l.b16 %v2048
        %v3577 = vunpack.c.h.b16 %v2048
        %v3578 = vunpack.c.l.b16 %v2049
        %v3579 = vunpack.c.h.b16 %v2049
        %v3580 = vunpack.c.l.b16 %v2050
        %v3581 = vunpack.c.h.b16 %v2050
        %v3582 = vunpack.c.l.b16 %v2051
        %v3583 = vunpack.c.h.b16 %v2051
        %v3584 = vunpack.c.l.b16 %v2052
        %v3585 = vunpack.c.h.b16 %v2052
        %v3586 = vunpack.c.l.b16 %v2053
        %v3587 = vunpack.c.h.b16 %v2053
        %v3588 = vunpack.c.l.b16 %v2054
        %v3589 = vunpack.c.h.b16 %v2054
        %v3590 = vunpack.c.l.b16 %v2055
        %v3591 = vunpack.c.h.b16 %v2055
        %v3592 = vunpack.c.l.b16 %v2056
        %v3593 = vunpack.c.h.b16 %v2056
        %v3594 = vunpack.c.l.b16 %v2057
        %v3595 = vunpack.c.h.b16 %v2057
        %v3596 = vunpack.c.l.b16 %v2058
        %v3597 = vunpack.c.h.b16 %v2058
        %v3598 = vunpack.c.l.b16 %v2059
        %v3599 = vunpack.c.h.b16 %v2059
        %v3600 = vunpack.c.l.b16 %v2060
        %v3601 = vunpack.c.h.b16 %v2060
        %v3602 = vunpack.c.l.b16 %v2061
        %v3603 = vunpack.c.h.b16 %v2061
        %v3604 = vunpack.c.l.b16 %v2062
        %v3605 = vunpack.c.h.b16 %v2062
        %v3606 = vunpack.c.l.b16 %v2063
        %v3607 = vunpack.c.h.b16 %v2063
        %v3608 = vunpack.c.l.b16 %v2064
        %v3609 = vunpack.c.h.b16 %v2064
        %v3610 = vunpack.c.l.b16 %v2065
        %v3611 = vunpack.c.h.b16 %v2065
        %v3612 = vunpack.c.l.b16 %v2066
        %v3613 = vunpack.c.h.b16 %v2066
        %v3614 = vunpack.c.l.b16 %v2067
        %v3615 = vunpack.c.h.b16 %v2067
        %v3616 = vunpack.c.l.b16 %v2068
        %v3617 = vunpack.c.h.b16 %v2068
        %v3618 = vunpack.c.l.b16 %v2069
        %v3619 = vunpack.c.h.b16 %v2069
        %v3620 = vunpack.c.l.b16 %v2070
        %v3621 = vunpack.c.h.b16 %v2070
        %v3622 = vunpack.c.l.b16 %v2071
        %v3623 = vunpack.c.h.b16 %v2071
        %v3624 = vunpack.c.l.b16 %v2072
        %v3625 = vunpack.c.h.b16 %v2072
        %v3626 = vunpack.c.l.b16 %v2073
        %v3627 = vunpack.c.h.b16 %v2073
        %v3628 = vunpack.c.l.b16 %v2074
        %v3629 = vunpack.c.h.b16 %v2074
        %v3630 = vunpack.c.l.b16 %v2075
        %v3631 = vunpack.c.h.b16 %v2075
        %v3632 = vunpack.c.l.b16 %v2076
        %v3633 = vunpack.c.h.b16 %v2076
        %v3634 = vunpack.c.l.b16 %v2077
        %v3635 = vunpack.c.h.b16 %v2077
        %v3636 = vunpack.c.l.b16 %v2078
        %v3637 = vunpack.c.h.b16 %v2078
        %v3638 = vunpack.c.l.b16 %v2079
        %v3639 = vunpack.c.h.b16 %v2079
        %v3640 = vunpack.c.l.b16 %v2080
        %v3641 = vunpack.c.h.b16 %v2080
        %v3642 = vunpack.c.l.b16 %v2081
        %v3643 = vunpack.c.h.b16 %v2081
        %v3644 = vunpack.c.l.b16 %v2082
        %v3645 = vunpack.c.h.b16 %v2082
        %v3646 = vunpack.c.l.b16 %v2083
        %v3647 = vunpack.c.h.b16 %v2083
        %v3648 = vpack.c.b16 %v2632, %v2624
        %v3649 = vpack.c.b16 %v2633, %v2625
        %v3650 = vpack.c.b16 %v2634, %v2626
        %v3651 = vpack.c.b16 %v2635, %v2627
        %v3652 = vpack.c.b16 %v2636, %v2628
        %v3653 = vpack.c.b16 %v2637, %v2629
        %v3654 = vpack.c.b16 %v2638, %v2630
        %v3655 = vpack.c.b16 %v2639, %v2631
        %v3656 = vpack.c.b16 %v2648, %v2640
        %v3657 = vpack.c.b16 %v2649, %v2641
        %v3658 = vpack.c.b16 %v2650, %v2642
        %v3659 = vpack.c.b16 %v2651, %v2643
        %v3660 = vpack.c.b16 %v2652, %v2644
        %v3661 = vpack.c.b16 %v2653, %v2645
        %v3662 = vpack.c.b16 %v2654, %v2646
        %v3663 = vpack.c.b16 %v2655, %v2647
        %v3664 = vpack.c.b16 %v2664, %v2656
        %v3665 = vpack.c.b16 %v2665, %v2657
        %v3666 = vpack.c.b16 %v2666, %v2658
        %v3667 = vpack.c.b16 %v2667, %v2659
        %v3668 = vpack.c.b16 %v2668, %v2660
        %v3669 = vpack.c.b16 %v2669, %v2661
        %v3670 = vpack.c.b16 %v2670, %v2662
        %v3671 = vpack.c.b16 %v2671, %v2663
        %v3672 = vpack.c.b16 %v2680, %v2672
        %v3673 = vpack.c.b16 %v2681, %v2673
        %v3674 = vpack.c.b16 %v2682, %v2674
        %v3675 = vpack.c.b16 %v2683, %v2675
        %v3676 = vpack.c.b16 %v2684, %v2676
        %v3677 = vpack.c.b16 %v2685, %v2677
        %v3678 = vpack.c.b16 %v2686, %v2678
        %v3679 = vpack.c.b16 %v2687, %v2679
        %v3680 = vpack.c.b16 %v2696, %v2688
        %v3681 = vpack.c.b16 %v2697, %v2689
        %v3682 = vpack.c.b16 %v2698, %v2690
        %v3683 = vpack.c.b16 %v2699, %v2691
        %v3684 = vpack.c.b16 %v2700, %v2692
        %v3685 = vpack.c.b16 %v2701, %v2693
        %v3686 = vpack.c.b16 %v2702, %v2694
        %v3687 = vpack.c.b16 %v2703, %v2695
        %v3688 = vpack.c.b16 %v2712, %v2704
        %v3689 = vpack.c.b16 %v2713, %v2705
        %v3690 = vpack.c.b16 %v2714, %v2706
        %v3691 = vpack.c.b16 %v2715, %v2707
        %v3692 = vpack.c.b16 %v2716, %v2708
        %v3693 = vpack.c.b16 %v2717, %v2709
        %v3694 = vpack.c.b16 %v2718, %v2710
        %v3695 = vpack.c.b16 %v2719, %v2711
        %v3696 = vpack.c.b16 %v2728, %v2720
        %v3697 = vpack.c.b16 %v2729, %v2721
        %v3698 = vpack.c.b16 %v2730, %v2722
        %v3699 = vpack.c.b16 %v2731, %v2723
        %v3700 = vpack.c.b16 %v2732, %v2724
        %v3701 = vpack.c.b16 %v2733, %v2725
        %v3702 = vpack.c.b16 %v2734, %v2726
        %v3703 = vpack.c.b16 %v2735, %v2727
        %v3704 = vpack.c.b16 %v2744, %v2736
        %v3705 = vpack.c.b16 %v2745, %v2737
        %v3706 = vpack.c.b16 %v2746, %v2738
        %v3707 = vpack.c.b16 %v2747, %v2739
        %v3708 = vpack.c.b16 %v2748, %v2740
        %v3709 = vpack.c.b16 %v2749, %v2741
        %v3710 = vpack.c.b16 %v2750, %v2742
        %v3711 = vpack.c.b16 %v2751, %v2743
        %v3712 = vpack.c.b16 %v2760, %v2752
        %v3713 = vpack.c.b16 %v2761, %v2753
        %v3714 = vpack.c.b16 %v2762, %v2754
        %v3715 = vpack.c.b16 %v2763, %v2755
        %v3716 = vpack.c.b16 %v2764, %v2756
        %v3717 = vpack.c.b16 %v2765, %v2757
        %v3718 = vpack.c.b16 %v2766, %v2758
        %v3719 = vpack.c.b16 %v2767, %v2759
        %v3720 = vpack.c.b16 %v2776, %v2768
        %v3721 = vpack.c.b16 %v2777, %v2769
        %v3722 = vpack.c.b16 %v2778, %v2770
        %v3723 = vpack.c.b16 %v2779, %v2771
        %v3724 = vpack.c.b16 %v2780, %v2772
        %v3725 = vpack.c.b16 %v2781, %v2773
        %v3726 = vpack.c.b16 %v2782, %v2774
        %v3727 = vpack.c.b16 %v2783, %v2775
        %v3728 = vpack.c.b16 %v2792, %v2784
        %v3729 = vpack.c.b16 %v2793, %v2785
        %v3730 = vpack.c.b16 %v2794, %v2786
        %v3731 = vpack.c.b16 %v2795, %v2787
        %v3732 = vpack.c.b16 %v2796, %v2788
        %v3733 = vpack.c.b16 %v2797, %v2789
        %v3734 = vpack.c.b16 %v2798, %v2790
        %v3735 = vpack.c.b16 %v2799, %v2791
        %v3736 = vpack.c.b16 %v2808, %v2800
        %v3737 = vpack.c.b16 %v2809, %v2801
        %v3738 = vpack.c.b16 %v2810, %v2802
        %v3739 = vpack.c.b16 %v2811, %v2803
        %v3740 = vpack.c.b16 %v2812, %v2804
        %v3741 = vpack.c.b16 %v2813, %v2805
        %v3742 = vpack.c.b16 %v2814, %v2806
        %v3743 = vpack.c.b16 %v2815, %v2807
        %v3744 = vpack.c.b16 %v2824, %v2816
        %v3745 = vpack.c.b16 %v2825, %v2817
        %v3746 = vpack.c.b16 %v2826, %v2818
        %v3747 = vpack.c.b16 %v2827, %v2819
        %v3748 = vpack.c.b16 %v2828, %v2820
        %v3749 = vpack.c.b16 %v2829, %v2821
        %v3750 = vpack.c.b16 %v2830, %v2822
        %v3751 = vpack.c.b16 %v2831, %v2823
        %v3752 = vpack.c.b16 %v2840, %v2832
        %v3753 = vpack.c.b16 %v2841, %v2833
        %v3754 = vpack.c.b16 %v2842, %v2834
        %v3755 = vpack.c.b16 %v2843, %v2835
        %v3756 = vpack.c.b16 %v2844, %v2836
        %v3757 = vpack.c.b16 %v2845, %v2837
        %v3758 = vpack.c.b16 %v2846, %v2838
        %v3759 = vpack.c.b16 %v2847, %v2839
        %v3760 = vpack.c.b16 %v2856, %v2848
        %v3761 = vpack.c.b16 %v2857, %v2849
        %v3762 = vpack.c.b16 %v2858, %v2850
        %v3763 = vpack.c.b16 %v2859, %v2851
        %v3764 = vpack.c.b16 %v2860, %v2852
        %v3765 = vpack.c.b16 %v2861, %v2853
        %v3766 = vpack.c.b16 %v2862, %v2854
        %v3767 = vpack.c.b16 %v2863, %v2855
        %v3768 = vpack.c.b16 %v2872, %v2864
        %v3769 = vpack.c.b16 %v2873, %v2865
        %v3770 = vpack.c.b16 %v2874, %v2866
        %v3771 = vpack.c.b16 %v2875, %v2867
        %v3772 = vpack.c.b16 %v2876, %v2868
        %v3773 = vpack.c.b16 %v2877, %v2869
        %v3774 = vpack.c.b16 %v2878, %v2870
        %v3775 = vpack.c.b16 %v2879, %v2871
        %v3776 = vpack.c.b16 %v2888, %v2880
        %v3777 = vpack.c.b16 %v2889, %v2881
        %v3778 = vpack.c.b16 %v2890, %v2882
        %v3779 = vpack.c.b16 %v2891, %v2883
        %v3780 = vpack.c.b16 %v2892, %v2884
        %v3781 = vpack.c.b16 %v2893, %v2885
        %v3782 = vpack.c.b16 %v2894, %v2886
        %v3783 = vpack.c.b16 %v2895, %v2887
        %v3784 = vpack.c.b16 %v2904, %v2896
        %v3785 = vpack.c.b16 %v2905, %v2897
        %v3786 = vpack.c.b16 %v2906, %v2898
        %v3787 = vpack.c.b16 %v2907, %v2899
        %v3788 = vpack.c.b16 %v2908, %v2900
        %v3789 = vpack.c.b16 %v2909, %v2901
        %v3790 = vpack.c.b16 %v2910, %v2902
        %v3791 = vpack.c.b16 %v2911, %v2903
        %v3792 = vpack.c.b16 %v2920, %v2912
        %v3793 = vpack.c.b16 %v2921, %v2913
        %v3794 = vpack.c.b16 %v2922, %v2914
        %v3795 = vpack.c.b16 %v2923, %v2915
        %v3796 = vpack.c.b16 %v2924, %v2916
        %v3797 = vpack.c.b16 %v2925, %v2917
        %v3798 = vpack.c.b16 %v2926, %v2918
        %v3799 = vpack.c.b16 %v2927, %v2919
        %v3800 = vpack.c.b16 %v2936, %v2928
        %v3801 = vpack.c.b16 %v2937, %v2929
        %v3802 = vpack.c.b16 %v2938, %v2930
        %v3803 = vpack.c.b16 %v2939, %v2931
        %v3804 = vpack.c.b16 %v2940, %v2932
        %v3805 = vpack.c.b16 %v2941, %v2933
        %v3806 = vpack.c.b16 %v2942, %v2934
        %v3807 = vpack.c.b16 %v2943, %v2935
        %v3808 = vpack.c.b16 %v2952, %v2944
        %v3809 = vpack.c.b16 %v2953, %v2945
        %v3810 = vpack.c.b16 %v2954, %v2946
        %v3811 = vpack.c.b16 %v2955, %v2947
        %v3812 = vpack.c.b16 %v2956, %v2948
        %v3813 = vpack.c.b16 %v2957, %v2949
        %v3814 = vpack.c.b16 %v2958, %v2950
        %v3815 = vpack.c.b16 %v2959, %v2951
        %v3816 = vpack.c.b16 %v2968, %v2960
        %v3817 = vpack.c.b16 %v2969, %v2961
        %v3818 = vpack.c.b16 %v2970, %v2962
        %v3819 = vpack.c.b16 %v2971, %v2963
        %v3820 = vpack.c.b16 %v2972, %v2964
        %v3821 = vpack.c.b16 %v2973, %v2965
        %v3822 = vpack.c.b16 %v2974, %v2966
        %v3823 = vpack.c.b16 %v2975, %v2967
        %v3824 = vpack.c.b16 %v2984, %v2976
        %v3825 = vpack.c.b16 %v2985, %v2977
        %v3826 = vpack.c.b16 %v2986, %v2978
        %v3827 = vpack.c.b16 %v2987, %v2979
        %v3828 = vpack.c.b16 %v2988, %v2980
        %v3829 = vpack.c.b16 %v2989, %v2981
        %v3830 = vpack.c.b16 %v2990, %v2982
        %v3831 = vpack.c.b16 %v2991, %v2983
        %v3832 = vpack.c.b16 %v3000, %v2992
        %v3833 = vpack.c.b16 %v3001, %v2993
        %v3834 = vpack.c.b16 %v3002, %v2994
        %v3835 = vpack.c.b16 %v3003, %v2995
        %v3836 = vpack.c.b16 %v3004, %v2996
        %v3837 = vpack.c.b16 %v3005, %v2997
        %v3838 = vpack.c.b16 %v3006, %v2998
        %v3839 = vpack.c.b16 %v3007, %v2999
        %v3840 = vpack.c.b16 %v3016, %v3008
        %v3841 = vpack.c.b16 %v3017, %v3009
        %v3842 = vpack.c.b16 %v3018, %v3010
        %v3843 = vpack.c.b16 %v3019, %v3011
        %v3844 = vpack.c.b16 %v3020, %v3012
        %v3845 = vpack.c.b16 %v3021, %v3013
        %v3846 = vpack.c.b16 %v3022, %v3014
        %v3847 = vpack.c.b16 %v3023, %v3015
        %v3848 = vpack.c.b16 %v3032, %v3024
        %v3849 = vpack.c.b16 %v3033, %v3025
        %v3850 = vpack.c.b16 %v3034, %v3026
        %v3851 = vpack.c.b16 %v3035, %v3027
        %v3852 = vpack.c.b16 %v3036, %v3028
        %v3853 = vpack.c.b16 %v3037, %v3029
        %v3854 = vpack.c.b16 %v3038, %v3030
        %v3855 = vpack.c.b16 %v3039, %v3031
        %v3856 = vpack.c.b16 %v3048, %v3040
        %v3857 = vpack.c.b16 %v3049, %v3041
        %v3858 = vpack.c.b16 %v3050, %v3042
        %v3859 = vpack.c.b16 %v3051, %v3043
        %v3860 = vpack.c.b16 %v3052, %v3044
        %v3861 = vpack.c.b16 %v3053, %v3045
        %v3862 = vpack.c.b16 %v3054, %v3046
        %v3863 = vpack.c.b16 %v3055, %v3047
        %v3864 = vpack.c.b16 %v3064, %v3056
        %v3865 = vpack.c.b16 %v3065, %v3057
        %v3866 = vpack.c.b16 %v3066, %v3058
        %v3867 = vpack.c.b16 %v3067, %v3059
        %v3868 = vpack.c.b16 %v3068, %v3060
        %v3869 = vpack.c.b16 %v3069, %v3061
        %v3870 = vpack.c.b16 %v3070, %v3062
        %v3871 = vpack.c.b16 %v3071, %v3063
        %v3872 = vpack.c.b16 %v3080, %v3072
        %v3873 = vpack.c.b16 %v3081, %v3073
        %v3874 = vpack.c.b16 %v3082, %v3074
        %v3875 = vpack.c.b16 %v3083, %v3075
        %v3876 = vpack.c.b16 %v3084, %v3076
        %v3877 = vpack.c.b16 %v3085, %v3077
        %v3878 = vpack.c.b16 %v3086, %v3078
        %v3879 = vpack.c.b16 %v3087, %v3079
        %v3880 = vpack.c.b16 %v3096, %v3088
        %v3881 = vpack.c.b16 %v3097, %v3089
        %v3882 = vpack.c.b16 %v3098, %v3090
        %v3883 = vpack.c.b16 %v3099, %v3091
        %v3884 = vpack.c.b16 %v3100, %v3092
        %v3885 = vpack.c.b16 %v3101, %v3093
        %v3886 = vpack.c.b16 %v3102, %v3094
        %v3887 = vpack.c.b16 %v3103, %v3095
        %v3888 = vpack.c.b16 %v3112, %v3104
        %v3889 = vpack.c.b16 %v3113, %v3105
        %v3890 = vpack.c.b16 %v3114, %v3106
        %v3891 = vpack.c.b16 %v3115, %v3107
        %v3892 = vpack.c.b16 %v3116, %v3108
        %v3893 = vpack.c.b16 %v3117, %v3109
        %v3894 = vpack.c.b16 %v3118, %v3110
        %v3895 = vpack.c.b16 %v3119, %v3111
        %v3896 = vpack.c.b16 %v3128, %v3120
        %v3897 = vpack.c.b16 %v3129, %v3121
        %v3898 = vpack.c.b16 %v3130, %v3122
        %v3899 = vpack.c.b16 %v3131, %v3123
        %v3900 = vpack.c.b16 %v3132, %v3124
        %v3901 = vpack.c.b16 %v3133, %v3125
        %v3902 = vpack.c.b16 %v3134, %v3126
        %v3903 = vpack.c.b16 %v3135, %v3127
        %v3904 = vpack.c.b16 %v3144, %v3136
        %v3905 = vpack.c.b16 %v3145, %v3137
        %v3906 = vpack.c.b16 %v3146, %v3138
        %v3907 = vpack.c.b16 %v3147, %v3139
        %v3908 = vpack.c.b16 %v3148, %v3140
        %v3909 = vpack.c.b16 %v3149, %v3141
        %v3910 = vpack.c.b16 %v3150, %v3142
        %v3911 = vpack.c.b16 %v3151, %v3143
        %v3912 = vpack.c.b16 %v3160, %v3152
        %v3913 = vpack.c.b16 %v3161, %v3153
        %v3914 = vpack.c.b16 %v3162, %v3154
        %v3915 = vpack.c.b16 %v3163, %v3155
        %v3916 = vpack.c.b16 %v3164, %v3156
        %v3917 = vpack.c.b16 %v3165, %v3157
        %v3918 = vpack.c.b16 %v3166, %v3158
        %v3919 = vpack.c.b16 %v3167, %v3159
        %v3920 = vpack.c.b16 %v3176, %v3168
        %v3921 = vpack.c.b16 %v3177, %v3169
        %v3922 = vpack.c.b16 %v3178, %v3170
        %v3923 = vpack.c.b16 %v3179, %v3171
        %v3924 = vpack.c.b16 %v3180, %v3172
        %v3925 = vpack.c.b16 %v3181, %v3173
        %v3926 = vpack.c.b16 %v3182, %v3174
        %v3927 = vpack.c.b16 %v3183, %v3175
        %v3928 = vpack.c.b16 %v3192, %v3184
        %v3929 = vpack.c.b16 %v3193, %v3185
        %v3930 = vpack.c.b16 %v3194, %v3186
        %v3931 = vpack.c.b16 %v3195, %v3187
        %v3932 = vpack.c.b16 %v3196, %v3188
        %v3933 = vpack.c.b16 %v3197, %v3189
        %v3934 = vpack.c.b16 %v3198, %v3190
        %v3935 = vpack.c.b16 %v3199, %v3191
        %v3936 = vpack.c.b16 %v3208, %v3200
        %v3937 = vpack.c.b16 %v3209, %v3201
        %v3938 = vpack.c.b16 %v3210, %v3202
        %v3939 = vpack.c.b16 %v3211, %v3203
        %v3940 = vpack.c.b16 %v3212, %v3204
        %v3941 = vpack.c.b16 %v3213, %v3205
        %v3942 = vpack.c.b16 %v3214, %v3206
        %v3943 = vpack.c.b16 %v3215, %v3207
        %v3944 = vpack.c.b16 %v3224, %v3216
        %v3945 = vpack.c.b16 %v3225, %v3217
        %v3946 = vpack.c.b16 %v3226, %v3218
        %v3947 = vpack.c.b16 %v3227, %v3219
        %v3948 = vpack.c.b16 %v3228, %v3220
        %v3949 = vpack.c.b16 %v3229, %v3221
        %v3950 = vpack.c.b16 %v3230, %v3222
        %v3951 = vpack.c.b16 %v3231, %v3223
        %v3952 = vpack.c.b16 %v3240, %v3232
        %v3953 = vpack.c.b16 %v3241, %v3233
        %v3954 = vpack.c.b16 %v3242, %v3234
        %v3955 = vpack.c.b16 %v3243, %v3235
        %v3956 = vpack.c.b16 %v3244, %v3236
        %v3957 = vpack.c.b16 %v3245, %v3237
        %v3958 = vpack.c.b16 %v3246, %v3238
        %v3959 = vpack.c.b16 %v3247, %v3239
        %v3960 = vpack.c.b16 %v3256, %v3248
        %v3961 = vpack.c.b16 %v3257, %v3249
        %v3962 = vpack.c.b16 %v3258, %v3250
        %v3963 = vpack.c.b16 %v3259, %v3251
        %v3964 = vpack.c.b16 %v3260, %v3252
        %v3965 = vpack.c.b16 %v3261, %v3253
        %v3966 = vpack.c.b16 %v3262, %v3254
        %v3967 = vpack.c.b16 %v3263, %v3255
        %v3968 = vpack.c.b16 %v3272, %v3264
        %v3969 = vpack.c.b16 %v3273, %v3265
        %v3970 = vpack.c.b16 %v3274, %v3266
        %v3971 = vpack.c.b16 %v3275, %v3267
        %v3972 = vpack.c.b16 %v3276, %v3268
        %v3973 = vpack.c.b16 %v3277, %v3269
        %v3974 = vpack.c.b16 %v3278, %v3270
        %v3975 = vpack.c.b16 %v3279, %v3271
        %v3976 = vpack.c.b16 %v3288, %v3280
        %v3977 = vpack.c.b16 %v3289, %v3281
        %v3978 = vpack.c.b16 %v3290, %v3282
        %v3979 = vpack.c.b16 %v3291, %v3283
        %v3980 = vpack.c.b16 %v3292, %v3284
        %v3981 = vpack.c.b16 %v3293, %v3285
        %v3982 = vpack.c.b16 %v3294, %v3286
        %v3983 = vpack.c.b16 %v3295, %v3287
        %v3984 = vpack.c.b16 %v3304, %v3296
        %v3985 = vpack.c.b16 %v3305, %v3297
        %v3986 = vpack.c.b16 %v3306, %v3298
        %v3987 = vpack.c.b16 %v3307, %v3299
        %v3988 = vpack.c.b16 %v3308, %v3300
        %v3989 = vpack.c.b16 %v3309, %v3301
        %v3990 = vpack.c.b16 %v3310, %v3302
        %v3991 = vpack.c.b16 %v3311, %v3303
        %v3992 = vpack.c.b16 %v3320, %v3312
        %v3993 = vpack.c.b16 %v3321, %v3313
        %v3994 = vpack.c.b16 %v3322, %v3314
        %v3995 = vpack.c.b16 %v3323, %v3315
        %v3996 = vpack.c.b16 %v3324, %v3316
        %v3997 = vpack.c.b16 %v3325, %v3317
        %v3998 = vpack.c.b16 %v3326, %v3318
        %v3999 = vpack.c.b16 %v3327, %v3319
        %v4000 = vpack.c.b16 %v3336, %v3328
        %v4001 = vpack.c.b16 %v3337, %v3329
        %v4002 = vpack.c.b16 %v3338, %v3330
        %v4003 = vpack.c.b16 %v3339, %v3331
        %v4004 = vpack.c.b16 %v3340, %v3332
        %v4005 = vpack.c.b16 %v3341, %v3333
        %v4006 = vpack.c.b16 %v3342, %v3334
        %v4007 = vpack.c.b16 %v3343, %v3335
        %v4008 = vpack.c.b16 %v3352, %v3344
        %v4009 = vpack.c.b16 %v3353, %v3345
        %v4010 = vpack.c.b16 %v3354, %v3346
        %v4011 = vpack.c.b16 %v3355, %v3347
        %v4012 = vpack.c.b16 %v3356, %v3348
        %v4013 = vpack.c.b16 %v3357, %v3349
        %v4014 = vpack.c.b16 %v3358, %v3350
        %v4015 = vpack.c.b16 %v3359, %v3351
        %v4016 = vpack.c.b16 %v3368, %v3360
        %v4017 = vpack.c.b16 %v3369, %v3361
        %v4018 = vpack.c.b16 %v3370, %v3362
        %v4019 = vpack.c.b16 %v3371, %v3363
        %v4020 = vpack.c.b16 %v3372, %v3364
        %v4021 = vpack.c.b16 %v3373, %v3365
        %v4022 = vpack.c.b16 %v3374, %v3366
        %v4023 = vpack.c.b16 %v3375, %v3367
        %v4024 = vpack.c.b16 %v3384, %v3376
        %v4025 = vpack.c.b16 %v3385, %v3377
        %v4026 = vpack.c.b16 %v3386, %v3378
        %v4027 = vpack.c.b16 %v3387, %v3379
        %v4028 = vpack.c.b16 %v3388, %v3380
        %v4029 = vpack.c.b16 %v3389, %v3381
        %v4030 = vpack.c.b16 %v3390, %v3382
        %v4031 = vpack.c.b16 %v3391, %v3383
        %v4032 = vpack.c.b16 %v3400, %v3392
        %v4033 = vpack.c.b16 %v3401, %v3393
        %v4034 = vpack.c.b16 %v3402, %v3394
        %v4035 = vpack.c.b16 %v3403, %v3395
        %v4036 = vpack.c.b16 %v3404, %v3396
        %v4037 = vpack.c.b16 %v3405, %v3397
        %v4038 = vpack.c.b16 %v3406, %v3398
        %v4039 = vpack.c.b16 %v3407, %v3399
        %v4040 = vpack.c.b16 %v3416, %v3408
        %v4041 = vpack.c.b16 %v3417, %v3409
        %v4042 = vpack.c.b16 %v3418, %v3410
        %v4043 = vpack.c.b16 %v3419, %v3411
        %v4044 = vpack.c.b16 %v3420, %v3412
        %v4045 = vpack.c.b16 %v3421, %v3413
        %v4046 = vpack.c.b16 %v3422, %v3414
        %v4047 = vpack.c.b16 %v3423, %v3415
        %v4048 = vpack.c.b16 %v3432, %v3424
        %v4049 = vpack.c.b16 %v3433, %v3425
        %v4050 = vpack.c.b16 %v3434, %v3426
        %v4051 = vpack.c.b16 %v3435, %v3427
        %v4052 = vpack.c.b16 %v3436, %v3428
        %v4053 = vpack.c.b16 %v3437, %v3429
        %v4054 = vpack.c.b16 %v3438, %v3430
        %v4055 = vpack.c.b16 %v3439, %v3431
        %v4056 = vpack.c.b16 %v3448, %v3440
        %v4057 = vpack.c.b16 %v3449, %v3441
        %v4058 = vpack.c.b16 %v3450, %v3442
        %v4059 = vpack.c.b16 %v3451, %v3443
        %v4060 = vpack.c.b16 %v3452, %v3444
        %v4061 = vpack.c.b16 %v3453, %v3445
        %v4062 = vpack.c.b16 %v3454, %v3446
        %v4063 = vpack.c.b16 %v3455, %v3447
        %v4064 = vpack.c.b16 %v3464, %v3456
        %v4065 = vpack.c.b16 %v3465, %v3457
        %v4066 = vpack.c.b16 %v3466, %v3458
        %v4067 = vpack.c.b16 %v3467, %v3459
        %v4068 = vpack.c.b16 %v3468, %v3460
        %v4069 = vpack.c.b16 %v3469, %v3461
        %v4070 = vpack.c.b16 %v3470, %v3462
        %v4071 = vpack.c.b16 %v3471, %v3463
        %v4072 = vpack.c.b16 %v3480, %v3472
        %v4073 = vpack.c.b16 %v3481, %v3473
        %v4074 = vpack.c.b16 %v3482, %v3474
        %v4075 = vpack.c.b16 %v3483, %v3475
        %v4076 = vpack.c.b16 %v3484, %v3476
        %v4077 = vpack.c.b16 %v3485, %v3477
        %v4078 = vpack.c.b16 %v3486, %v3478
        %v4079 = vpack.c.b16 %v3487, %v3479
        %v4080 = vpack.c.b16 %v3496, %v3488
        %v4081 = vpack.c.b16 %v3497, %v3489
        %v4082 = vpack.c.b16 %v3498, %v3490
        %v4083 = vpack.c.b16 %v3499, %v3491
        %v4084 = vpack.c.b16 %v3500, %v3492
        %v4085 = vpack.c.b16 %v3501, %v3493
        %v4086 = vpack.c.b16 %v3502, %v3494
        %v4087 = vpack.c.b16 %v3503, %v3495
        %v4088 = vpack.c.b16 %v3512, %v3504
        %v4089 = vpack.c.b16 %v3513, %v3505
        %v4090 = vpack.c.b16 %v3514, %v3506
        %v4091 = vpack.c.b16 %v3515, %v3507
        %v4092 = vpack.c.b16 %v3516, %v3508
        %v4093 = vpack.c.b16 %v3517, %v3509
        %v4094 = vpack.c.b16 %v3518, %v3510
        %v4095 = vpack.c.b16 %v3519, %v3511
        %v4096 = vpack.c.b16 %v3528, %v3520
        %v4097 = vpack.c.b16 %v3529, %v3521
        %v4098 = vpack.c.b16 %v3530, %v3522
        %v4099 = vpack.c.b16 %v3531, %v3523
        %v4100 = vpack.c.b16 %v3532, %v3524
        %v4101 = vpack.c.b16 %v3533, %v3525
        %v4102 = vpack.c.b16 %v3534, %v3526
        %v4103 = vpack.c.b16 %v3535, %v3527
        %v4104 = vpack.c.b16 %v3544, %v3536
        %v4105 = vpack.c.b16 %v3545, %v3537
        %v4106 = vpack.c.b16 %v3546, %v3538
        %v4107 = vpack.c.b16 %v3547, %v3539
        %v4108 = vpack.c.b16 %v3548, %v3540
        %v4109 = vpack.c.b16 %v3549, %v3541
        %v4110 = vpack.c.b16 %v3550, %v3542
        %v4111 = vpack.c.b16 %v3551, %v3543
        %v4112 = vpack.c.b16 %v3560, %v3552
        %v4113 = vpack.c.b16 %v3561, %v3553
        %v4114 = vpack.c.b16 %v3562, %v3554
        %v4115 = vpack.c.b16 %v3563, %v3555
        %v4116 = vpack.c.b16 %v3564, %v3556
        %v4117 = vpack.c.b16 %v3565, %v3557
        %v4118 = vpack.c.b16 %v3566, %v3558
        %v4119 = vpack.c.b16 %v3567, %v3559
        %v4120 = vpack.c.b16 %v3576, %v3568
        %v4121 = vpack.c.b16 %v3577, %v3569
        %v4122 = vpack.c.b16 %v3578, %v3570
        %v4123 = vpack.c.b16 %v3579, %v3571
        %v4124 = vpack.c.b16 %v3580, %v3572
        %v4125 = vpack.c.b16 %v3581, %v3573
        %v4126 = vpack.c.b16 %v3582, %v3574
        %v4127 = vpack.c.b16 %v3583, %v3575
        %v4128 = vpack.c.b16 %v3592, %v3584
        %v4129 = vpack.c.b16 %v3593, %v3585
        %v4130 = vpack.c.b16 %v3594, %v3586
        %v4131 = vpack.c.b16 %v3595, %v3587
        %v4132 = vpack.c.b16 %v3596, %v3588
        %v4133 = vpack.c.b16 %v3597, %v3589
        %v4134 = vpack.c.b16 %v3598, %v3590
        %v4135 = vpack.c.b16 %v3599, %v3591
        %v4136 = vpack.c.b16 %v3608, %v3600
        %v4137 = vpack.c.b16 %v3609, %v3601
        %v4138 = vpack.c.b16 %v3610, %v3602
        %v4139 = vpack.c.b16 %v3611, %v3603
        %v4140 = vpack.c.b16 %v3612, %v3604
        %v4141 = vpack.c.b16 %v3613, %v3605
        %v4142 = vpack.c.b16 %v3614, %v3606
        %v4143 = vpack.c.b16 %v3615, %v3607
        %v4144 = vpack.c.b16 %v3624, %v3616
        %v4145 = vpack.c.b16 %v3625, %v3617
        %v4146 = vpack.c.b16 %v3626, %v3618
        %v4147 = vpack.c.b16 %v3627, %v3619
        %v4148 = vpack.c.b16 %v3628, %v3620
        %v4149 = vpack.c.b16 %v3629, %v3621
        %v4150 = vpack.c.b16 %v3630, %v3622
        %v4151 = vpack.c.b16 %v3631, %v3623
        %v4152 = vpack.c.b16 %v3640, %v3632
        %v4153 = vpack.c.b16 %v3641, %v3633
        %v4154 = vpack.c.b16 %v3642, %v3634
        %v4155 = vpack.c.b16 %v3643, %v3635
        %v4156 = vpack.c.b16 %v3644, %v3636
        %v4157 = vpack.c.b16 %v3645, %v3637
        %v4158 = vpack.c.b16 %v3646, %v3638
        %v4159 = vpack.c.b16 %v3647, %v3639
        %4672 = vmatprep.subr.bf16.mxu0 %v3649
        %4673 = vmatpush1.bf16.msra.mxu0 %v3648
        %4674 = vmatprep.subr.bf16.mxu0 %v3657
        %4675 = vmatpush1.bf16.msra.mxu0 %v3656
        %4676 = vmatprep.subr.bf16.mxu0 %v3665
        %4677 = vmatpush1.bf16.msra.mxu0 %v3664
        %4678 = vmatprep.subr.bf16.mxu0 %v3673
        %4679 = vmatpush1.bf16.msra.mxu0 %v3672
        %4680 = vmatprep.subr.bf16.mxu0 %v3681
        %4681 = vmatpush1.bf16.msra.mxu0 %v3680
        %4682 = vmatprep.subr.bf16.mxu0 %v3689
        %4683 = vmatpush1.bf16.msra.mxu0 %v3688
        %4684 = vmatprep.subr.bf16.mxu0 %v3697
        %4685 = vmatpush1.bf16.msra.mxu0 %v3696
        %4686 = vmatprep.subr.bf16.mxu0 %v3705
        %4687 = vmatpush1.bf16.msra.mxu0 %v3704
        %4688 = vmatprep.subr.bf16.mxu0 %v3713
        %4689 = vmatpush1.bf16.msra.mxu0 %v3712
        %4690 = vmatprep.subr.bf16.mxu0 %v3721
        %4691 = vmatpush1.bf16.msra.mxu0 %v3720
        %4692 = vmatprep.subr.bf16.mxu0 %v3729
        %4693 = vmatpush1.bf16.msra.mxu0 %v3728
        %4694 = vmatprep.subr.bf16.mxu0 %v3737
        %4695 = vmatpush1.bf16.msra.mxu0 %v3736
        %4696 = vmatprep.subr.bf16.mxu0 %v3745
        %4697 = vmatpush1.bf16.msra.mxu0 %v3744
        %4698 = vmatprep.subr.bf16.mxu0 %v3753
        %4699 = vmatpush1.bf16.msra.mxu0 %v3752
        %4700 = vmatprep.subr.bf16.mxu0 %v3761
        %4701 = vmatpush1.bf16.msra.mxu0 %v3760
        %4702 = vmatprep.subr.bf16.mxu0 %v3769
        %4703 = vmatpush1.bf16.msra.mxu0 %v3768
        %4704 = vmatprep.mubr.bf16.mxu0 %v2097
        %4705 = vmatmul.mubr.bf16.gmra.mrb[0].mxu0 %v2096
        %v4706 = vpop.f32.mrb[0].mxu0
        %v4707 = vadd.f32 0.0, %v4706
        %v4708 = vpop.f32.mrb[0].mxu0
        %v4709 = vadd.f32 0.0, %v4708
        %v4710 = vpop.f32.mrb[0].mxu0
        %v4711 = vpop.f32.mrb[0].mxu0
        %4712 = vdwg.mxu0
        %4713 = vmatprep.subr.bf16.mxu0 %v3777
        %4714 = vmatpush1.bf16.msra.mxu0 %v3776
        %4715 = vmatprep.subr.bf16.mxu0 %v3785
        %4716 = vmatpush1.bf16.msra.mxu0 %v3784
        %4717 = vmatprep.subr.bf16.mxu0 %v3793
        %4718 = vmatpush1.bf16.msra.mxu0 %v3792
        %4719 = vmatprep.subr.bf16.mxu0 %v3801
        %4720 = vmatpush1.bf16.msra.mxu0 %v3800
        %4721 = vmatprep.subr.bf16.mxu0 %v3809
        %4722 = vmatpush1.bf16.msra.mxu0 %v3808
        %4723 = vmatprep.subr.bf16.mxu0 %v3817
        %4724 = vmatpush1.bf16.msra.mxu0 %v3816
        %4725 = vmatprep.subr.bf16.mxu0 %v3825
        %4726 = vmatpush1.bf16.msra.mxu0 %v3824
        %4727 = vmatprep.subr.bf16.mxu0 %v3833
        %4728 = vmatpush1.bf16.msra.mxu0 %v3832
        %4729 = vmatprep.subr.bf16.mxu0 %v3841
        %4730 = vmatpush1.bf16.msra.mxu0 %v3840
        %4731 = vmatprep.subr.bf16.mxu0 %v3849
        %4732 = vmatpush1.bf16.msra.mxu0 %v3848
        %4733 = vmatprep.subr.bf16.mxu0 %v3857
        %4734 = vmatpush1.bf16.msra.mxu0 %v3856
        %4735 = vmatprep.subr.bf16.mxu0 %v3865
        %4736 = vmatpush1.bf16.msra.mxu0 %v3864
        %4737 = vmatprep.subr.bf16.mxu0 %v3873
        %4738 = vmatpush1.bf16.msra.mxu0 %v3872
        %4739 = vmatprep.subr.bf16.mxu0 %v3881
        %4740 = vmatpush1.bf16.msra.mxu0 %v3880
        %4741 = vmatprep.subr.bf16.mxu0 %v3889
        %4742 = vmatpush1.bf16.msra.mxu0 %v3888
        %4743 = vmatprep.subr.bf16.mxu0 %v3897
        %4744 = vmatpush1.bf16.msra.mxu0 %v3896
        %4745 = vmatprep.mubr.bf16.mxu0 %v2099
        %4746 = vmatmul.mubr.bf16.gmra.mrb[0].mxu0 %v2098
        %v4747 = vpop.f32.mrb[0].mxu0
        %v4748 = vadd.f32 %v4707, %v4747
        %v4749 = vpop.f32.mrb[0].mxu0
        %v4750 = vadd.f32 %v4709, %v4749
        %v4751 = vpop.f32.mrb[0].mxu0
        %v4752 = vpop.f32.mrb[0].mxu0
        %4753 = vdwg.mxu0
        %4754 = vmatprep.subr.bf16.mxu0 %v3905
        %4755 = vmatpush1.bf16.msra.mxu0 %v3904
        %4756 = vmatprep.subr.bf16.mxu0 %v3913
        %4757 = vmatpush1.bf16.msra.mxu0 %v3912
        %4758 = vmatprep.subr.bf16.mxu0 %v3921
        %4759 = vmatpush1.bf16.msra.mxu0 %v3920
        %4760 = vmatprep.subr.bf16.mxu0 %v3929
        %4761 = vmatpush1.bf16.msra.mxu0 %v3928
        %4762 = vmatprep.subr.bf16.mxu0 %v3937
        %4763 = vmatpush1.bf16.msra.mxu0 %v3936
        %4764 = vmatprep.subr.bf16.mxu0 %v3945
        %4765 = vmatpush1.bf16.msra.mxu0 %v3944
        %4766 = vmatprep.subr.bf16.mxu0 %v3953
        %4767 = vmatpush1.bf16.msra.mxu0 %v3952
        %4768 = vmatprep.subr.bf16.mxu0 %v3961
        %4769 = vmatpush1.bf16.msra.mxu0 %v3960
        %4770 = vmatprep.subr.bf16.mxu0 %v3969
        %4771 = vmatpush1.bf16.msra.mxu0 %v3968
        %4772 = vmatprep.subr.bf16.mxu0 %v3977
        %4773 = vmatpush1.bf16.msra.mxu0 %v3976
        %4774 = vmatprep.subr.bf16.mxu0 %v3985
        %4775 = vmatpush1.bf16.msra.mxu0 %v3984
        %4776 = vmatprep.subr.bf16.mxu0 %v3993
        %4777 = vmatpush1.bf16.msra.mxu0 %v3992
        %4778 = vmatprep.subr.bf16.mxu0 %v4001
        %4779 = vmatpush1.bf16.msra.mxu0 %v4000
        %4780 = vmatprep.subr.bf16.mxu0 %v4009
        %4781 = vmatpush1.bf16.msra.mxu0 %v4008
        %4782 = vmatprep.subr.bf16.mxu0 %v4017
        %4783 = vmatpush1.bf16.msra.mxu0 %v4016
        %4784 = vmatprep.subr.bf16.mxu0 %v4025
        %4785 = vmatpush1.bf16.msra.mxu0 %v4024
        %4786 = vmatprep.mubr.bf16.mxu0 %v2101
        %4787 = vmatmul.mubr.bf16.gmra.mrb[0].mxu0 %v2100
        %v4788 = vpop.f32.mrb[0].mxu0
        %v4789 = vadd.f32 %v4748, %v4788
        %v4790 = vpop.f32.mrb[0].mxu0
        %v4791 = vadd.f32 %v4750, %v4790
        %v4792 = vpop.f32.mrb[0].mxu0
        %v4793 = vpop.f32.mrb[0].mxu0
        %4794 = vdwg.mxu0
        %4795 = vmatprep.subr.bf16.mxu0 %v4033
        %4796 = vmatpush1.bf16.msra.mxu0 %v4032
        %4797 = vmatprep.subr.bf16.mxu0 %v4041
        %4798 = vmatpush1.bf16.msra.mxu0 %v4040
        %4799 = vmatprep.subr.bf16.mxu0 %v4049
        %4800 = vmatpush1.bf16.msra.mxu0 %v4048
        %4801 = vmatprep.subr.bf16.mxu0 %v4057
        %4802 = vmatpush1.bf16.msra.mxu0 %v4056
        %4803 = vmatprep.subr.bf16.mxu0 %v4065
        %4804 = vmatpush1.bf16.msra.mxu0 %v4064
        %4805 = vmatprep.subr.bf16.mxu0 %v4073
        %4806 = vmatpush1.bf16.msra.mxu0 %v4072
        %4807 = vmatprep.subr.bf16.mxu0 %v4081
        %4808 = vmatpush1.bf16.msra.mxu0 %v4080
        %4809 = vmatprep.subr.bf16.mxu0 %v4089
        %4810 = vmatpush1.bf16.msra.mxu0 %v4088
        %4811 = vmatprep.subr.bf16.mxu0 %v4097
        %4812 = vmatpush1.bf16.msra.mxu0 %v4096
        %4813 = vmatprep.subr.bf16.mxu0 %v4105
        %4814 = vmatpush1.bf16.msra.mxu0 %v4104
        %4815 = vmatprep.subr.bf16.mxu0 %v4113
        %4816 = vmatpush1.bf16.msra.mxu0 %v4112
        %4817 = vmatprep.subr.bf16.mxu0 %v4121
        %4818 = vmatpush1.bf16.msra.mxu0 %v4120
        %4819 = vmatprep.subr.bf16.mxu0 %v4129
        %4820 = vmatpush1.bf16.msra.mxu0 %v4128
        %4821 = vmatprep.subr.bf16.mxu0 %v4137
        %4822 = vmatpush1.bf16.msra.mxu0 %v4136
        %4823 = vmatprep.subr.bf16.mxu0 %v4145
        %4824 = vmatpush1.bf16.msra.mxu0 %v4144
        %4825 = vmatprep.subr.bf16.mxu0 %v4153
        %4826 = vmatpush1.bf16.msra.mxu0 %v4152
        %4827 = vmatprep.mubr.bf16.mxu0 %v2103
        %4828 = vmatmul.mubr.bf16.gmra.mrb[0].mxu0 %v2102
        %v4829 = vpop.f32.mrb[0].mxu0
        %v4830 = vadd.f32 %v4789, %v4829
        %v4831 = vpop.f32.mrb[0].mxu0
        %v4832 = vadd.f32 %v4791, %v4831
        %v4833 = vpop.f32.mrb[0].mxu0
        %v4834 = vpop.f32.mrb[0].mxu0
        %4835 = vdwg.mxu0
        %4836 = vmatprep.subr.bf16.mxu0 %v3651
        %4837 = vmatpush1.bf16.msra.mxu0 %v3650
        %4838 = vmatprep.subr.bf16.mxu0 %v3659
        %4839 = vmatpush1.bf16.msra.mxu0 %v3658
        %4840 = vmatprep.subr.bf16.mxu0 %v3667
        %4841 = vmatpush1.bf16.msra.mxu0 %v3666
        %4842 = vmatprep.subr.bf16.mxu0 %v3675
        %4843 = vmatpush1.bf16.msra.mxu0 %v3674
        %4844 = vmatprep.subr.bf16.mxu0 %v3683
        %4845 = vmatpush1.bf16.msra.mxu0 %v3682
        %4846 = vmatprep.subr.bf16.mxu0 %v3691
        %4847 = vmatpush1.bf16.msra.mxu0 %v3690
        %4848 = vmatprep.subr.bf16.mxu0 %v3699
        %4849 = vmatpush1.bf16.msra.mxu0 %v3698
        %4850 = vmatprep.subr.bf16.mxu0 %v3707
        %4851 = vmatpush1.bf16.msra.mxu0 %v3706
        %4852 = vmatprep.subr.bf16.mxu0 %v3715
        %4853 = vmatpush1.bf16.msra.mxu0 %v3714
        %4854 = vmatprep.subr.bf16.mxu0 %v3723
        %4855 = vmatpush1.bf16.msra.mxu0 %v3722
        %4856 = vmatprep.subr.bf16.mxu0 %v3731
        %4857 = vmatpush1.bf16.msra.mxu0 %v3730
        %4858 = vmatprep.subr.bf16.mxu0 %v3739
        %4859 = vmatpush1.bf16.msra.mxu0 %v3738
        %4860 = vmatprep.subr.bf16.mxu0 %v3747
        %4861 = vmatpush1.bf16.msra.mxu0 %v3746
        %4862 = vmatprep.subr.bf16.mxu0 %v3755
        %4863 = vmatpush1.bf16.msra.mxu0 %v3754
        %4864 = vmatprep.subr.bf16.mxu0 %v3763
        %4865 = vmatpush1.bf16.msra.mxu0 %v3762
        %4866 = vmatprep.subr.bf16.mxu0 %v3771
        %4867 = vmatpush1.bf16.msra.mxu0 %v3770
        %4868 = vmatprep.mubr.bf16.mxu0 %v2097
        %4869 = vmatmul.mubr.bf16.gmra.mrb[0].mxu0 %v2096
        %v4870 = vpop.f32.mrb[0].mxu0
        %v4871 = vadd.f32 0.0, %v4870
        %v4872 = vpop.f32.mrb[0].mxu0
        %v4873 = vadd.f32 0.0, %v4872
        %v4874 = vpop.f32.mrb[0].mxu0
        %v4875 = vpop.f32.mrb[0].mxu0
        %4876 = vdwg.mxu0
        %4877 = vmatprep.subr.bf16.mxu0 %v3779
        %4878 = vmatpush1.bf16.msra.mxu0 %v3778
        %4879 = vmatprep.subr.bf16.mxu0 %v3787
        %4880 = vmatpush1.bf16.msra.mxu0 %v3786
        %4881 = vmatprep.subr.bf16.mxu0 %v3795
        %4882 = vmatpush1.bf16.msra.mxu0 %v3794
        %4883 = vmatprep.subr.bf16.mxu0 %v3803
        %4884 = vmatpush1.bf16.msra.mxu0 %v3802
        %4885 = vmatprep.subr.bf16.mxu0 %v3811
        %4886 = vmatpush1.bf16.msra.mxu0 %v3810
        %4887 = vmatprep.subr.bf16.mxu0 %v3819
        %4888 = vmatpush1.bf16.msra.mxu0 %v3818
        %4889 = vmatprep.subr.bf16.mxu0 %v3827
        %4890 = vmatpush1.bf16.msra.mxu0 %v3826
        %4891 = vmatprep.subr.bf16.mxu0 %v3835
        %4892 = vmatpush1.bf16.msra.mxu0 %v3834
        %4893 = vmatprep.subr.bf16.mxu0 %v3843
        %4894 = vmatpush1.bf16.msra.mxu0 %v3842
        %4895 = vmatprep.subr.bf16.mxu0 %v3851
        %4896 = vmatpush1.bf16.msra.mxu0 %v3850
        %4897 = vmatprep.subr.bf16.mxu0 %v3859
        %4898 = vmatpush1.bf16.msra.mxu0 %v3858
        %4899 = vmatprep.subr.bf16.mxu0 %v3867
        %4900 = vmatpush1.bf16.msra.mxu0 %v3866
        %4901 = vmatprep.subr.bf16.mxu0 %v3875
        %4902 = vmatpush1.bf16.msra.mxu0 %v3874
        %4903 = vmatprep.subr.bf16.mxu0 %v3883
        %4904 = vmatpush1.bf16.msra.mxu0 %v3882
        %4905 = vmatprep.subr.bf16.mxu0 %v3891
        %4906 = vmatpush1.bf16.msra.mxu0 %v3890
        %4907 = vmatprep.subr.bf16.mxu0 %v3899
        %4908 = vmatpush1.bf16.msra.mxu0 %v3898
        %4909 = vmatprep.mubr.bf16.mxu0 %v2099
        %4910 = vmatmul.mubr.bf16.gmra.mrb[0].mxu0 %v2098
        %v4911 = vpop.f32.mrb[0].mxu0
        %v4912 = vadd.f32 %v4871, %v4911
        %v4913 = vpop.f32.mrb[0].mxu0
        %v4914 = vadd.f32 %v4873, %v4913
        %v4915 = vpop.f32.mrb[0].mxu0
        %v4916 = vpop.f32.mrb[0].mxu0
        %4917 = vdwg.mxu0
        %4918 = vmatprep.subr.bf16.mxu0 %v3907
        %4919 = vmatpush1.bf16.msra.mxu0 %v3906
        %4920 = vmatprep.subr.bf16.mxu0 %v3915
        %4921 = vmatpush1.bf16.msra.mxu0 %v3914
        %4922 = vmatprep.subr.bf16.mxu0 %v3923
        %4923 = vmatpush1.bf16.msra.mxu0 %v3922
        %4924 = vmatprep.subr.bf16.mxu0 %v3931
        %4925 = vmatpush1.bf16.msra.mxu0 %v3930
        %4926 = vmatprep.subr.bf16.mxu0 %v3939
        %4927 = vmatpush1.bf16.msra.mxu0 %v3938
        %4928 = vmatprep.subr.bf16.mxu0 %v3947
        %4929 = vmatpush1.bf16.msra.mxu0 %v3946
        %4930 = vmatprep.subr.bf16.mxu0 %v3955
        %4931 = vmatpush1.bf16.msra.mxu0 %v3954
        %4932 = vmatprep.subr.bf16.mxu0 %v3963
        %4933 = vmatpush1.bf16.msra.mxu0 %v3962
        %4934 = vmatprep.subr.bf16.mxu0 %v3971
        %4935 = vmatpush1.bf16.msra.mxu0 %v3970
        %4936 = vmatprep.subr.bf16.mxu0 %v3979
        %4937 = vmatpush1.bf16.msra.mxu0 %v3978
        %4938 = vmatprep.subr.bf16.mxu0 %v3987
        %4939 = vmatpush1.bf16.msra.mxu0 %v3986
        %4940 = vmatprep.subr.bf16.mxu0 %v3995
        %4941 = vmatpush1.bf16.msra.mxu0 %v3994
        %4942 = vmatprep.subr.bf16.mxu0 %v4003
        %4943 = vmatpush1.bf16.msra.mxu0 %v4002
        %4944 = vmatprep.subr.bf16.mxu0 %v4011
        %4945 = vmatpush1.bf16.msra.mxu0 %v4010
        %4946 = vmatprep.subr.bf16.mxu0 %v4019
        %4947 = vmatpush1.bf16.msra.mxu0 %v4018
        %4948 = vmatprep.subr.bf16.mxu0 %v4027
        %4949 = vmatpush1.bf16.msra.mxu0 %v4026
        %4950 = vmatprep.mubr.bf16.mxu0 %v2101
        %4951 = vmatmul.mubr.bf16.gmra.mrb[0].mxu0 %v2100
        %v4952 = vpop.f32.mrb[0].mxu0
        %v4953 = vadd.f32 %v4912, %v4952
        %v4954 = vpop.f32.mrb[0].mxu0
        %v4955 = vadd.f32 %v4914, %v4954
        %v4956 = vpop.f32.mrb[0].mxu0
        %v4957 = vpop.f32.mrb[0].mxu0
        %4958 = vdwg.mxu0
        %4959 = vmatprep.subr.bf16.mxu0 %v4035
        %4960 = vmatpush1.bf16.msra.mxu0 %v4034
        %4961 = vmatprep.subr.bf16.mxu0 %v4043
        %4962 = vmatpush1.bf16.msra.mxu0 %v4042
        %4963 = vmatprep.subr.bf16.mxu0 %v4051
        %4964 = vmatpush1.bf16.msra.mxu0 %v4050
        %4965 = vmatprep.subr.bf16.mxu0 %v4059
        %4966 = vmatpush1.bf16.msra.mxu0 %v4058
        %4967 = vmatprep.subr.bf16.mxu0 %v4067
        %4968 = vmatpush1.bf16.msra.mxu0 %v4066
        %4969 = vmatprep.subr.bf16.mxu0 %v4075
        %4970 = vmatpush1.bf16.msra.mxu0 %v4074
        %4971 = vmatprep.subr.bf16.mxu0 %v4083
        %4972 = vmatpush1.bf16.msra.mxu0 %v4082
        %4973 = vmatprep.subr.bf16.mxu0 %v4091
        %4974 = vmatpush1.bf16.msra.mxu0 %v4090
        %4975 = vmatprep.subr.bf16.mxu0 %v4099
        %4976 = vmatpush1.bf16.msra.mxu0 %v4098
        %4977 = vmatprep.subr.bf16.mxu0 %v4107
        %4978 = vmatpush1.bf16.msra.mxu0 %v4106
        %4979 = vmatprep.subr.bf16.mxu0 %v4115
        %4980 = vmatpush1.bf16.msra.mxu0 %v4114
        %4981 = vmatprep.subr.bf16.mxu0 %v4123
        %4982 = vmatpush1.bf16.msra.mxu0 %v4122
        %4983 = vmatprep.subr.bf16.mxu0 %v4131
        %4984 = vmatpush1.bf16.msra.mxu0 %v4130
        %4985 = vmatprep.subr.bf16.mxu0 %v4139
        %4986 = vmatpush1.bf16.msra.mxu0 %v4138
        %4987 = vmatprep.subr.bf16.mxu0 %v4147
        %4988 = vmatpush1.bf16.msra.mxu0 %v4146
        %4989 = vmatprep.subr.bf16.mxu0 %v4155
        %4990 = vmatpush1.bf16.msra.mxu0 %v4154
        %4991 = vmatprep.mubr.bf16.mxu0 %v2103
        %4992 = vmatmul.mubr.bf16.gmra.mrb[0].mxu0 %v2102
        %v4993 = vpop.f32.mrb[0].mxu0
        %v4994 = vadd.f32 %v4953, %v4993
        %v4995 = vpop.f32.mrb[0].mxu0
        %v4996 = vadd.f32 %v4955, %v4995
        %v4997 = vpop.f32.mrb[0].mxu0
        %v4998 = vpop.f32.mrb[0].mxu0
        %4999 = vdwg.mxu0
        %5000 = vmatprep.subr.bf16.mxu0 %v3653
        %5001 = vmatpush1.bf16.msra.mxu0 %v3652
        %5002 = vmatprep.subr.bf16.mxu0 %v3661
        %5003 = vmatpush1.bf16.msra.mxu0 %v3660
        %5004 = vmatprep.subr.bf16.mxu0 %v3669
        %5005 = vmatpush1.bf16.msra.mxu0 %v3668
        %5006 = vmatprep.subr.bf16.mxu0 %v3677
        %5007 = vmatpush1.bf16.msra.mxu0 %v3676
        %5008 = vmatprep.subr.bf16.mxu0 %v3685
        %5009 = vmatpush1.bf16.msra.mxu0 %v3684
        %5010 = vmatprep.subr.bf16.mxu0 %v3693
        %5011 = vmatpush1.bf16.msra.mxu0 %v3692
        %5012 = vmatprep.subr.bf16.mxu0 %v3701
        %5013 = vmatpush1.bf16.msra.mxu0 %v3700
        %5014 = vmatprep.subr.bf16.mxu0 %v3709
        %5015 = vmatpush1.bf16.msra.mxu0 %v3708
        %5016 = vmatprep.subr.bf16.mxu0 %v3717
        %5017 = vmatpush1.bf16.msra.mxu0 %v3716
        %5018 = vmatprep.subr.bf16.mxu0 %v3725
        %5019 = vmatpush1.bf16.msra.mxu0 %v3724
        %5020 = vmatprep.subr.bf16.mxu0 %v3733
        %5021 = vmatpush1.bf16.msra.mxu0 %v3732
        %5022 = vmatprep.subr.bf16.mxu0 %v3741
        %5023 = vmatpush1.bf16.msra.mxu0 %v3740
        %5024 = vmatprep.subr.bf16.mxu0 %v3749
        %5025 = vmatpush1.bf16.msra.mxu0 %v3748
        %5026 = vmatprep.subr.bf16.mxu0 %v3757
        %5027 = vmatpush1.bf16.msra.mxu0 %v3756
        %5028 = vmatprep.subr.bf16.mxu0 %v3765
        %5029 = vmatpush1.bf16.msra.mxu0 %v3764
        %5030 = vmatprep.subr.bf16.mxu0 %v3773
        %5031 = vmatpush1.bf16.msra.mxu0 %v3772
        %5032 = vmatprep.mubr.bf16.mxu0 %v2097
        %5033 = vmatmul.mubr.bf16.gmra.mrb[0].mxu0 %v2096
        %v5034 = vpop.f32.mrb[0].mxu0
        %v5035 = vadd.f32 0.0, %v5034
        %v5036 = vpop.f32.mrb[0].mxu0
        %v5037 = vadd.f32 0.0, %v5036
        %v5038 = vpop.f32.mrb[0].mxu0
        %v5039 = vpop.f32.mrb[0].mxu0
        %5040 = vdwg.mxu0
        %5041 = vmatprep.subr.bf16.mxu0 %v3781
        %5042 = vmatpush1.bf16.msra.mxu0 %v3780
        %5043 = vmatprep.subr.bf16.mxu0 %v3789
        %5044 = vmatpush1.bf16.msra.mxu0 %v3788
        %5045 = vmatprep.subr.bf16.mxu0 %v3797
        %5046 = vmatpush1.bf16.msra.mxu0 %v3796
        %5047 = vmatprep.subr.bf16.mxu0 %v3805
        %5048 = vmatpush1.bf16.msra.mxu0 %v3804
        %5049 = vmatprep.subr.bf16.mxu0 %v3813
        %5050 = vmatpush1.bf16.msra.mxu0 %v3812
        %5051 = vmatprep.subr.bf16.mxu0 %v3821
        %5052 = vmatpush1.bf16.msra.mxu0 %v3820
        %5053 = vmatprep.subr.bf16.mxu0 %v3829
        %5054 = vmatpush1.bf16.msra.mxu0 %v3828
        %5055 = vmatprep.subr.bf16.mxu0 %v3837
        %5056 = vmatpush1.bf16.msra.mxu0 %v3836
        %5057 = vmatprep.subr.bf16.mxu0 %v3845
        %5058 = vmatpush1.bf16.msra.mxu0 %v3844
        %5059 = vmatprep.subr.bf16.mxu0 %v3853
        %5060 = vmatpush1.bf16.msra.mxu0 %v3852
        %5061 = vmatprep.subr.bf16.mxu0 %v3861
        %5062 = vmatpush1.bf16.msra.mxu0 %v3860
        %5063 = vmatprep.subr.bf16.mxu0 %v3869
        %5064 = vmatpush1.bf16.msra.mxu0 %v3868
        %5065 = vmatprep.subr.bf16.mxu0 %v3877
        %5066 = vmatpush1.bf16.msra.mxu0 %v3876
        %5067 = vmatprep.subr.bf16.mxu0 %v3885
        %5068 = vmatpush1.bf16.msra.mxu0 %v3884
        %5069 = vmatprep.subr.bf16.mxu0 %v3893
        %5070 = vmatpush1.bf16.msra.mxu0 %v3892
        %5071 = vmatprep.subr.bf16.mxu0 %v3901
        %5072 = vmatpush1.bf16.msra.mxu0 %v3900
        %5073 = vmatprep.mubr.bf16.mxu0 %v2099
        %5074 = vmatmul.mubr.bf16.gmra.mrb[0].mxu0 %v2098
        %v5075 = vpop.f32.mrb[0].mxu0
        %v5076 = vadd.f32 %v5035, %v5075
        %v5077 = vpop.f32.mrb[0].mxu0
        %v5078 = vadd.f32 %v5037, %v5077
        %v5079 = vpop.f32.mrb[0].mxu0
        %v5080 = vpop.f32.mrb[0].mxu0
        %5081 = vdwg.mxu0
        %5082 = vmatprep.subr.bf16.mxu0 %v3909
        %5083 = vmatpush1.bf16.msra.mxu0 %v3908
        %5084 = vmatprep.subr.bf16.mxu0 %v3917
        %5085 = vmatpush1.bf16.msra.mxu0 %v3916
        %5086 = vmatprep.subr.bf16.mxu0 %v3925
        %5087 = vmatpush1.bf16.msra.mxu0 %v3924
        %5088 = vmatprep.subr.bf16.mxu0 %v3933
        %5089 = vmatpush1.bf16.msra.mxu0 %v3932
        %5090 = vmatprep.subr.bf16.mxu0 %v3941
        %5091 = vmatpush1.bf16.msra.mxu0 %v3940
        %5092 = vmatprep.subr.bf16.mxu0 %v3949
        %5093 = vmatpush1.bf16.msra.mxu0 %v3948
        %5094 = vmatprep.subr.bf16.mxu0 %v3957
        %5095 = vmatpush1.bf16.msra.mxu0 %v3956
        %5096 = vmatprep.subr.bf16.mxu0 %v3965
        %5097 = vmatpush1.bf16.msra.mxu0 %v3964
        %5098 = vmatprep.subr.bf16.mxu0 %v3973
        %5099 = vmatpush1.bf16.msra.mxu0 %v3972
        %5100 = vmatprep.subr.bf16.mxu0 %v3981
        %5101 = vmatpush1.bf16.msra.mxu0 %v3980
        %5102 = vmatprep.subr.bf16.mxu0 %v3989
        %5103 = vmatpush1.bf16.msra.mxu0 %v3988
        %5104 = vmatprep.subr.bf16.mxu0 %v3997
        %5105 = vmatpush1.bf16.msra.mxu0 %v3996
        %5106 = vmatprep.subr.bf16.mxu0 %v4005
        %5107 = vmatpush1.bf16.msra.mxu0 %v4004
        %5108 = vmatprep.subr.bf16.mxu0 %v4013
        %5109 = vmatpush1.bf16.msra.mxu0 %v4012
        %5110 = vmatprep.subr.bf16.mxu0 %v4021
        %5111 = vmatpush1.bf16.msra.mxu0 %v4020
        %5112 = vmatprep.subr.bf16.mxu0 %v4029
        %5113 = vmatpush1.bf16.msra.mxu0 %v4028
        %5114 = vmatprep.mubr.bf16.mxu0 %v2101
        %5115 = vmatmul.mubr.bf16.gmra.mrb[0].mxu0 %v2100
        %v5116 = vpop.f32.mrb[0].mxu0
        %v5117 = vadd.f32 %v5076, %v5116
        %v5118 = vpop.f32.mrb[0].mxu0
        %v5119 = vadd.f32 %v5078, %v5118
        %v5120 = vpop.f32.mrb[0].mxu0
        %v5121 = vpop.f32.mrb[0].mxu0
        %5122 = vdwg.mxu0
        %5123 = vmatprep.subr.bf16.mxu0 %v4037
        %5124 = vmatpush1.bf16.msra.mxu0 %v4036
        %5125 = vmatprep.subr.bf16.mxu0 %v4045
        %5126 = vmatpush1.bf16.msra.mxu0 %v4044
        %5127 = vmatprep.subr.bf16.mxu0 %v4053
        %5128 = vmatpush1.bf16.msra.mxu0 %v4052
        %5129 = vmatprep.subr.bf16.mxu0 %v4061
        %5130 = vmatpush1.bf16.msra.mxu0 %v4060
        %5131 = vmatprep.subr.bf16.mxu0 %v4069
        %5132 = vmatpush1.bf16.msra.mxu0 %v4068
        %5133 = vmatprep.subr.bf16.mxu0 %v4077
        %5134 = vmatpush1.bf16.msra.mxu0 %v4076
        %5135 = vmatprep.subr.bf16.mxu0 %v4085
        %5136 = vmatpush1.bf16.msra.mxu0 %v4084
        %5137 = vmatprep.subr.bf16.mxu0 %v4093
        %5138 = vmatpush1.bf16.msra.mxu0 %v4092
        %5139 = vmatprep.subr.bf16.mxu0 %v4101
        %5140 = vmatpush1.bf16.msra.mxu0 %v4100
        %5141 = vmatprep.subr.bf16.mxu0 %v4109
        %5142 = vmatpush1.bf16.msra.mxu0 %v4108
        %5143 = vmatprep.subr.bf16.mxu0 %v4117
        %5144 = vmatpush1.bf16.msra.mxu0 %v4116
        %5145 = vmatprep.subr.bf16.mxu0 %v4125
        %5146 = vmatpush1.bf16.msra.mxu0 %v4124
        %5147 = vmatprep.subr.bf16.mxu0 %v4133
        %5148 = vmatpush1.bf16.msra.mxu0 %v4132
        %5149 = vmatprep.subr.bf16.mxu0 %v4141
        %5150 = vmatpush1.bf16.msra.mxu0 %v4140
        %5151 = vmatprep.subr.bf16.mxu0 %v4149
        %5152 = vmatpush1.bf16.msra.mxu0 %v4148
        %5153 = vmatprep.subr.bf16.mxu0 %v4157
        %5154 = vmatpush1.bf16.msra.mxu0 %v4156
        %5155 = vmatprep.mubr.bf16.mxu0 %v2103
        %5156 = vmatmul.mubr.bf16.gmra.mrb[0].mxu0 %v2102
        %v5157 = vpop.f32.mrb[0].mxu0
        %v5158 = vadd.f32 %v5117, %v5157
        %v5159 = vpop.f32.mrb[0].mxu0
        %v5160 = vadd.f32 %v5119, %v5159
        %v5161 = vpop.f32.mrb[0].mxu0
        %v5162 = vpop.f32.mrb[0].mxu0
        %5163 = vdwg.mxu0
        %5164 = vmatprep.subr.bf16.mxu0 %v3655
        %5165 = vmatpush1.bf16.msra.mxu0 %v3654
        %5166 = vmatprep.subr.bf16.mxu0 %v3663
        %5167 = vmatpush1.bf16.msra.mxu0 %v3662
        %5168 = vmatprep.subr.bf16.mxu0 %v3671
        %5169 = vmatpush1.bf16.msra.mxu0 %v3670
        %5170 = vmatprep.subr.bf16.mxu0 %v3679
        %5171 = vmatpush1.bf16.msra.mxu0 %v3678
        %5172 = vmatprep.subr.bf16.mxu0 %v3687
        %5173 = vmatpush1.bf16.msra.mxu0 %v3686
        %5174 = vmatprep.subr.bf16.mxu0 %v3695
        %5175 = vmatpush1.bf16.msra.mxu0 %v3694
        %5176 = vmatprep.subr.bf16.mxu0 %v3703
        %5177 = vmatpush1.bf16.msra.mxu0 %v3702
        %5178 = vmatprep.subr.bf16.mxu0 %v3711
        %5179 = vmatpush1.bf16.msra.mxu0 %v3710
        %5180 = vmatprep.subr.bf16.mxu0 %v3719
        %5181 = vmatpush1.bf16.msra.mxu0 %v3718
        %5182 = vmatprep.subr.bf16.mxu0 %v3727
        %5183 = vmatpush1.bf16.msra.mxu0 %v3726
        %5184 = vmatprep.subr.bf16.mxu0 %v3735
        %5185 = vmatpush1.bf16.msra.mxu0 %v3734
        %5186 = vmatprep.subr.bf16.mxu0 %v3743
        %5187 = vmatpush1.bf16.msra.mxu0 %v3742
        %5188 = vmatprep.subr.bf16.mxu0 %v3751
        %5189 = vmatpush1.bf16.msra.mxu0 %v3750
        %5190 = vmatprep.subr.bf16.mxu0 %v3759
        %5191 = vmatpush1.bf16.msra.mxu0 %v3758
        %5192 = vmatprep.subr.bf16.mxu0 %v3767
        %5193 = vmatpush1.bf16.msra.mxu0 %v3766
        %5194 = vmatprep.subr.bf16.mxu0 %v3775
        %5195 = vmatpush1.bf16.msra.mxu0 %v3774
        %5196 = vmatprep.mubr.bf16.mxu0 %v2097
        %5197 = vmatmul.mubr.bf16.gmra.mrb[0].mxu0 %v2096
        %v5198 = vpop.f32.mrb[0].mxu0
        %v5199 = vadd.f32 0.0, %v5198
        %v5200 = vpop.f32.mrb[0].mxu0
        %v5201 = vadd.f32 0.0, %v5200
        %v5202 = vpop.f32.mrb[0].mxu0
        %v5203 = vpop.f32.mrb[0].mxu0
        %5204 = vdwg.mxu0
        %5205 = vmatprep.subr.bf16.mxu0 %v3783
        %5206 = vmatpush1.bf16.msra.mxu0 %v3782
        %5207 = vmatprep.subr.bf16.mxu0 %v3791
        %5208 = vmatpush1.bf16.msra.mxu0 %v3790
        %5209 = vmatprep.subr.bf16.mxu0 %v3799
        %5210 = vmatpush1.bf16.msra.mxu0 %v3798
        %5211 = vmatprep.subr.bf16.mxu0 %v3807
        %5212 = vmatpush1.bf16.msra.mxu0 %v3806
        %5213 = vmatprep.subr.bf16.mxu0 %v3815
        %5214 = vmatpush1.bf16.msra.mxu0 %v3814
        %5215 = vmatprep.subr.bf16.mxu0 %v3823
        %5216 = vmatpush1.bf16.msra.mxu0 %v3822
        %5217 = vmatprep.subr.bf16.mxu0 %v3831
        %5218 = vmatpush1.bf16.msra.mxu0 %v3830
        %5219 = vmatprep.subr.bf16.mxu0 %v3839
        %5220 = vmatpush1.bf16.msra.mxu0 %v3838
        %5221 = vmatprep.subr.bf16.mxu0 %v3847
        %5222 = vmatpush1.bf16.msra.mxu0 %v3846
        %5223 = vmatprep.subr.bf16.mxu0 %v3855
        %5224 = vmatpush1.bf16.msra.mxu0 %v3854
        %5225 = vmatprep.subr.bf16.mxu0 %v3863
        %5226 = vmatpush1.bf16.msra.mxu0 %v3862
        %5227 = vmatprep.subr.bf16.mxu0 %v3871
        %5228 = vmatpush1.bf16.msra.mxu0 %v3870
        %5229 = vmatprep.subr.bf16.mxu0 %v3879
        %5230 = vmatpush1.bf16.msra.mxu0 %v3878
        %5231 = vmatprep.subr.bf16.mxu0 %v3887
        %5232 = vmatpush1.bf16.msra.mxu0 %v3886
        %5233 = vmatprep.subr.bf16.mxu0 %v3895
        %5234 = vmatpush1.bf16.msra.mxu0 %v3894
        %5235 = vmatprep.subr.bf16.mxu0 %v3903
        %5236 = vmatpush1.bf16.msra.mxu0 %v3902
        %5237 = vmatprep.mubr.bf16.mxu0 %v2099
        %5238 = vmatmul.mubr.bf16.gmra.mrb[0].mxu0 %v2098
        %v5239 = vpop.f32.mrb[0].mxu0
        %v5240 = vadd.f32 %v5199, %v5239
        %v5241 = vpop.f32.mrb[0].mxu0
        %v5242 = vadd.f32 %v5201, %v5241
        %v5243 = vpop.f32.mrb[0].mxu0
        %v5244 = vpop.f32.mrb[0].mxu0
        %5245 = vdwg.mxu0
        %5246 = vmatprep.subr.bf16.mxu0 %v3911
        %5247 = vmatpush1.bf16.msra.mxu0 %v3910
        %5248 = vmatprep.subr.bf16.mxu0 %v3919
        %5249 = vmatpush1.bf16.msra.mxu0 %v3918
        %5250 = vmatprep.subr.bf16.mxu0 %v3927
        %5251 = vmatpush1.bf16.msra.mxu0 %v3926
        %5252 = vmatprep.subr.bf16.mxu0 %v3935
        %5253 = vmatpush1.bf16.msra.mxu0 %v3934
        %5254 = vmatprep.subr.bf16.mxu0 %v3943
        %5255 = vmatpush1.bf16.msra.mxu0 %v3942
        %5256 = vmatprep.subr.bf16.mxu0 %v3951
        %5257 = vmatpush1.bf16.msra.mxu0 %v3950
        %5258 = vmatprep.subr.bf16.mxu0 %v3959
        %5259 = vmatpush1.bf16.msra.mxu0 %v3958
        %5260 = vmatprep.subr.bf16.mxu0 %v3967
        %5261 = vmatpush1.bf16.msra.mxu0 %v3966
        %5262 = vmatprep.subr.bf16.mxu0 %v3975
        %5263 = vmatpush1.bf16.msra.mxu0 %v3974
        %5264 = vmatprep.subr.bf16.mxu0 %v3983
        %5265 = vmatpush1.bf16.msra.mxu0 %v3982
        %5266 = vmatprep.subr.bf16.mxu0 %v3991
        %5267 = vmatpush1.bf16.msra.mxu0 %v3990
        %5268 = vmatprep.subr.bf16.mxu0 %v3999
        %5269 = vmatpush1.bf16.msra.mxu0 %v3998
        %5270 = vmatprep.subr.bf16.mxu0 %v4007
        %5271 = vmatpush1.bf16.msra.mxu0 %v4006
        %5272 = vmatprep.subr.bf16.mxu0 %v4015
        %5273 = vmatpush1.bf16.msra.mxu0 %v4014
        %5274 = vmatprep.subr.bf16.mxu0 %v4023
        %5275 = vmatpush1.bf16.msra.mxu0 %v4022
        %5276 = vmatprep.subr.bf16.mxu0 %v4031
        %5277 = vmatpush1.bf16.msra.mxu0 %v4030
        %5278 = vmatprep.mubr.bf16.mxu0 %v2101
        %5279 = vmatmul.mubr.bf16.gmra.mrb[0].mxu0 %v2100
        %v5280 = vpop.f32.mrb[0].mxu0
        %v5281 = vadd.f32 %v5240, %v5280
        %v5282 = vpop.f32.mrb[0].mxu0
        %v5283 = vadd.f32 %v5242, %v5282
        %v5284 = vpop.f32.mrb[0].mxu0
        %v5285 = vpop.f32.mrb[0].mxu0
        %5286 = vdwg.mxu0
        %5287 = vmatprep.subr.bf16.mxu0 %v4039
        %5288 = vmatpush1.bf16.msra.mxu0 %v4038
        %5289 = vmatprep.subr.bf16.mxu0 %v4047
        %5290 = vmatpush1.bf16.msra.mxu0 %v4046
        %5291 = vmatprep.subr.bf16.mxu0 %v4055
        %5292 = vmatpush1.bf16.msra.mxu0 %v4054
        %5293 = vmatprep.subr.bf16.mxu0 %v4063
        %5294 = vmatpush1.bf16.msra.mxu0 %v4062
        %5295 = vmatprep.subr.bf16.mxu0 %v4071
        %5296 = vmatpush1.bf16.msra.mxu0 %v4070
        %5297 = vmatprep.subr.bf16.mxu0 %v4079
        %5298 = vmatpush1.bf16.msra.mxu0 %v4078
        %5299 = vmatprep.subr.bf16.mxu0 %v4087
        %5300 = vmatpush1.bf16.msra.mxu0 %v4086
        %5301 = vmatprep.subr.bf16.mxu0 %v4095
        %5302 = vmatpush1.bf16.msra.mxu0 %v4094
        %5303 = vmatprep.subr.bf16.mxu0 %v4103
        %5304 = vmatpush1.bf16.msra.mxu0 %v4102
        %5305 = vmatprep.subr.bf16.mxu0 %v4111
        %5306 = vmatpush1.bf16.msra.mxu0 %v4110
        %5307 = vmatprep.subr.bf16.mxu0 %v4119
        %5308 = vmatpush1.bf16.msra.mxu0 %v4118
        %5309 = vmatprep.subr.bf16.mxu0 %v4127
        %5310 = vmatpush1.bf16.msra.mxu0 %v4126
        %5311 = vmatprep.subr.bf16.mxu0 %v4135
        %5312 = vmatpush1.bf16.msra.mxu0 %v4134
        %5313 = vmatprep.subr.bf16.mxu0 %v4143
        %5314 = vmatpush1.bf16.msra.mxu0 %v4142
        %5315 = vmatprep.subr.bf16.mxu0 %v4151
        %5316 = vmatpush1.bf16.msra.mxu0 %v4150
        %5317 = vmatprep.subr.bf16.mxu0 %v4159
        %5318 = vmatpush1.bf16.msra.mxu0 %v4158
        %5319 = vmatprep.mubr.bf16.mxu0 %v2103
        %5320 = vmatmul.mubr.bf16.gmra.mrb[0].mxu0 %v2102
        %v5321 = vpop.f32.mrb[0].mxu0
        %v5322 = vadd.f32 %v5281, %v5321
        %v5323 = vpop.f32.mrb[0].mxu0
        %v5324 = vadd.f32 %v5283, %v5323
        %v5325 = vpop.f32.mrb[0].mxu0
        %v5326 = vpop.f32.mrb[0].mxu0
        %5327 = vdwg.mxu0
        %v5328 = vld [vmem:[%s422] sm:$0xff]
        %v5330 = vlaneseq
        %v5331 = vshrl.u32 %v5330, 7
        %v5332 = vsub.s32 0, %v5331
        %v5333 = vrot.slane %v5328, %v5332
        %v5334 = vlaneseq
        %v5335 = vshrl.u32 %v5334, 7
        %v5336 = vsub.s32 1, %v5335
        %v5337 = vrot.slane %v5328, %v5336
        %v5338 = vlaneseq
        %v5339 = vshrl.u32 %v5338, 7
        %v5340 = vsub.s32 2, %v5339
        %v5341 = vrot.slane %v5328, %v5340
        %v5342 = vlaneseq
        %v5343 = vshrl.u32 %v5342, 7
        %v5344 = vsub.s32 3, %v5343
        %v5345 = vrot.slane %v5328, %v5344
        %v5346 = vlaneseq
        %v5347 = vshrl.u32 %v5346, 7
        %v5348 = vsub.s32 4, %v5347
        %v5349 = vrot.slane %v5328, %v5348
        %v5350 = vlaneseq
        %v5351 = vshrl.u32 %v5350, 7
        %v5352 = vsub.s32 5, %v5351
        %v5353 = vrot.slane %v5328, %v5352
        %v5354 = vlaneseq
        %v5355 = vshrl.u32 %v5354, 7
        %v5356 = vsub.s32 6, %v5355
        %v5357 = vrot.slane %v5328, %v5356
        %v5358 = vlaneseq
        %v5359 = vshrl.u32 %v5358, 7
        %v5360 = vsub.s32 7, %v5359
        %v5361 = vrot.slane %v5328, %v5360
        %v5370 = vmul.f32 %v4830, %v5333
        %v5371 = vmul.f32 %v4832, %v5337
        %v5372 = vmul.f32 %v4994, %v5341
        %v5373 = vmul.f32 %v4996, %v5345
        %v5374 = vmul.f32 %v5158, %v5349
        %v5375 = vmul.f32 %v5160, %v5353
        %v5376 = vmul.f32 %v5322, %v5357
        %v5377 = vmul.f32 %v5324, %v5361
        %v5378 = vld [vmem:[%s431] sm:$0xff]
        %v5380 = vlaneseq
        %v5381 = vshrl.u32 %v5380, 7
        %v5382 = vsub.s32 0, %v5381
        %v5383 = vrot.slane %v5378, %v5382
        %v5384 = vlaneseq
        %v5385 = vshrl.u32 %v5384, 7
        %v5386 = vsub.s32 1, %v5385
        %v5387 = vrot.slane %v5378, %v5386
        %v5388 = vlaneseq
        %v5389 = vshrl.u32 %v5388, 7
        %v5390 = vsub.s32 2, %v5389
        %v5391 = vrot.slane %v5378, %v5390
        %v5392 = vlaneseq
        %v5393 = vshrl.u32 %v5392, 7
        %v5394 = vsub.s32 3, %v5393
        %v5395 = vrot.slane %v5378, %v5394
        %v5396 = vlaneseq
        %v5397 = vshrl.u32 %v5396, 7
        %v5398 = vsub.s32 4, %v5397
        %v5399 = vrot.slane %v5378, %v5398
        %v5400 = vlaneseq
        %v5401 = vshrl.u32 %v5400, 7
        %v5402 = vsub.s32 5, %v5401
        %v5403 = vrot.slane %v5378, %v5402
        %v5404 = vlaneseq
        %v5405 = vshrl.u32 %v5404, 7
        %v5406 = vsub.s32 6, %v5405
        %v5407 = vrot.slane %v5378, %v5406
        %v5408 = vlaneseq
        %v5409 = vshrl.u32 %v5408, 7
        %v5410 = vsub.s32 7, %v5409
        %v5411 = vrot.slane %v5378, %v5410
        %v5420 = vadd.f32 %v5370, %v5383
        %v5421 = vadd.f32 %v5371, %v5387
        %v5422 = vadd.f32 %v5372, %v5391
        %v5423 = vadd.f32 %v5373, %v5395
        %v5424 = vadd.f32 %v5374, %v5399
        %v5425 = vadd.f32 %v5375, %v5403
        %v5426 = vadd.f32 %v5376, %v5407
        %v5427 = vadd.f32 %v5377, %v5411
        %v5428 = vmax.f32 %v5420, 0.0
        %v5429 = vmax.f32 %v5421, 0.0
        %v5430 = vmax.f32 %v5422, 0.0
        %v5431 = vmax.f32 %v5423, 0.0
        %v5432 = vmax.f32 %v5424, 0.0
        %v5433 = vmax.f32 %v5425, 0.0
        %v5434 = vmax.f32 %v5426, 0.0
        %v5435 = vmax.f32 %v5427, 0.0
        %v5436 = vpack.c.bf16 %v5428, %v5428
        %v5437 = vpack.c.bf16 %v5429, %v5429
        %v5438 = vpack.c.bf16 %v5430, %v5430
        %v5439 = vpack.c.bf16 %v5431, %v5431
        %v5440 = vpack.c.bf16 %v5432, %v5432
        %v5441 = vpack.c.bf16 %v5433, %v5433
        %v5442 = vpack.c.bf16 %v5434, %v5434
        %v5443 = vpack.c.bf16 %v5435, %v5435
        %v5452 = vunpack.c.l.b16 %v5436
        %v5453 = vunpack.c.l.b16 %v5437
        %v5454 = vunpack.c.l.b16 %v5438
        %v5455 = vunpack.c.l.b16 %v5439
        %v5456 = vunpack.c.l.b16 %v5440
        %v5457 = vunpack.c.l.b16 %v5441
        %v5458 = vunpack.c.l.b16 %v5442
        %v5459 = vunpack.c.l.b16 %v5443
        %v5460 = vpack.c.b16 %v5453, %v5452
        %v5461 = vpack.c.b16 %v5455, %v5454
        %v5462 = vpack.c.b16 %v5457, %v5456
        %v5463 = vpack.c.b16 %v5459, %v5458
        %5468 = vst [vmem:[#allocation2] sm:$0xff] %v5460
        %5469 = vst [vmem:[#allocation2 + $0x8] sm:$0xff] %v5461
        %5470 = vst [vmem:[#allocation2 + $0x10] sm:$0xff] %v5462
        %5471 = vst [vmem:[#allocation2 + $0x18] sm:$0xff] %v5463
        %p5472 = scmp.eq.s32.totalorder %s30, 2
        // Predicated region
        $region93: #{forward.1} parent=55 // pred_check
          %p5473 = pneg %p5472
        $region94: #{forward.1} parent=55 // pred_check_branch
          %5475 = sbr.rel (%p5473) target = $region96
        $region95: #{forward.1} parent=55 // pred_region
          %v5476 = vld [vmem:[#allocation2] sm:$0xff]
          %v5477 = vld [vmem:[#allocation2 + $0x8] sm:$0xff]
          %v5478 = vld [vmem:[#allocation2 + $0x10] sm:$0xff]
          %v5479 = vld [vmem:[#allocation2 + $0x18] sm:$0xff]
          %v5480 = vld [vmem:[#allocation14] sm:$0xf]
          %v5481 = vld [vmem:[#allocation14 + $0x4] sm:$0xf]
          %v5482 = vld [vmem:[#allocation14 + $0x8] sm:$0xf]
          %v5483 = vld [vmem:[#allocation14 + $0xc] sm:$0xf]
          %v5484 = vld [vmem:[#allocation14 + $0x10] sm:$0xf]
          %v5485 = vld [vmem:[#allocation14 + $0x14] sm:$0xf]
          %v5486 = vld [vmem:[#allocation14 + $0x18] sm:$0xf]
          %v5487 = vld [vmem:[#allocation14 + $0x1c] sm:$0xf]
          %v5488 = vld [vmem:[#allocation14 + $0x20] sm:$0xf]
          %v5489 = vld [vmem:[#allocation14 + $0x24] sm:$0xf]
          %v5490 = vld [vmem:[#allocation14 + $0x28] sm:$0xf]
          %v5491 = vld [vmem:[#allocation14 + $0x2c] sm:$0xf]
          %v5492 = vld [vmem:[#allocation14 + $0x30] sm:$0xf]
          %v5493 = vld [vmem:[#allocation14 + $0x34] sm:$0xf]
          %v5494 = vld [vmem:[#allocation14 + $0x38] sm:$0xf]
          %v5495 = vld [vmem:[#allocation14 + $0x3c] sm:$0xf]
          %v5496 = vld [vmem:[#allocation14 + $0x40] sm:$0xf]
          %v5497 = vld [vmem:[#allocation14 + $0x44] sm:$0xf]
          %v5498 = vld [vmem:[#allocation14 + $0x48] sm:$0xf]
          %v5499 = vld [vmem:[#allocation14 + $0x4c] sm:$0xf]
          %v5500 = vld [vmem:[#allocation14 + $0x50] sm:$0xf]
          %v5501 = vld [vmem:[#allocation14 + $0x54] sm:$0xf]
          %v5502 = vld [vmem:[#allocation14 + $0x58] sm:$0xf]
          %v5503 = vld [vmem:[#allocation14 + $0x5c] sm:$0xf]
          %v5504 = vld [vmem:[#allocation14 + $0x60] sm:$0xf]
          %v5505 = vld [vmem:[#allocation14 + $0x64] sm:$0xf]
          %v5506 = vld [vmem:[#allocation14 + $0x68] sm:$0xf]
          %v5507 = vld [vmem:[#allocation14 + $0x6c] sm:$0xf]
          %v5508 = vld [vmem:[#allocation14 + $0x70] sm:$0xf]
          %v5509 = vld [vmem:[#allocation14 + $0x74] sm:$0xf]
          %v5510 = vld [vmem:[#allocation14 + $0x78] sm:$0xf]
          %v5511 = vld [vmem:[#allocation14 + $0x7c] sm:$0xf]
          %v5512 = vld [vmem:[#allocation14 + $0x80] sm:$0xf]
          %v5513 = vld [vmem:[#allocation14 + $0x84] sm:$0xf]
          %v5514 = vld [vmem:[#allocation14 + $0x88] sm:$0xf]
          %v5515 = vld [vmem:[#allocation14 + $0x8c] sm:$0xf]
          %v5516 = vld [vmem:[#allocation14 + $0x90] sm:$0xf]
          %v5517 = vld [vmem:[#allocation14 + $0x94] sm:$0xf]
          %v5518 = vld [vmem:[#allocation14 + $0x98] sm:$0xf]
          %v5519 = vld [vmem:[#allocation14 + $0x9c] sm:$0xf]
          %v5520 = vld [vmem:[#allocation14 + $0xa0] sm:$0xf]
          %v5521 = vld [vmem:[#allocation14 + $0xa4] sm:$0xf]
          %v5522 = vld [vmem:[#allocation14 + $0xa8] sm:$0xf]
          %v5523 = vld [vmem:[#allocation14 + $0xac] sm:$0xf]
          %v5524 = vld [vmem:[#allocation14 + $0xb0] sm:$0xf]
          %v5525 = vld [vmem:[#allocation14 + $0xb4] sm:$0xf]
          %v5526 = vld [vmem:[#allocation14 + $0xb8] sm:$0xf]
          %v5527 = vld [vmem:[#allocation14 + $0xbc] sm:$0xf]
          %v5528 = vld [vmem:[#allocation14 + $0xc0] sm:$0xf]
          %v5529 = vld [vmem:[#allocation14 + $0xc4] sm:$0xf]
          %v5530 = vld [vmem:[#allocation14 + $0xc8] sm:$0xf]
          %v5531 = vld [vmem:[#allocation14 + $0xcc] sm:$0xf]
          %v5532 = vld [vmem:[#allocation14 + $0xd0] sm:$0xf]
          %v5533 = vld [vmem:[#allocation14 + $0xd4] sm:$0xf]
          %v5534 = vld [vmem:[#allocation14 + $0xd8] sm:$0xf]
          %v5535 = vld [vmem:[#allocation14 + $0xdc] sm:$0xf]
          %v5536 = vld [vmem:[#allocation14 + $0xe0] sm:$0xf]
          %v5537 = vld [vmem:[#allocation14 + $0xe4] sm:$0xf]
          %v5538 = vld [vmem:[#allocation14 + $0xe8] sm:$0xf]
          %v5539 = vld [vmem:[#allocation14 + $0xec] sm:$0xf]
          %v5540 = vld [vmem:[#allocation14 + $0xf0] sm:$0xf]
          %v5541 = vld [vmem:[#allocation14 + $0xf4] sm:$0xf]
          %v5542 = vld [vmem:[#allocation14 + $0xf8] sm:$0xf]
          %v5543 = vld [vmem:[#allocation14 + $0xfc] sm:$0xf]
          %v5544 = vld [vmem:[#allocation14 + $0x100] sm:$0xf]
          %v5545 = vld [vmem:[#allocation14 + $0x104] sm:$0xf]
          %v5546 = vld [vmem:[#allocation14 + $0x108] sm:$0xf]
          %v5547 = vld [vmem:[#allocation14 + $0x10c] sm:$0xf]
          %v5548 = vld [vmem:[#allocation14 + $0x110] sm:$0xf]
          %v5549 = vld [vmem:[#allocation14 + $0x114] sm:$0xf]
          %v5550 = vld [vmem:[#allocation14 + $0x118] sm:$0xf]
          %v5551 = vld [vmem:[#allocation14 + $0x11c] sm:$0xf]
          %v5552 = vld [vmem:[#allocation14 + $0x120] sm:$0xf]
          %v5553 = vld [vmem:[#allocation14 + $0x124] sm:$0xf]
          %v5554 = vld [vmem:[#allocation14 + $0x128] sm:$0xf]
          %v5555 = vld [vmem:[#allocation14 + $0x12c] sm:$0xf]
          %v5556 = vld [vmem:[#allocation14 + $0x130] sm:$0xf]
          %v5557 = vld [vmem:[#allocation14 + $0x134] sm:$0xf]
          %v5558 = vld [vmem:[#allocation14 + $0x138] sm:$0xf]
          %v5559 = vld [vmem:[#allocation14 + $0x13c] sm:$0xf]
          %v5560 = vld [vmem:[#allocation14 + $0x140] sm:$0xf]
          %v5561 = vld [vmem:[#allocation14 + $0x144] sm:$0xf]
          %v5562 = vld [vmem:[#allocation14 + $0x148] sm:$0xf]
          %v5563 = vld [vmem:[#allocation14 + $0x14c] sm:$0xf]
          %v5564 = vld [vmem:[#allocation14 + $0x150] sm:$0xf]
          %v5565 = vld [vmem:[#allocation14 + $0x154] sm:$0xf]
          %v5566 = vld [vmem:[#allocation14 + $0x158] sm:$0xf]
          %v5567 = vld [vmem:[#allocation14 + $0x15c] sm:$0xf]
          %v5568 = vld [vmem:[#allocation14 + $0x160] sm:$0xf]
          %v5569 = vld [vmem:[#allocation14 + $0x164] sm:$0xf]
          %v5570 = vld [vmem:[#allocation14 + $0x168] sm:$0xf]
          %v5571 = vld [vmem:[#allocation14 + $0x16c] sm:$0xf]
          %v5572 = vld [vmem:[#allocation14 + $0x170] sm:$0xf]
          %v5573 = vld [vmem:[#allocation14 + $0x174] sm:$0xf]
          %v5574 = vld [vmem:[#allocation14 + $0x178] sm:$0xf]
          %v5575 = vld [vmem:[#allocation14 + $0x17c] sm:$0xf]
          %v5576 = vld [vmem:[#allocation14 + $0x180] sm:$0xf]
          %v5577 = vld [vmem:[#allocation14 + $0x184] sm:$0xf]
          %v5578 = vld [vmem:[#allocation14 + $0x188] sm:$0xf]
          %v5579 = vld [vmem:[#allocation14 + $0x18c] sm:$0xf]
          %v5580 = vld [vmem:[#allocation14 + $0x190] sm:$0xf]
          %v5581 = vld [vmem:[#allocation14 + $0x194] sm:$0xf]
          %v5582 = vld [vmem:[#allocation14 + $0x198] sm:$0xf]
          %v5583 = vld [vmem:[#allocation14 + $0x19c] sm:$0xf]
          %v5584 = vld [vmem:[#allocation14 + $0x1a0] sm:$0xf]
          %v5585 = vld [vmem:[#allocation14 + $0x1a4] sm:$0xf]
          %v5586 = vld [vmem:[#allocation14 + $0x1a8] sm:$0xf]
          %v5587 = vld [vmem:[#allocation14 + $0x1ac] sm:$0xf]
          %v5588 = vld [vmem:[#allocation14 + $0x1b0] sm:$0xf]
          %v5589 = vld [vmem:[#allocation14 + $0x1b4] sm:$0xf]
          %v5590 = vld [vmem:[#allocation14 + $0x1b8] sm:$0xf]
          %v5591 = vld [vmem:[#allocation14 + $0x1bc] sm:$0xf]
          %v5592 = vld [vmem:[#allocation14 + $0x1c0] sm:$0xf]
          %v5593 = vld [vmem:[#allocation14 + $0x1c4] sm:$0xf]
          %v5594 = vld [vmem:[#allocation14 + $0x1c8] sm:$0xf]
          %v5595 = vld [vmem:[#allocation14 + $0x1cc] sm:$0xf]
          %v5596 = vld [vmem:[#allocation14 + $0x1d0] sm:$0xf]
          %v5597 = vld [vmem:[#allocation14 + $0x1d4] sm:$0xf]
          %v5598 = vld [vmem:[#allocation14 + $0x1d8] sm:$0xf]
          %v5599 = vld [vmem:[#allocation14 + $0x1dc] sm:$0xf]
          %v5600 = vld [vmem:[#allocation14 + $0x1e0] sm:$0xf]
          %v5601 = vld [vmem:[#allocation14 + $0x1e4] sm:$0xf]
          %v5602 = vld [vmem:[#allocation14 + $0x1e8] sm:$0xf]
          %v5603 = vld [vmem:[#allocation14 + $0x1ec] sm:$0xf]
          %v5604 = vld [vmem:[#allocation14 + $0x1f0] sm:$0xf]
          %v5605 = vld [vmem:[#allocation14 + $0x1f4] sm:$0xf]
          %v5606 = vld [vmem:[#allocation14 + $0x1f8] sm:$0xf]
          %v5607 = vld [vmem:[#allocation14 + $0x1fc] sm:$0xf]
          %v5608 = vld [vmem:[#allocation15] sm:$0x1]
          %v5610 = vlaneseq
          %v5611 = vshrl.u32 %v5610, 7
          %v5612 = vsub.s32 0, %v5611
          %v5613 = vrot.slane %v5608, %v5612
          %v5619 = vunpack.c.l.b16 %v5476
          %v5620 = vunpack.c.h.b16 %v5476
          %v5621 = vunpack.c.l.b16 %v5477
          %v5622 = vunpack.c.h.b16 %v5477
          %v5623 = vunpack.c.l.b16 %v5478
          %v5624 = vunpack.c.h.b16 %v5478
          %v5625 = vunpack.c.l.b16 %v5479
          %v5626 = vunpack.c.h.b16 %v5479
          %v5627 = vpack.c.b16 %v5619, %v5619
          %v5628 = vpack.c.b16 %v5620, %v5620
          %v5629 = vpack.c.b16 %v5621, %v5621
          %v5630 = vpack.c.b16 %v5622, %v5622
          %v5631 = vpack.c.b16 %v5623, %v5623
          %v5632 = vpack.c.b16 %v5624, %v5624
          %v5633 = vpack.c.b16 %v5625, %v5625
          %v5634 = vpack.c.b16 %v5626, %v5626
          %v5771 = vunpack.c.l.b16 %v5480
          %v5772 = vunpack.c.l.b16 %v5481
          %v5773 = vunpack.c.l.b16 %v5482
          %v5774 = vunpack.c.l.b16 %v5483
          %v5775 = vunpack.c.l.b16 %v5484
          %v5776 = vunpack.c.l.b16 %v5485
          %v5777 = vunpack.c.l.b16 %v5486
          %v5778 = vunpack.c.l.b16 %v5487
          %v5779 = vunpack.c.l.b16 %v5488
          %v5780 = vunpack.c.l.b16 %v5489
          %v5781 = vunpack.c.l.b16 %v5490
          %v5782 = vunpack.c.l.b16 %v5491
          %v5783 = vunpack.c.l.b16 %v5492
          %v5784 = vunpack.c.l.b16 %v5493
          %v5785 = vunpack.c.l.b16 %v5494
          %v5786 = vunpack.c.l.b16 %v5495
          %v5787 = vunpack.c.l.b16 %v5496
          %v5788 = vunpack.c.l.b16 %v5497
          %v5789 = vunpack.c.l.b16 %v5498
          %v5790 = vunpack.c.l.b16 %v5499
          %v5791 = vunpack.c.l.b16 %v5500
          %v5792 = vunpack.c.l.b16 %v5501
          %v5793 = vunpack.c.l.b16 %v5502
          %v5794 = vunpack.c.l.b16 %v5503
          %v5795 = vunpack.c.l.b16 %v5504
          %v5796 = vunpack.c.l.b16 %v5505
          %v5797 = vunpack.c.l.b16 %v5506
          %v5798 = vunpack.c.l.b16 %v5507
          %v5799 = vunpack.c.l.b16 %v5508
          %v5800 = vunpack.c.l.b16 %v5509
          %v5801 = vunpack.c.l.b16 %v5510
          %v5802 = vunpack.c.l.b16 %v5511
          %v5803 = vunpack.c.l.b16 %v5512
          %v5804 = vunpack.c.l.b16 %v5513
          %v5805 = vunpack.c.l.b16 %v5514
          %v5806 = vunpack.c.l.b16 %v5515
          %v5807 = vunpack.c.l.b16 %v5516
          %v5808 = vunpack.c.l.b16 %v5517
          %v5809 = vunpack.c.l.b16 %v5518
          %v5810 = vunpack.c.l.b16 %v5519
          %v5811 = vunpack.c.l.b16 %v5520
          %v5812 = vunpack.c.l.b16 %v5521
          %v5813 = vunpack.c.l.b16 %v5522
          %v5814 = vunpack.c.l.b16 %v5523
          %v5815 = vunpack.c.l.b16 %v5524
          %v5816 = vunpack.c.l.b16 %v5525
          %v5817 = vunpack.c.l.b16 %v5526
          %v5818 = vunpack.c.l.b16 %v5527
          %v5819 = vunpack.c.l.b16 %v5528
          %v5820 = vunpack.c.l.b16 %v5529
          %v5821 = vunpack.c.l.b16 %v5530
          %v5822 = vunpack.c.l.b16 %v5531
          %v5823 = vunpack.c.l.b16 %v5532
          %v5824 = vunpack.c.l.b16 %v5533
          %v5825 = vunpack.c.l.b16 %v5534
          %v5826 = vunpack.c.l.b16 %v5535
          %v5827 = vunpack.c.l.b16 %v5536
          %v5828 = vunpack.c.l.b16 %v5537
          %v5829 = vunpack.c.l.b16 %v5538
          %v5830 = vunpack.c.l.b16 %v5539
          %v5831 = vunpack.c.l.b16 %v5540
          %v5832 = vunpack.c.l.b16 %v5541
          %v5833 = vunpack.c.l.b16 %v5542
          %v5834 = vunpack.c.l.b16 %v5543
          %v5835 = vunpack.c.l.b16 %v5544
          %v5836 = vunpack.c.l.b16 %v5545
          %v5837 = vunpack.c.l.b16 %v5546
          %v5838 = vunpack.c.l.b16 %v5547
          %v5839 = vunpack.c.l.b16 %v5548
          %v5840 = vunpack.c.l.b16 %v5549
          %v5841 = vunpack.c.l.b16 %v5550
          %v5842 = vunpack.c.l.b16 %v5551
          %v5843 = vunpack.c.l.b16 %v5552
          %v5844 = vunpack.c.l.b16 %v5553
          %v5845 = vunpack.c.l.b16 %v5554
          %v5846 = vunpack.c.l.b16 %v5555
          %v5847 = vunpack.c.l.b16 %v5556
          %v5848 = vunpack.c.l.b16 %v5557
          %v5849 = vunpack.c.l.b16 %v5558
          %v5850 = vunpack.c.l.b16 %v5559
          %v5851 = vunpack.c.l.b16 %v5560
          %v5852 = vunpack.c.l.b16 %v5561
          %v5853 = vunpack.c.l.b16 %v5562
          %v5854 = vunpack.c.l.b16 %v5563
          %v5855 = vunpack.c.l.b16 %v5564
          %v5856 = vunpack.c.l.b16 %v5565
          %v5857 = vunpack.c.l.b16 %v5566
          %v5858 = vunpack.c.l.b16 %v5567
          %v5859 = vunpack.c.l.b16 %v5568
          %v5860 = vunpack.c.l.b16 %v5569
          %v5861 = vunpack.c.l.b16 %v5570
          %v5862 = vunpack.c.l.b16 %v5571
          %v5863 = vunpack.c.l.b16 %v5572
          %v5864 = vunpack.c.l.b16 %v5573
          %v5865 = vunpack.c.l.b16 %v5574
          %v5866 = vunpack.c.l.b16 %v5575
          %v5867 = vunpack.c.l.b16 %v5576
          %v5868 = vunpack.c.l.b16 %v5577
          %v5869 = vunpack.c.l.b16 %v5578
          %v5870 = vunpack.c.l.b16 %v5579
          %v5871 = vunpack.c.l.b16 %v5580
          %v5872 = vunpack.c.l.b16 %v5581
          %v5873 = vunpack.c.l.b16 %v5582
          %v5874 = vunpack.c.l.b16 %v5583
          %v5875 = vunpack.c.l.b16 %v5584
          %v5876 = vunpack.c.l.b16 %v5585
          %v5877 = vunpack.c.l.b16 %v5586
          %v5878 = vunpack.c.l.b16 %v5587
          %v5879 = vunpack.c.l.b16 %v5588
          %v5880 = vunpack.c.l.b16 %v5589
          %v5881 = vunpack.c.l.b16 %v5590
          %v5882 = vunpack.c.l.b16 %v5591
          %v5883 = vunpack.c.l.b16 %v5592
          %v5884 = vunpack.c.l.b16 %v5593
          %v5885 = vunpack.c.l.b16 %v5594
          %v5886 = vunpack.c.l.b16 %v5595
          %v5887 = vunpack.c.l.b16 %v5596
          %v5888 = vunpack.c.l.b16 %v5597
          %v5889 = vunpack.c.l.b16 %v5598
          %v5890 = vunpack.c.l.b16 %v5599
          %v5891 = vunpack.c.l.b16 %v5600
          %v5892 = vunpack.c.l.b16 %v5601
          %v5893 = vunpack.c.l.b16 %v5602
          %v5894 = vunpack.c.l.b16 %v5603
          %v5895 = vunpack.c.l.b16 %v5604
          %v5896 = vunpack.c.l.b16 %v5605
          %v5897 = vunpack.c.l.b16 %v5606
          %v5898 = vunpack.c.l.b16 %v5607
          %v5899 = vpack.c.b16 %v5772, %v5771
          %v5900 = vpack.c.b16 %v5774, %v5773
          %v5901 = vpack.c.b16 %v5776, %v5775
          %v5902 = vpack.c.b16 %v5778, %v5777
          %v5903 = vpack.c.b16 %v5780, %v5779
          %v5904 = vpack.c.b16 %v5782, %v5781
          %v5905 = vpack.c.b16 %v5784, %v5783
          %v5906 = vpack.c.b16 %v5786, %v5785
          %v5907 = vpack.c.b16 %v5788, %v5787
          %v5908 = vpack.c.b16 %v5790, %v5789
          %v5909 = vpack.c.b16 %v5792, %v5791
          %v5910 = vpack.c.b16 %v5794, %v5793
          %v5911 = vpack.c.b16 %v5796, %v5795
          %v5912 = vpack.c.b16 %v5798, %v5797
          %v5913 = vpack.c.b16 %v5800, %v5799
          %v5914 = vpack.c.b16 %v5802, %v5801
          %v5915 = vpack.c.b16 %v5804, %v5803
          %v5916 = vpack.c.b16 %v5806, %v5805
          %v5917 = vpack.c.b16 %v5808, %v5807
          %v5918 = vpack.c.b16 %v5810, %v5809
          %v5919 = vpack.c.b16 %v5812, %v5811
          %v5920 = vpack.c.b16 %v5814, %v5813
          %v5921 = vpack.c.b16 %v5816, %v5815
          %v5922 = vpack.c.b16 %v5818, %v5817
          %v5923 = vpack.c.b16 %v5820, %v5819
          %v5924 = vpack.c.b16 %v5822, %v5821
          %v5925 = vpack.c.b16 %v5824, %v5823
          %v5926 = vpack.c.b16 %v5826, %v5825
          %v5927 = vpack.c.b16 %v5828, %v5827
          %v5928 = vpack.c.b16 %v5830, %v5829
          %v5929 = vpack.c.b16 %v5832, %v5831
          %v5930 = vpack.c.b16 %v5834, %v5833
          %v5931 = vpack.c.b16 %v5836, %v5835
          %v5932 = vpack.c.b16 %v5838, %v5837
          %v5933 = vpack.c.b16 %v5840, %v5839
          %v5934 = vpack.c.b16 %v5842, %v5841
          %v5935 = vpack.c.b16 %v5844, %v5843
          %v5936 = vpack.c.b16 %v5846, %v5845
          %v5937 = vpack.c.b16 %v5848, %v5847
          %v5938 = vpack.c.b16 %v5850, %v5849
          %v5939 = vpack.c.b16 %v5852, %v5851
          %v5940 = vpack.c.b16 %v5854, %v5853
          %v5941 = vpack.c.b16 %v5856, %v5855
          %v5942 = vpack.c.b16 %v5858, %v5857
          %v5943 = vpack.c.b16 %v5860, %v5859
          %v5944 = vpack.c.b16 %v5862, %v5861
          %v5945 = vpack.c.b16 %v5864, %v5863
          %v5946 = vpack.c.b16 %v5866, %v5865
          %v5947 = vpack.c.b16 %v5868, %v5867
          %v5948 = vpack.c.b16 %v5870, %v5869
          %v5949 = vpack.c.b16 %v5872, %v5871
          %v5950 = vpack.c.b16 %v5874, %v5873
          %v5951 = vpack.c.b16 %v5876, %v5875
          %v5952 = vpack.c.b16 %v5878, %v5877
          %v5953 = vpack.c.b16 %v5880, %v5879
          %v5954 = vpack.c.b16 %v5882, %v5881
          %v5955 = vpack.c.b16 %v5884, %v5883
          %v5956 = vpack.c.b16 %v5886, %v5885
          %v5957 = vpack.c.b16 %v5888, %v5887
          %v5958 = vpack.c.b16 %v5890, %v5889
          %v5959 = vpack.c.b16 %v5892, %v5891
          %v5960 = vpack.c.b16 %v5894, %v5893
          %v5961 = vpack.c.b16 %v5896, %v5895
          %v5962 = vpack.c.b16 %v5898, %v5897
          %6027 = vmatprep.subr.bf16.mxu0 0
          %6028 = vmatpush1.bf16.msra.mxu0 %v5899
          %6029 = vmatprep.subr.bf16.mxu0 0
          %6030 = vmatpush1.bf16.msra.mxu0 %v5900
          %6031 = vmatprep.subr.bf16.mxu0 0
          %6032 = vmatpush1.bf16.msra.mxu0 %v5901
          %6033 = vmatprep.subr.bf16.mxu0 0
          %6034 = vmatpush1.bf16.msra.mxu0 %v5902
          %6035 = vmatprep.subr.bf16.mxu0 0
          %6036 = vmatpush1.bf16.msra.mxu0 %v5903
          %6037 = vmatprep.subr.bf16.mxu0 0
          %6038 = vmatpush1.bf16.msra.mxu0 %v5904
          %6039 = vmatprep.subr.bf16.mxu0 0
          %6040 = vmatpush1.bf16.msra.mxu0 %v5905
          %6041 = vmatprep.subr.bf16.mxu0 0
          %6042 = vmatpush1.bf16.msra.mxu0 %v5906
          %6043 = vmatprep.subr.bf16.mxu0 0
          %6044 = vmatpush1.bf16.msra.mxu0 %v5907
          %6045 = vmatprep.subr.bf16.mxu0 0
          %6046 = vmatpush1.bf16.msra.mxu0 %v5908
          %6047 = vmatprep.subr.bf16.mxu0 0
          %6048 = vmatpush1.bf16.msra.mxu0 %v5909
          %6049 = vmatprep.subr.bf16.mxu0 0
          %6050 = vmatpush1.bf16.msra.mxu0 %v5910
          %6051 = vmatprep.subr.bf16.mxu0 0
          %6052 = vmatpush1.bf16.msra.mxu0 %v5911
          %6053 = vmatprep.subr.bf16.mxu0 0
          %6054 = vmatpush1.bf16.msra.mxu0 %v5912
          %6055 = vmatprep.subr.bf16.mxu0 0
          %6056 = vmatpush1.bf16.msra.mxu0 %v5913
          %6057 = vmatprep.subr.bf16.mxu0 0
          %6058 = vmatpush1.bf16.msra.mxu0 %v5914
          %6059 = vmatprep.mubr.bf16.mxu0 %v5628
          %6060 = vmatmul.mubr.bf16.gmra.mrb[0].mxu0 %v5627
          %v6061 = vpop.f32.mrb[0].mxu0
          %v6062 = vadd.f32 %v5613, %v6061
          %v6063 = vpop.f32.mrb[0].mxu0
          %v6064 = vpop.f32.mrb[0].mxu0
          %v6065 = vpop.f32.mrb[0].mxu0
          %6066 = vdwg.mxu0
          %6067 = vmatprep.subr.bf16.mxu0 0
          %6068 = vmatpush1.bf16.msra.mxu0 %v5915
          %6069 = vmatprep.subr.bf16.mxu0 0
          %6070 = vmatpush1.bf16.msra.mxu0 %v5916
          %6071 = vmatprep.subr.bf16.mxu0 0
          %6072 = vmatpush1.bf16.msra.mxu0 %v5917
          %6073 = vmatprep.subr.bf16.mxu0 0
          %6074 = vmatpush1.bf16.msra.mxu0 %v5918
          %6075 = vmatprep.subr.bf16.mxu0 0
          %6076 = vmatpush1.bf16.msra.mxu0 %v5919
          %6077 = vmatprep.subr.bf16.mxu0 0
          %6078 = vmatpush1.bf16.msra.mxu0 %v5920
          %6079 = vmatprep.subr.bf16.mxu0 0
          %6080 = vmatpush1.bf16.msra.mxu0 %v5921
          %6081 = vmatprep.subr.bf16.mxu0 0
          %6082 = vmatpush1.bf16.msra.mxu0 %v5922
          %6083 = vmatprep.subr.bf16.mxu0 0
          %6084 = vmatpush1.bf16.msra.mxu0 %v5923
          %6085 = vmatprep.subr.bf16.mxu0 0
          %6086 = vmatpush1.bf16.msra.mxu0 %v5924
          %6087 = vmatprep.subr.bf16.mxu0 0
          %6088 = vmatpush1.bf16.msra.mxu0 %v5925
          %6089 = vmatprep.subr.bf16.mxu0 0
          %6090 = vmatpush1.bf16.msra.mxu0 %v5926
          %6091 = vmatprep.subr.bf16.mxu0 0
          %6092 = vmatpush1.bf16.msra.mxu0 %v5927
          %6093 = vmatprep.subr.bf16.mxu0 0
          %6094 = vmatpush1.bf16.msra.mxu0 %v5928
          %6095 = vmatprep.subr.bf16.mxu0 0
          %6096 = vmatpush1.bf16.msra.mxu0 %v5929
          %6097 = vmatprep.subr.bf16.mxu0 0
          %6098 = vmatpush1.bf16.msra.mxu0 %v5930
          %6099 = vmatprep.mubr.bf16.mxu0 %v5630
          %6100 = vmatmul.mubr.bf16.gmra.mrb[0].mxu0 %v5629
          %v6101 = vpop.f32.mrb[0].mxu0
          %v6102 = vadd.f32 %v6062, %v6101
          %v6103 = vpop.f32.mrb[0].mxu0
          %v6104 = vpop.f32.mrb[0].mxu0
          %v6105 = vpop.f32.mrb[0].mxu0
          %6106 = vdwg.mxu0
          %6107 = vmatprep.subr.bf16.mxu0 0
          %6108 = vmatpush1.bf16.msra.mxu0 %v5931
          %6109 = vmatprep.subr.bf16.mxu0 0
          %6110 = vmatpush1.bf16.msra.mxu0 %v5932
          %6111 = vmatprep.subr.bf16.mxu0 0
          %6112 = vmatpush1.bf16.msra.mxu0 %v5933
          %6113 = vmatprep.subr.bf16.mxu0 0
          %6114 = vmatpush1.bf16.msra.mxu0 %v5934
          %6115 = vmatprep.subr.bf16.mxu0 0
          %6116 = vmatpush1.bf16.msra.mxu0 %v5935
          %6117 = vmatprep.subr.bf16.mxu0 0
          %6118 = vmatpush1.bf16.msra.mxu0 %v5936
          %6119 = vmatprep.subr.bf16.mxu0 0
          %6120 = vmatpush1.bf16.msra.mxu0 %v5937
          %6121 = vmatprep.subr.bf16.mxu0 0
          %6122 = vmatpush1.bf16.msra.mxu0 %v5938
          %6123 = vmatprep.subr.bf16.mxu0 0
          %6124 = vmatpush1.bf16.msra.mxu0 %v5939
          %6125 = vmatprep.subr.bf16.mxu0 0
          %6126 = vmatpush1.bf16.msra.mxu0 %v5940
          %6127 = vmatprep.subr.bf16.mxu0 0
          %6128 = vmatpush1.bf16.msra.mxu0 %v5941
          %6129 = vmatprep.subr.bf16.mxu0 0
          %6130 = vmatpush1.bf16.msra.mxu0 %v5942
          %6131 = vmatprep.subr.bf16.mxu0 0
          %6132 = vmatpush1.bf16.msra.mxu0 %v5943
          %6133 = vmatprep.subr.bf16.mxu0 0
          %6134 = vmatpush1.bf16.msra.mxu0 %v5944
          %6135 = vmatprep.subr.bf16.mxu0 0
          %6136 = vmatpush1.bf16.msra.mxu0 %v5945
          %6137 = vmatprep.subr.bf16.mxu0 0
          %6138 = vmatpush1.bf16.msra.mxu0 %v5946
          %6139 = vmatprep.mubr.bf16.mxu0 %v5632
          %6140 = vmatmul.mubr.bf16.gmra.mrb[0].mxu0 %v5631
          %v6141 = vpop.f32.mrb[0].mxu0
          %v6142 = vadd.f32 %v6102, %v6141
          %v6143 = vpop.f32.mrb[0].mxu0
          %v6144 = vpop.f32.mrb[0].mxu0
          %v6145 = vpop.f32.mrb[0].mxu0
          %6146 = vdwg.mxu0
          %6147 = vmatprep.subr.bf16.mxu0 0
          %6148 = vmatpush1.bf16.msra.mxu0 %v5947
          %6149 = vmatprep.subr.bf16.mxu0 0
          %6150 = vmatpush1.bf16.msra.mxu0 %v5948
          %6151 = vmatprep.subr.bf16.mxu0 0
          %6152 = vmatpush1.bf16.msra.mxu0 %v5949
          %6153 = vmatprep.subr.bf16.mxu0 0
          %6154 = vmatpush1.bf16.msra.mxu0 %v5950
          %6155 = vmatprep.subr.bf16.mxu0 0
          %6156 = vmatpush1.bf16.msra.mxu0 %v5951
          %6157 = vmatprep.subr.bf16.mxu0 0
          %6158 = vmatpush1.bf16.msra.mxu0 %v5952
          %6159 = vmatprep.subr.bf16.mxu0 0
          %6160 = vmatpush1.bf16.msra.mxu0 %v5953
          %6161 = vmatprep.subr.bf16.mxu0 0
          %6162 = vmatpush1.bf16.msra.mxu0 %v5954
          %6163 = vmatprep.subr.bf16.mxu0 0
          %6164 = vmatpush1.bf16.msra.mxu0 %v5955
          %6165 = vmatprep.subr.bf16.mxu0 0
          %6166 = vmatpush1.bf16.msra.mxu0 %v5956
          %6167 = vmatprep.subr.bf16.mxu0 0
          %6168 = vmatpush1.bf16.msra.mxu0 %v5957
          %6169 = vmatprep.subr.bf16.mxu0 0
          %6170 = vmatpush1.bf16.msra.mxu0 %v5958
          %6171 = vmatprep.subr.bf16.mxu0 0
          %6172 = vmatpush1.bf16.msra.mxu0 %v5959
          %6173 = vmatprep.subr.bf16.mxu0 0
          %6174 = vmatpush1.bf16.msra.mxu0 %v5960
          %6175 = vmatprep.subr.bf16.mxu0 0
          %6176 = vmatpush1.bf16.msra.mxu0 %v5961
          %6177 = vmatprep.subr.bf16.mxu0 0
          %6178 = vmatpush1.bf16.msra.mxu0 %v5962
          %6179 = vmatprep.mubr.bf16.mxu0 %v5634
          %6180 = vmatmul.mubr.bf16.gmra.mrb[0].mxu0 %v5633
          %v6181 = vpop.f32.mrb[0].mxu0
          %v6182 = vadd.f32 %v6142, %v6181
          %v6183 = vpop.f32.mrb[0].mxu0
          %v6184 = vpop.f32.mrb[0].mxu0
          %v6185 = vpop.f32.mrb[0].mxu0
          %6186 = vdwg.mxu0
          %6187 = vst [vmem:[#allocation17] sm:$0xff] %v6182
        $region96: #{forward.1} parent=55 // pred_fallthru
          _
        // Predicated region
        $region97: #{forward.1} parent=55 // pred_check
          %p6188 = pneg %p247
        $region98: #{forward.1} parent=55 // pred_check_branch
          %6190 = sbr.rel (%p6188) target = $region100
        $region99: #{forward.1} parent=55 // pred_region
          %s6192 = ssub.s32 128, 128
          %6193 = vsyncadd [#allocation5], %s6192
          %s6195 = sshll.u32 [#allocation17], 4
          %s6196 = int_to_ptr.vmem [resolvable:$true] %s6195
          %6198 = dma.vmem_to_hbm [thread:$0]  %s6196, 128, %s9, [#allocation5]
        $region100: #{forward.1} parent=55 // pred_fallthru
          _
        // Predicated region
        $region101: #{forward.1} parent=55 // pred_check
          %p6199 = pneg %p247
        $region102: #{forward.1} parent=55 // pred_check_branch
          %6201 = sbr.rel (%p6199) target = $region104
        $region103: #{forward.1} parent=55 // pred_region
          %6202 = dma.done [#allocation5], 128
        $region104: #{forward.1} parent=55 // pred_fallthru
          _
      $region56: #{forward.1} parent=5 // pred_fallthru
        _
      %p6203 = scmp.le.s32.totalorder 2, %s25
      // Predicated region
      $region105: #{forward.1} parent=5 // pred_check
        %p6204 = pneg %p6203
      $region106: #{forward.1} parent=5 // pred_check_branch
        %6206 = sbr.rel (%p6204) target = $region108
      $region107: #{forward.1} parent=5 // pred_region
        %s6207 = ssub.s32 %s25, 2
      $region108: #{forward.1} parent=5 // pred_fallthru
        _
    $region6: #{forward.1} parent=1 // loop_footer
      %s29 = sadd.s32 1, %s25
    $region7: #{forward.1} parent=1 // loop_footer_branch
      %24 = sbr.rel target = $region3
    $region8: #{forward.1} parent=1 // loop_exit
      _
    %6208 = vsyncpa [#allocation4], 1
    %s6209 = scalar_lea.sflag [#allocation4], 1
    %6210 = vsyncpa %s6209, 1
    %6211 = vsyncpa [#allocation7], 1
    %6212 = vsyncpa [#allocation10], 1
    %s6213 = scalar_lea.sflag [#allocation10], 1
    %6214 = vsyncpa %s6213, 1
    %6215 = vsyncpa [#allocation13], 1
    %s6216 = scalar_lea.sflag [#allocation13], 1
    %6217 = vsyncpa %s6216, 1
    %6218 = vsyncpa [#allocation16], 1
    %6219 = vsyncpa [#allocation5], 1
    %s6220 = scalar_lea.sflag [#allocation5], 1
    %6221 = vsyncpa %s6220, 1

</llo_original>
